<compile_context>
chip_gen: v6e
topology: v6e:2x2x1
jax: 0.10.0
libtpu: 0.0.40
codegen_flags: <defaults>
</compile_context>

<pallas_src>
import numpy as np
import jax
import jax.numpy as jnp
from jax.experimental import pallas as pl
from jax.experimental.pallas import tpu as pltpu

# ----------------------------- configuration --------------------------------
NR, NC = 2, 2                 # nwindows = (2, 2)
M = NR * NC                   # number of subdomain models
M_PAD = 8                     # models padded to a full sublane group
HIDDEN = 2                    # NN(hidden, neurons, 2): in-layer + (hidden-1) hidden + out
NEURONS = 32
LANES = M * NEURONS           # 128: packed (model, neuron) feature dimension
IN_PAD = 8                    # augmented input rows [x; y; 1; 0 x5]
OVERLAP = 0.25
SIGMA = 0.05
U_MEAN = 0.1                  # problem.u_mean (synthetic)
U_SD = 0.5                    # problem.u_sd   (synthetic)
DOMAIN = np.array([[0.0, 1.0], [0.0, 1.0]], dtype=np.float32)
TP = 2048                     # points per grid step (points live on lanes)


# ------------------------------ Pallas kernel -------------------------------
def fbpinn_kernel(p_ref, w1_ref, wh_ref, bh_ref, wo_ref, wc_ref, o_ref):
    p = p_ref[...]            # (IN_PAD, TP): rows are [x; y; 1; zeros]
    x = p[0:1, :]             # (1, TP)
    y = p[1:2, :]             # (1, TP)
    wc = wc_ref[...]          # (M_PAD, 16) per-model window / subdomain / bias columns

    xl = wc[:, 0:1]
    xr = wc[:, 1:2]
    yl = wc[:, 2:3]
    yr = wc[:, 3:4]
    x0 = wc[:, 4:5]
    x1 = wc[:, 5:6]
    y0 = wc[:, 6:7]
    y1 = wc[:, 7:8]
    bo = wc[:, 8:9]

    # sigmoid written as a single EUP tanh: sigmoid(z) = 0.5*(tanh(z/2)+1)
    half_inv_sigma = 0.5 / SIGMA

    def sig_half(z_times_half_inv_sigma):
        return 0.5 * (jnp.tanh(z_times_half_inv_sigma) + 1.0)

    # windows / masks for all models at once, points on lanes: (M_PAD, TP)
    window = (sig_half((x - xl) * half_inv_sigma)
              * sig_half((xr - x) * half_inv_sigma)
              * sig_half((y - yl) * half_inv_sigma)
              * sig_half((yr - y) * half_inv_sigma))
    mask = ((x0 < x) & (x < x1) & (y0 < y) & (y < y1)).astype(jnp.float32)

    # first layer on the MXU, normalization + bias folded into W1p:
    # h[j, pt] = tanh( sum_k W1p[j, k] * P[k, pt] ),  j = model*NEURONS + neuron
    h = jnp.tanh(jnp.dot(w1_ref[...], p, preferred_element_type=jnp.float32))  # (LANES, TP)

    # hidden layers: one block-diagonal (LANES, LANES) matmul per layer on the MXU
    for l in range(HIDDEN - 1):
        h = jnp.tanh(jnp.dot(wh_ref[l], h, preferred_element_type=jnp.float32)
                     + bh_ref[l])                                               # (LANES, TP)

    # output layer: per-model scalar outputs with points on lanes
    out = jnp.dot(wo_ref[...], h, preferred_element_type=jnp.float32) + bo      # (M_PAD, TP)
    out = out * U_SD + U_MEAN

    # weight by mask * window and sum over models (pad rows contribute exactly 0)
    o_ref[...] = jnp.sum(mask * window * out, axis=0, keepdims=True)            # (1, TP)
    # TODO(synk): problem.hard_constraint(pred, input) is problem-specific and
    # not defined in the reference; it is treated as the identity here.


def _resident(shape):
    """BlockSpec that covers the whole array with a constant block index
    (DMA'd once, resident in VMEM for the whole grid)."""
    nd = len(shape)
    return pl.BlockSpec(shape, lambda t: (0,) * nd)


def fbpinn_forward(points, w1p, wh_bd, bh_col, wo_rows, wc):
    """points: (N, 2) float32.  Returns pred: (N,) float32."""
    N = points.shape[0]
    tiles = pl.cdiv(N, TP)
    NP = tiles * TP

    # lane-dense augmented point layout: (IN_PAD, NP) = [x; y; 1; zeros].
    # Padded tail points are (0, 0): strict subdomain inequalities give mask=0,
    # and the padded lanes are sliced off below, so they never contribute.
    p_aug = jnp.zeros((IN_PAD, NP), jnp.float32)
    p_aug = p_aug.at[0, :N].set(points[:, 0])
    p_aug = p_aug.at[1, :N].set(points[:, 1])
    p_aug = p_aug.at[2, :].set(1.0)

    weight_bytes = 4 * (LANES * IN_PAD + (HIDDEN - 1) * (LANES * LANES + LANES)
                        + M_PAD * LANES + M_PAD * 16)
    flops_per_step = 2 * TP * (LANES * IN_PAD
                               + (HIDDEN - 1) * LANES * LANES
                               + M_PAD * LANES)
    trans_per_step = TP * (HIDDEN * LANES + 4 * M_PAD)
    cost = pl.CostEstimate(
        flops=int(tiles * flops_per_step),
        transcendentals=int(tiles * trans_per_step),
        bytes_accessed=int((IN_PAD + 1) * NP * 4 + weight_bytes))

    pred = pl.pallas_call(
        fbpinn_kernel,
        out_shape=jax.ShapeDtypeStruct((1, NP), jnp.float32),
        grid=(tiles,),
        in_specs=[
            pl.BlockSpec((IN_PAD, TP), lambda t: (0, t)),             # [x; y; 1] tile
            _resident((LANES, IN_PAD)),                               # packed first layer
            _resident((HIDDEN - 1, LANES, LANES)),                    # block-diag Wh^T
            _resident((HIDDEN - 1, LANES, 1)),                        # bh columns
            _resident((M_PAD, LANES)),                                # Wo rows
            _resident((M_PAD, 16)),                                   # window/mask/bias table
        ],
        out_specs=pl.BlockSpec((1, TP), lambda t: (0, t)),
        compiler_params=pltpu.CompilerParams(
            dimension_semantics=("parallel",),
            vmem_limit_bytes=32 * 1024 * 1024),
        cost_estimate=cost,
    )(p_aug, w1p, wh_bd, bh_col, wo_rows, wc)
    return pred[0, :N]


# ------------------------- host-side domain setup ----------------------------
def cartesian_prod(a, b):
    A, B = np.meshgrid(a, b, indexing="ij")
    return np.stack([A.ravel(), B.ravel()], axis=1).astype(np.float32)


def partition_domain(domain, nwindows, overlap):
    nr, nc = nwindows
    sub = np.zeros((nr + nc, 2), np.float32)
    wx = (domain[0][1] - domain[0][0]) / nr
    wy = (domain[1][1] - domain[1][0]) / nc
    for i in range(nr):
        sub[i, 0] = domain[0][0] + (i - overlap / 2) * wx if i != 0 else domain[0][0]
        sub[i, 1] = domain[0][0] + (i + 1 + overlap / 2) * wx if i != nr - 1 else domain[0][1]
    for j in range(nc):
        sub[nr + j, 0] = domain[1][0] + (j - overlap / 2) * wy if j != 0 else domain[1][0]
        sub[nr + j, 1] = domain[1][0] + (j + 1 + overlap / 2) * wy if j != nc - 1 else domain[1][1]
    return sub


def get_midpoints_overlap(sub, nwindows):
    nr, nc = nwindows
    mr = np.zeros(nr + 1, np.float32)
    mc = np.zeros(nc + 1, np.float32)
    mr[0] = sub[0, 0]
    mr[nr] = sub[nr - 1, 1]
    mc[0] = sub[0, 0]
    mc[nc] = sub[nr + nc - 1, 1]
    for i in range(1, nr):
        mr[i] = (sub[i - 1, 1] + sub[i, 0]) / 2
    for j in range(1, nc):
        mc[j] = (sub[nr + j - 1, 1] + sub[nr + j, 0]) / 2
    return cartesian_prod(mr, mc)


def build_params(bo):
    """Per-model scalar table (M, 13):
    [0:4] window midpoints (xl, xr, yl, yr), [4:8] subdomain (x0,x1,y0,y1),
    [8:10] means, [10:12] stds, [12] output bias."""
    sub = partition_domain(DOMAIN, (NR, NC), OVERLAP)
    sub_row, sub_col = sub[:NR], sub[NR:NR + NC]
    mid_row = (sub_row[:, 1] + sub_row[:, 0]) / 2
    mid_col = (sub_col[:, 1] + sub_col[:, 0]) / 2
    means = cartesian_prod(mid_row, mid_col)
    std_row = (sub_row[:, 1] - sub_row[:, 0]) / 2
    std_col = (sub_col[:, 1] - sub_col[:, 0]) / 2
    std = cartesian_prod(std_row, std_col)
    mov = get_midpoints_overlap(sub, (NR, NC))

    params = np.zeros((M, 13), np.float32)
    for i in range(M):
        r, c = divmod(i, NC)
        rr = r * (NR + 1)                       # exact indexing of the reference code
        params[i, 0] = mov[rr + c, 0]           # x_left midpoint
        params[i, 1] = mov[rr + c + 1 + NC, 0]  # x_right midpoint
        params[i, 2] = mov[rr + c, 1]           # y_left midpoint
        params[i, 3] = mov[rr + c + 1, 1]       # y_right midpoint
        assert params[i, 0] < params[i, 1] and params[i, 2] < params[i, 3]
        row, col = divmod(i, NC)
        col = col + NR
        params[i, 4] = sub[row, 0]
        params[i, 5] = sub[row, 1]
        params[i, 6] = sub[col, 0]
        params[i, 7] = sub[col, 1]
        params[i, 8] = means[i, 0]
        params[i, 9] = means[i, 1]
        params[i, 10] = std[i, 0]
        params[i, 11] = std[i, 1]
        params[i, 12] = bo[i]
    return params


def pack_model(params_np, W1, b1, Wh, bh, Wo):
    """Pack the M per-subdomain MLPs into lane/sublane-dense operands."""
    W1 = np.asarray(W1, np.float64)
    b1 = np.asarray(b1, np.float64)
    Wh = np.asarray(Wh, np.float64)
    bh = np.asarray(bh, np.float64)
    Wo = np.asarray(Wo, np.float64)
    p = np.asarray(params_np, np.float64)

    w1p = np.zeros((LANES, IN_PAD))            # columns: [a_x | a_y | c | 0...]
    wh_bd = np.zeros((HIDDEN - 1, LANES, LANES))
    bh_col = np.zeros((HIDDEN - 1, LANES, 1))
    wo_rows = np.zeros((M_PAD, LANES))
    wc = np.zeros((M_PAD, 16))
    for m in range(M):
        sl = slice(m * NEURONS, (m + 1) * NEURONS)
        mx, my, sx, sy = p[m, 8], p[m, 9], p[m, 10], p[m, 11]
        # fold (x - mx)/sx normalization and the first-layer bias into W1p
        w1p[sl, 0] = W1[m, 0, :] / sx
        w1p[sl, 1] = W1[m, 1, :] / sy
        w1p[sl, 2] = b1[m, 0, :] - (mx / sx) * W1[m, 0, :] - (my / sy) * W1[m, 1, :]
        for l in range(HIDDEN - 1):
            wh_bd[l, sl, sl] = Wh[m, l].T      # transposed block-diagonal: h_new = W^T @ h
            bh_col[l, sl, 0] = bh[m, l, 0, :]
        wo_rows[m, sl] = Wo[m, 0, :]
        wc[m, 0:8] = p[m, 0:8]                 # window midpoints + subdomain bounds
        wc[m, 8] = p[m, 12]                    # output bias
    to32 = lambda a: jnp.asarray(a.astype(np.float32))
    return (to32(w1p), to32(wh_bd), to32(bh_col), to32(wo_rows), to32(wc))


def nn_flops(n):
    # TODO(synk): NN.flops() is not defined in the reference; standard MAC count.
    return n * (2 * 2 * NEURONS + (HIDDEN - 1) * 2 * NEURONS * NEURONS + 2 * NEURONS)


# ------------------------------ pure-JAX reference ---------------------------
def reference_forward(points, params, w1, b1, wh, bh, wo):
    x = points[:, 0:1]
    y = points[:, 1:2]
    pred = jnp.zeros_like(x)
    inv_sigma = 1.0 / SIGMA
    for i in range(M):
        p = params[i]
        window = (jax.nn.sigmoid((x - p[0]) * inv_sigma)
                  * jax.nn.sigmoid(-(x - p[1]) * inv_sigma)
                  * jax.nn.sigmoid((y - p[2]) * inv_sigma)
                  * jax.nn.sigmoid(-(y - p[3]) * inv_sigma))
        mask = ((p[4] < x) & (x < p[5]) & (p[6] < y) & (y < p[7])).astype(jnp.float32)
        xn = (x - p[8]) / p[10]
        yn = (y - p[9]) / p[11]
        h = jnp.tanh(xn * w1[i, 0:1, :] + yn * w1[i, 1:2, :] + b1[i, 0])
        for l in range(HIDDEN - 1):
            h = jnp.tanh(jnp.dot(h, wh[i, l]) + bh[i, l, 0])
        out = jnp.sum(h * wo[i, 0], axis=-1, keepdims=True) + p[12]
        out = out * U_SD + U_MEAN
        pred = pred + mask * window * out
    return pred[:, 0]


# ----------------------------------- main ------------------------------------
if __name__ == "__main__":
    N = 4000                                   # pads to 2 lane-dense tiles of TP=2048
    key = jax.random.PRNGKey(0)
    kp, k1, k2, k3, k4, k5, k6 = jax.random.split(key, 7)

    points = jax.random.uniform(kp, (N, 2), dtype=jnp.float32)          # in [0,1]^2

    s_in = 1.0 / np.sqrt(2.0)
    s_h = 1.0 / np.sqrt(NEURONS)
    W1 = jax.random.uniform(k1, (M, 2, NEURONS), minval=-s_in, maxval=s_in, dtype=jnp.float32)
    b1 = jax.random.uniform(k2, (M, 1, NEURONS), minval=-s_in, maxval=s_in, dtype=jnp.float32)
    Wh = jax.random.uniform(k3, (M, HIDDEN - 1, NEURONS, NEURONS), minval=-s_h, maxval=s_h, dtype=jnp.float32)
    bh = jax.random.uniform(k4, (M, HIDDEN - 1, 1, NEURONS), minval=-s_h, maxval=s_h, dtype=jnp.float32)
    Wo = jax.random.uniform(k5, (M, 1, NEURONS), minval=-s_h, maxval=s_h, dtype=jnp.float32)
    bo = np.asarray(jax.random.uniform(k6, (M,), minval=-s_h, maxval=s_h, dtype=jnp.float32))

    params_np = build_params(bo)
    packed = pack_model(params_np, W1, b1, Wh, bh, Wo)

    pred = fbpinn_forward(points, *packed)
    pred = jax.block_until_ready(pred)

    # flops bookkeeping (host glue, mirrors flops += model.flops(n_in_subdomain))
    pts_np = np.asarray(points)
    flops = 0
    for i in range(M):
        x0, x1, y0, y1 = params_np[i, 4:8]
        cnt = int(np.sum((x0 < pts_np[:, 0]) & (pts_np[:, 0] < x1)
                         & (y0 < pts_np[:, 1]) & (pts_np[:, 1] < y1)))
        flops += nn_flops(cnt)

    ref = jax.block_until_ready(
        reference_forward(points, jnp.asarray(params_np), W1, b1, Wh, bh, Wo))
    np.testing.assert_allclose(np.asarray(pred), np.asarray(ref), rtol=1e-4, atol=1e-4)

    print("KERNEL_OK")
</pallas_src>

<mosaic_0001>
module attributes {stable_mosaic.version = 11 : i64} {
  func.func @fbpinn_kernel(%arg0: i32, %arg1: memref<8x2048xf32, #tpu.memory_space<vmem>>, %arg2: memref<128x8xf32, #tpu.memory_space<vmem>>, %arg3: memref<1x128x128xf32, #tpu.memory_space<vmem>>, %arg4: memref<1x128x1xf32, #tpu.memory_space<vmem>>, %arg5: memref<8x128xf32, #tpu.memory_space<vmem>>, %arg6: memref<8x16xf32, #tpu.memory_space<vmem>>, %arg7: memref<1x2048xf32, #tpu.memory_space<vmem>>) attributes {dimension_semantics = [#tpu.dimension_semantics<parallel>], iteration_bounds = array<i64: 2>, scalar_prefetch = 0 : i64, scratch_operands = 0 : i64, tpu.core_type = #tpu.core_type<tc>, window_params = [{transform_indices = @transform_0, window_bounds = array<i64: 8, 2048>}, {pipeline_mode = #tpu.pipeline_mode<synchronous>, transform_indices = @transform_1, window_bounds = array<i64: 128, 8>}, {pipeline_mode = #tpu.pipeline_mode<synchronous>, transform_indices = @transform_2, window_bounds = array<i64: 1, 128, 128>}, {pipeline_mode = #tpu.pipeline_mode<synchronous>, transform_indices = @transform_3, window_bounds = array<i64: 1, 128, 1>}, {pipeline_mode = #tpu.pipeline_mode<synchronous>, transform_indices = @transform_4, window_bounds = array<i64: 8, 128>}, {pipeline_mode = #tpu.pipeline_mode<synchronous>, transform_indices = @transform_5, window_bounds = array<i64: 8, 16>}, {transform_indices = @transform_6, window_bounds = array<i64: 1, 2048>}]} {
    %c0 = arith.constant 0 : index
    %c0_0 = arith.constant 0 : index
    %0 = vector.load %arg1[%c0, %c0_0] : memref<8x2048xf32, #tpu.memory_space<vmem>>, vector<8x2048xf32>
    %1 = vector.extract_strided_slice %0 {offsets = [0, 0], sizes = [1, 2048], strides = [1, 1]} : vector<8x2048xf32> to vector<1x2048xf32>
    %2 = vector.extract_strided_slice %0 {offsets = [1, 0], sizes = [1, 2048], strides = [1, 1]} : vector<8x2048xf32> to vector<1x2048xf32>
    %c0_1 = arith.constant 0 : index
    %c0_2 = arith.constant 0 : index
    %3 = vector.load %arg6[%c0_1, %c0_2] : memref<8x16xf32, #tpu.memory_space<vmem>>, vector<8x16xf32>
    %4 = vector.extract_strided_slice %3 {offsets = [0, 0], sizes = [8, 1], strides = [1, 1]} : vector<8x16xf32> to vector<8x1xf32>
    %5 = vector.extract_strided_slice %3 {offsets = [0, 1], sizes = [8, 1], strides = [1, 1]} : vector<8x16xf32> to vector<8x1xf32>
    %6 = vector.extract_strided_slice %3 {offsets = [0, 2], sizes = [8, 1], strides = [1, 1]} : vector<8x16xf32> to vector<8x1xf32>
    %7 = vector.extract_strided_slice %3 {offsets = [0, 3], sizes = [8, 1], strides = [1, 1]} : vector<8x16xf32> to vector<8x1xf32>
    %8 = vector.extract_strided_slice %3 {offsets = [0, 4], sizes = [8, 1], strides = [1, 1]} : vector<8x16xf32> to vector<8x1xf32>
    %9 = vector.extract_strided_slice %3 {offsets = [0, 5], sizes = [8, 1], strides = [1, 1]} : vector<8x16xf32> to vector<8x1xf32>
    %10 = vector.extract_strided_slice %3 {offsets = [0, 6], sizes = [8, 1], strides = [1, 1]} : vector<8x16xf32> to vector<8x1xf32>
    %11 = vector.extract_strided_slice %3 {offsets = [0, 7], sizes = [8, 1], strides = [1, 1]} : vector<8x16xf32> to vector<8x1xf32>
    %12 = vector.extract_strided_slice %3 {offsets = [0, 8], sizes = [8, 1], strides = [1, 1]} : vector<8x16xf32> to vector<8x1xf32>
    %13 = vector.broadcast %1 : vector<1x2048xf32> to vector<8x2048xf32>
    %14 = vector.broadcast %4 : vector<8x1xf32> to vector<8x2048xf32>
    %15 = arith.subf %13, %14 : vector<8x2048xf32>
    %cst = arith.constant 1.000000e+01 : f32
    %16 = vector.broadcast %cst : f32 to vector<8x2048xf32>
    %17 = arith.mulf %15, %16 : vector<8x2048xf32>
    %18 = math.tanh %17 : vector<8x2048xf32>
    %cst_3 = arith.constant 1.000000e+00 : f32
    %19 = vector.broadcast %cst_3 : f32 to vector<8x2048xf32>
    %20 = arith.addf %18, %19 : vector<8x2048xf32>
    %cst_4 = arith.constant 5.000000e-01 : f32
    %21 = vector.broadcast %cst_4 : f32 to vector<8x2048xf32>
    %22 = arith.mulf %21, %20 : vector<8x2048xf32>
    %23 = vector.broadcast %5 : vector<8x1xf32> to vector<8x2048xf32>
    %24 = vector.broadcast %1 : vector<1x2048xf32> to vector<8x2048xf32>
    %25 = arith.subf %23, %24 : vector<8x2048xf32>
    %cst_5 = arith.constant 1.000000e+01 : f32
    %26 = vector.broadcast %cst_5 : f32 to vector<8x2048xf32>
    %27 = arith.mulf %25, %26 : vector<8x2048xf32>
    %28 = math.tanh %27 : vector<8x2048xf32>
    %cst_6 = arith.constant 1.000000e+00 : f32
    %29 = vector.broadcast %cst_6 : f32 to vector<8x2048xf32>
    %30 = arith.addf %28, %29 : vector<8x2048xf32>
    %cst_7 = arith.constant 5.000000e-01 : f32
    %31 = vector.broadcast %cst_7 : f32 to vector<8x2048xf32>
    %32 = arith.mulf %31, %30 : vector<8x2048xf32>
    %33 = arith.mulf %22, %32 : vector<8x2048xf32>
    %34 = vector.broadcast %2 : vector<1x2048xf32> to vector<8x2048xf32>
    %35 = vector.broadcast %6 : vector<8x1xf32> to vector<8x2048xf32>
    %36 = arith.subf %34, %35 : vector<8x2048xf32>
    %cst_8 = arith.constant 1.000000e+01 : f32
    %37 = vector.broadcast %cst_8 : f32 to vector<8x2048xf32>
    %38 = arith.mulf %36, %37 : vector<8x2048xf32>
    %39 = math.tanh %38 : vector<8x2048xf32>
    %cst_9 = arith.constant 1.000000e+00 : f32
    %40 = vector.broadcast %cst_9 : f32 to vector<8x2048xf32>
    %41 = arith.addf %39, %40 : vector<8x2048xf32>
    %cst_10 = arith.constant 5.000000e-01 : f32
    %42 = vector.broadcast %cst_10 : f32 to vector<8x2048xf32>
    %43 = arith.mulf %42, %41 : vector<8x2048xf32>
    %44 = arith.mulf %33, %43 : vector<8x2048xf32>
    %45 = vector.broadcast %7 : vector<8x1xf32> to vector<8x2048xf32>
    %46 = vector.broadcast %2 : vector<1x2048xf32> to vector<8x2048xf32>
    %47 = arith.subf %45, %46 : vector<8x2048xf32>
    %cst_11 = arith.constant 1.000000e+01 : f32
    %48 = vector.broadcast %cst_11 : f32 to vector<8x2048xf32>
    %49 = arith.mulf %47, %48 : vector<8x2048xf32>
    %50 = math.tanh %49 : vector<8x2048xf32>
    %cst_12 = arith.constant 1.000000e+00 : f32
    %51 = vector.broadcast %cst_12 : f32 to vector<8x2048xf32>
    %52 = arith.addf %50, %51 : vector<8x2048xf32>
    %cst_13 = arith.constant 5.000000e-01 : f32
    %53 = vector.broadcast %cst_13 : f32 to vector<8x2048xf32>
    %54 = arith.mulf %53, %52 : vector<8x2048xf32>
    %55 = arith.mulf %44, %54 : vector<8x2048xf32>
    %56 = vector.broadcast %8 : vector<8x1xf32> to vector<8x2048xf32>
    %57 = vector.broadcast %1 : vector<1x2048xf32> to vector<8x2048xf32>
    %58 = arith.cmpf olt, %56, %57 : vector<8x2048xf32>
    %59 = vector.broadcast %1 : vector<1x2048xf32> to vector<8x2048xf32>
    %60 = vector.broadcast %9 : vector<8x1xf32> to vector<8x2048xf32>
    %61 = arith.cmpf olt, %59, %60 : vector<8x2048xf32>
    %62 = arith.andi %58, %61 : vector<8x2048xi1>
    %63 = vector.broadcast %10 : vector<8x1xf32> to vector<8x2048xf32>
    %64 = vector.broadcast %2 : vector<1x2048xf32> to vector<8x2048xf32>
    %65 = arith.cmpf olt, %63, %64 : vector<8x2048xf32>
    %66 = arith.andi %62, %65 : vector<8x2048xi1>
    %67 = vector.broadcast %2 : vector<1x2048xf32> to vector<8x2048xf32>
    %68 = vector.broadcast %11 : vector<8x1xf32> to vector<8x2048xf32>
    %69 = arith.cmpf olt, %67, %68 : vector<8x2048xf32>
    %70 = arith.andi %66, %69 : vector<8x2048xi1>
    %71 = arith.extui %70 : vector<8x2048xi1> to vector<8x2048xi32>
    %72 = arith.sitofp %71 : vector<8x2048xi32> to vector<8x2048xf32>
    %c0_14 = arith.constant 0 : index
    %c0_15 = arith.constant 0 : index
    %73 = vector.load %arg2[%c0_14, %c0_15] : memref<128x8xf32, #tpu.memory_space<vmem>>, vector<128x8xf32>
    %cst_16 = arith.constant dense<0.000000e+00> : vector<128x2048xf32>
    %74 = tpu.matmul %73, %0, %cst_16 {dimension_numbers = #tpu.dot_dimension_numbers<[1], [0], [0], [1], [0, 0, 1, 1], [], []>} : vector<128x8xf32>, vector<8x2048xf32>, vector<128x2048xf32> -> vector<128x2048xf32>
    %75 = math.tanh %74 : vector<128x2048xf32>
    %c0_17 = arith.constant 0 : index
    %c0_18 = arith.constant 0 : index
    %c0_19 = arith.constant 0 : index
    %76 = vector.load %arg3[%c0_17, %c0_18, %c0_19] : memref<1x128x128xf32, #tpu.memory_space<vmem>>, vector<1x128x128xf32>
    %77 = vector.shape_cast %76 : vector<1x128x128xf32> to vector<128x128xf32>
    %cst_20 = arith.constant dense<0.000000e+00> : vector<128x2048xf32>
    %78 = tpu.matmul %77, %75, %cst_20 {dimension_numbers = #tpu.dot_dimension_numbers<[1], [0], [0], [1], [0, 0, 1, 1], [], []>} : vector<128x128xf32>, vector<128x2048xf32>, vector<128x2048xf32> -> vector<128x2048xf32>
    %c0_21 = arith.constant 0 : index
    %c0_22 = arith.constant 0 : index
    %c0_23 = arith.constant 0 : index
    %79 = vector.load %arg4[%c0_21, %c0_22, %c0_23] : memref<1x128x1xf32, #tpu.memory_space<vmem>>, vector<1x128x1xf32>
    %80 = vector.shape_cast %79 : vector<1x128x1xf32> to vector<128x1xf32>
    %81 = vector.broadcast %80 : vector<128x1xf32> to vector<128x2048xf32>
    %82 = arith.addf %78, %81 : vector<128x2048xf32>
    %83 = math.tanh %82 : vector<128x2048xf32>
    %c0_24 = arith.constant 0 : index
    %c0_25 = arith.constant 0 : index
    %84 = vector.load %arg5[%c0_24, %c0_25] : memref<8x128xf32, #tpu.memory_space<vmem>>, vector<8x128xf32>
    %cst_26 = arith.constant dense<0.000000e+00> : vector<8x2048xf32>
    %85 = tpu.matmul %84, %83, %cst_26 {dimension_numbers = #tpu.dot_dimension_numbers<[1], [0], [0], [1], [0, 0, 1, 1], [], []>} : vector<8x128xf32>, vector<128x2048xf32>, vector<8x2048xf32> -> vector<8x2048xf32>
    %86 = vector.broadcast %12 : vector<8x1xf32> to vector<8x2048xf32>
    %87 = arith.addf %85, %86 : vector<8x2048xf32>
    %cst_27 = arith.constant 5.000000e-01 : f32
    %88 = vector.broadcast %cst_27 : f32 to vector<8x2048xf32>
    %89 = arith.mulf %87, %88 : vector<8x2048xf32>
    %cst_28 = arith.constant 1.000000e-01 : f32
    %90 = vector.broadcast %cst_28 : f32 to vector<8x2048xf32>
    %91 = arith.addf %89, %90 : vector<8x2048xf32>
    %92 = arith.mulf %72, %55 : vector<8x2048xf32>
    %93 = arith.mulf %92, %91 : vector<8x2048xf32>
    %cst_29 = arith.constant dense<0.000000e+00> : vector<2048xf32>
    %94 = vector.multi_reduction <add>, %93, %cst_29 [0] : vector<8x2048xf32> to vector<2048xf32>
    %95 = vector.shape_cast %94 : vector<2048xf32> to vector<1x2048xf32>
    %c0_30 = arith.constant 0 : index
    %c0_31 = arith.constant 0 : index
    %96 = vector.load %arg7[%c0_30, %c0_31] : memref<1x2048xf32, #tpu.memory_space<vmem>>, vector<1x2048xf32>
    tpu.vector_store %arg7[%c0_30, %c0_31], %95 {strides = array<i32>} : memref<1x2048xf32, #tpu.memory_space<vmem>>, vector<1x2048xf32>,
    return
  }
  func.func @transform_0(%arg0: i32) -> (i32, i32) {
    %c0_i32 = arith.constant 0 : i32
    %c0_i32_0 = arith.constant 0 : i32
    return %c0_i32, %arg0 : i32, i32
  }
  func.func @transform_1(%arg0: i32) -> (i32, i32) {
    %c0_i32 = arith.constant 0 : i32
    %c0_i32_0 = arith.constant 0 : i32
    %c0_i32_1 = arith.constant 0 : i32
    return %c0_i32, %c0_i32_0 : i32, i32
  }
  func.func @transform_2(%arg0: i32) -> (i32, i32, i32) {
    %c0_i32 = arith.constant 0 : i32
    %c0_i32_0 = arith.constant 0 : i32
    %c0_i32_1 = arith.constant 0 : i32
    %c0_i32_2 = arith.constant 0 : i32
    return %c0_i32, %c0_i32_0, %c0_i32_1 : i32, i32, i32
  }
  func.func @transform_3(%arg0: i32) -> (i32, i32, i32) {
    %c0_i32 = arith.constant 0 : i32
    %c0_i32_0 = arith.constant 0 : i32
    %c0_i32_1 = arith.constant 0 : i32
    %c0_i32_2 = arith.constant 0 : i32
    return %c0_i32, %c0_i32_0, %c0_i32_1 : i32, i32, i32
  }
  func.func @transform_4(%arg0: i32) -> (i32, i32) {
    %c0_i32 = arith.constant 0 : i32
    %c0_i32_0 = arith.constant 0 : i32
    %c0_i32_1 = arith.constant 0 : i32
    return %c0_i32, %c0_i32_0 : i32, i32
  }
  func.func @transform_5(%arg0: i32) -> (i32, i32) {
    %c0_i32 = arith.constant 0 : i32
    %c0_i32_0 = arith.constant 0 : i32
    %c0_i32_1 = arith.constant 0 : i32
    return %c0_i32, %c0_i32_0 : i32, i32
  }
  func.func @transform_6(%arg0: i32) -> (i32, i32) {
    %c0_i32 = arith.constant 0 : i32
    %c0_i32_0 = arith.constant 0 : i32
    return %c0_i32, %arg0 : i32, i32
  }
}

</mosaic_0001>

<llo_original>
// kernel: tpu_custom_call.1
$region0: #{tpu_custom_call.1}
  #allocation0 [shape = 'u32[]', space=smem, size = 0x4, offset = 0x4, fixed_abs, tag = 'smem constant byte address 0x4 - core index']
  #allocation1 [shape = 'u32[144,128]{1,0:T(1,128)}', space=vmem, size = 0x12000, scoped, tag = 'internal scratch']
  %s0 = inlined_call_operand.vmem [shape: f32[8,4096], index: 0, kind: input, shape index: {}]
  %s1 = inlined_call_operand.vmem [shape: f32[128,8], index: 1, kind: input, shape index: {}]
  %s2 = inlined_call_operand.hbm [shape: f32[1,128,128], index: 2, kind: input, shape index: {}]
  %s3 = inlined_call_operand.vmem [shape: f32[1,128,1], index: 3, kind: input, shape index: {}]
  %s4 = inlined_call_operand.vmem [shape: f32[8,128], index: 4, kind: input, shape index: {}]
  %s5 = inlined_call_operand.hbm [shape: f32[8,16], index: 5, kind: input, shape index: {}]
  %s6 = inlined_call_operand.hbm [shape: f32[1,4096], index: 6, kind: output, shape index: {}]
  %s7 = sld [smem:[#allocation0]]
  $region65: #{tpu_custom_call.1} parent=0
    _
  %s9 = ssub.s32 1, %s7
  %s10 = scalar_select 0, %s9, %s7
  $region1: #{tpu_custom_call.1} parent=0
    #allocation2 [shape = 'u8[65536]{0}', space=vmem, size = 0x10000, scoped, tag = 'input window, operand 2, single buffered']
    #allocation3 [shape = 's32[2]{0}', space=sflag, size = 0x8, scoped, tag = 'scoped memory for tpu_custom_call.1']
    #allocation4 [shape = 's32[2]{0}', space=sflag, size = 0x8, scoped, tag = 'scoped memory for tpu_custom_call.1']
    #allocation5 [shape = 'u8[4096]{0}', space=vmem, size = 0x1000, scoped, tag = 'input window, operand 5, single buffered']
    #allocation6 [shape = 's32[1]{0}', space=sflag, size = 0x4, scoped, tag = 'scoped memory for tpu_custom_call.1']
    #allocation7 [shape = 'u8[16384]{0}', space=vmem, size = 0x4000, scoped, tag = 'output window, operand 0']
    %11 = vsyncpa [#allocation3], 0
    %12 = vsyncpa [#allocation6], 0
    %13 = vsyncpa [#allocation4], 0
    %s14 = scalar_lea.sflag [#allocation4], 1
    %15 = vsyncpa %s14, 0
    loop: start=0, step=1, limit=4
    $region2: #{tpu_custom_call.1} parent=1 // loop_pre_header
      _
    $region3: #{tpu_custom_call.1} parent=1 // loop_header
      %s17 = sphi 0, %s21
      %p18 = scmp.ge.s32.totalorder %s17, 4
      %s27 = sphi 0, %s29
      %s30 = sphi 0, %s27
      %s31 = sphi 0, %s30
      %s47 = sphi 0, %s31
      %s51 = sphi 0, %s51
      %s53 = sphi 0, %s51
      %s54 = sphi 0, %s53
      %s68 = sphi 0, %s54
      %s72 = sphi 0, %s72
      %s74 = sphi 0, %s72
      %s75 = sphi 0, %s74
      %s89 = sphi 0, %s75
      %s93 = sphi 0, %s93
      %s95 = sphi 0, %s93
      %s96 = sphi 0, %s95
      %s110 = sphi 0, %s96
      %s114 = sphi 0, %s114
      %s116 = sphi 0, %s114
      %s117 = sphi 0, %s116
      %s131 = sphi 0, %s117
      %s135 = sphi 0, %s135
      %s137 = sphi 0, %s135
      %s138 = sphi 0, %s137
      %s152 = sphi 0, %s138
      %s158 = sphi 0, %s160
      %s161 = sphi 0, %s158
      %s162 = sphi 0, %s161
      %s178 = sphi 0, %s162
    $region4: #{tpu_custom_call.1} parent=1 // loop_header_branch
      %20 = sbr.rel (%p18) target = $region8
    $region5: #{tpu_custom_call.1} parent=1 // loop_body
      %s22 = ssub.s32 %s17, 1
      %s23 = ssub.s32 %s17, 2
      %s24 = sadd.s32 %s17, 1
      %s25 = ssub.s32 %s17, %s24
      %p26 = scmp.eq.s32.totalorder %s25, 0
      %s28 = sadd.s32 %s27, 1
      %s29 = scalar_select %p26, %s27, %s28
      %p32 = pneg %p26
      %p33 = scmp.eq.s32.totalorder %s17, 1
      %p34 = por %p32, %p33
      %p35 = scmp.ne.s32.totalorder %s27, %s30
      %p36 = scmp.eq.s32.totalorder %s17, 0
      %p37 = por %p35, %p36
      %p38 = scmp.ne.s32.totalorder %s27, %s30
      %p39 = scmp.eq.s32.totalorder %s22, 1
      %p40 = por %p38, %p39
      %p41 = scmp.ne.s32.totalorder %s30, %s31
      %p42 = scmp.eq.s32.totalorder %s22, 0
      %p43 = por %p41, %p42
      %p44 = scmp.ne.s32.totalorder %s30, %s31
      %p45 = scmp.eq.s32.totalorder %s23, 1
      %p46 = por %p44, %p45
      %p48 = scmp.ne.s32.totalorder %s31, %s47
      %p49 = scmp.eq.s32.totalorder %s23, 0
      %p50 = por %p48, %p49
      %s52 = sadd.s32 %s51, 1
      %p55 = scmp.eq.s32.totalorder %s17, 1
      %p56 = scmp.ne.s32.totalorder %s51, %s53
      %p57 = scmp.eq.s32.totalorder %s17, 0
      %p58 = por %p56, %p57
      %p59 = scmp.ne.s32.totalorder %s51, %s53
      %p60 = scmp.eq.s32.totalorder %s22, 1
      %p61 = por %p59, %p60
      %p62 = scmp.ne.s32.totalorder %s53, %s54
      %p63 = scmp.eq.s32.totalorder %s22, 0
      %p64 = por %p62, %p63
      %p65 = scmp.ne.s32.totalorder %s53, %s54
      %p66 = scmp.eq.s32.totalorder %s23, 1
      %p67 = por %p65, %p66
      %p69 = scmp.ne.s32.totalorder %s54, %s68
      %p70 = scmp.eq.s32.totalorder %s23, 0
      %p71 = por %p69, %p70
      %s73 = sadd.s32 %s72, 1
      %p76 = scmp.eq.s32.totalorder %s17, 1
      %p77 = scmp.ne.s32.totalorder %s72, %s74
      %p78 = scmp.eq.s32.totalorder %s17, 0
      %p79 = por %p77, %p78
      %p80 = scmp.ne.s32.totalorder %s72, %s74
      %p81 = scmp.eq.s32.totalorder %s22, 1
      %p82 = por %p80, %p81
      %p83 = scmp.ne.s32.totalorder %s74, %s75
      %p84 = scmp.eq.s32.totalorder %s22, 0
      %p85 = por %p83, %p84
      %p86 = scmp.ne.s32.totalorder %s74, %s75
      %p87 = scmp.eq.s32.totalorder %s23, 1
      %p88 = por %p86, %p87
      %p90 = scmp.ne.s32.totalorder %s75, %s89
      %p91 = scmp.eq.s32.totalorder %s23, 0
      %p92 = por %p90, %p91
      %s94 = sadd.s32 %s93, 1
      %p97 = scmp.eq.s32.totalorder %s17, 1
      %p98 = scmp.ne.s32.totalorder %s93, %s95
      %p99 = scmp.eq.s32.totalorder %s17, 0
      %p100 = por %p98, %p99
      %p101 = scmp.ne.s32.totalorder %s93, %s95
      %p102 = scmp.eq.s32.totalorder %s22, 1
      %p103 = por %p101, %p102
      %p104 = scmp.ne.s32.totalorder %s95, %s96
      %p105 = scmp.eq.s32.totalorder %s22, 0
      %p106 = por %p104, %p105
      %p107 = scmp.ne.s32.totalorder %s95, %s96
      %p108 = scmp.eq.s32.totalorder %s23, 1
      %p109 = por %p107, %p108
      %p111 = scmp.ne.s32.totalorder %s96, %s110
      %p112 = scmp.eq.s32.totalorder %s23, 0
      %p113 = por %p111, %p112
      %s115 = sadd.s32 %s114, 1
      %p118 = scmp.eq.s32.totalorder %s17, 1
      %p119 = scmp.ne.s32.totalorder %s114, %s116
      %p120 = scmp.eq.s32.totalorder %s17, 0
      %p121 = por %p119, %p120
      %p122 = scmp.ne.s32.totalorder %s114, %s116
      %p123 = scmp.eq.s32.totalorder %s22, 1
      %p124 = por %p122, %p123
      %p125 = scmp.ne.s32.totalorder %s116, %s117
      %p126 = scmp.eq.s32.totalorder %s22, 0
      %p127 = por %p125, %p126
      %p128 = scmp.ne.s32.totalorder %s116, %s117
      %p129 = scmp.eq.s32.totalorder %s23, 1
      %p130 = por %p128, %p129
      %p132 = scmp.ne.s32.totalorder %s117, %s131
      %p133 = scmp.eq.s32.totalorder %s23, 0
      %p134 = por %p132, %p133
      %s136 = sadd.s32 %s135, 1
      %p139 = scmp.eq.s32.totalorder %s17, 1
      %p140 = scmp.ne.s32.totalorder %s135, %s137
      %p141 = scmp.eq.s32.totalorder %s17, 0
      %p142 = por %p140, %p141
      %p143 = scmp.ne.s32.totalorder %s135, %s137
      %p144 = scmp.eq.s32.totalorder %s22, 1
      %p145 = por %p143, %p144
      %p146 = scmp.ne.s32.totalorder %s137, %s138
      %p147 = scmp.eq.s32.totalorder %s22, 0
      %p148 = por %p146, %p147
      %p149 = scmp.ne.s32.totalorder %s137, %s138
      %p150 = scmp.eq.s32.totalorder %s23, 1
      %p151 = por %p149, %p150
      %p153 = scmp.ne.s32.totalorder %s138, %s152
      %p154 = scmp.eq.s32.totalorder %s23, 0
      %p155 = por %p153, %p154
      %s156 = ssub.s32 %s17, %s24
      %p157 = scmp.eq.s32.totalorder %s156, 0
      %s159 = sadd.s32 %s158, 1
      %s160 = scalar_select %p157, %s158, %s159
      %p163 = pneg %p157
      %p164 = scmp.eq.s32.totalorder %s17, 1
      %p165 = por %p163, %p164
      %p166 = scmp.ne.s32.totalorder %s158, %s161
      %p167 = scmp.eq.s32.totalorder %s17, 0
      %p168 = por %p166, %p167
      %p169 = scmp.ne.s32.totalorder %s158, %s161
      %p170 = scmp.eq.s32.totalorder %s22, 1
      %p171 = por %p169, %p170
      %p172 = scmp.ne.s32.totalorder %s161, %s162
      %p173 = scmp.eq.s32.totalorder %s22, 0
      %p174 = por %p172, %p173
      %p175 = scmp.ne.s32.totalorder %s161, %s162
      %p176 = scmp.eq.s32.totalorder %s23, 1
      %p177 = por %p175, %p176
      %p179 = scmp.ne.s32.totalorder %s162, %s178
      %p180 = scmp.eq.s32.totalorder %s23, 0
      %p181 = por %p179, %p180
      %p182 = scmp.le.s32.totalorder 1, %s17
      %p183 = scmp.lt.s32.totalorder %s17, 3
      %p184 = pnand %p182, %p183
      %p185 = pneg %p184
      // Predicated region
      $region9: #{tpu_custom_call.1} parent=5 // pred_check
        _
      $region10: #{tpu_custom_call.1} parent=5 // pred_check_branch
        %187 = sbr.rel (%p184) target = $region12
      $region11: #{tpu_custom_call.1} parent=5 // pred_region
        %s188 = ssub.s32 %s17, 1
        // Predicated region
        $region13: #{tpu_custom_call.1} parent=11 // pred_check
          %p189 = pneg %p64
        $region14: #{tpu_custom_call.1} parent=11 // pred_check_branch
          %191 = sbr.rel (%p189) target = $region16
        $region15: #{tpu_custom_call.1} parent=11 // pred_region
          _
        $region16: #{tpu_custom_call.1} parent=11 // pred_fallthru
          _
        // Predicated region
        $region17: #{tpu_custom_call.1} parent=11 // pred_check
          %p192 = pneg %p85
        $region18: #{tpu_custom_call.1} parent=11 // pred_check_branch
          %194 = sbr.rel (%p192) target = $region20
        $region19: #{tpu_custom_call.1} parent=11 // pred_region
          %s196 = ssub.s32 2048, 2048
          %197 = vsyncadd [#allocation3], %s196
          %s198 = sshll.u32 [#allocation2], 4
          %s199 = int_to_ptr.vmem [resolvable:$true] %s198
          %204 = dma.hbm_to_vmem [thread:$0]  %s2, 2048, %s199, [#allocation3], 128, 128, 8
        $region20: #{tpu_custom_call.1} parent=11 // pred_fallthru
          _
        // Predicated region
        $region21: #{tpu_custom_call.1} parent=11 // pred_check
          %p205 = pneg %p106
        $region22: #{tpu_custom_call.1} parent=11 // pred_check_branch
          %207 = sbr.rel (%p205) target = $region24
        $region23: #{tpu_custom_call.1} parent=11 // pred_region
          _
        $region24: #{tpu_custom_call.1} parent=11 // pred_fallthru
          _
        // Predicated region
        $region25: #{tpu_custom_call.1} parent=11 // pred_check
          %p208 = pneg %p127
        $region26: #{tpu_custom_call.1} parent=11 // pred_check_branch
          %210 = sbr.rel (%p208) target = $region28
        $region27: #{tpu_custom_call.1} parent=11 // pred_region
          _
        $region28: #{tpu_custom_call.1} parent=11 // pred_fallthru
          _
        // Predicated region
        $region29: #{tpu_custom_call.1} parent=11 // pred_check
          %p211 = pneg %p148
        $region30: #{tpu_custom_call.1} parent=11 // pred_check_branch
          %213 = sbr.rel (%p211) target = $region32
        $region31: #{tpu_custom_call.1} parent=11 // pred_region
          %s215 = ssub.s32 128, 128
          %216 = vsyncadd [#allocation6], %s215
          %s218 = sshll.u32 [#allocation5], 4
          %s219 = int_to_ptr.vmem [resolvable:$true] %s218
          %221 = dma.hbm_to_vmem [thread:$0]  %s5, 128, %s219, [#allocation6]
        $region32: #{tpu_custom_call.1} parent=11 // pred_fallthru
          _
      $region12: #{tpu_custom_call.1} parent=5 // pred_fallthru
        _
      %p222 = scmp.lt.s32.totalorder %s17, 2
      // Predicated region
      $region33: #{tpu_custom_call.1} parent=5 // pred_check
        %p223 = pneg %p222
      $region34: #{tpu_custom_call.1} parent=5 // pred_check_branch
        %225 = sbr.rel (%p223) target = $region36
      $region35: #{tpu_custom_call.1} parent=5 // pred_region
        // Predicated region
        $region37: #{tpu_custom_call.1} parent=35 // pred_check
          %p226 = pneg %p37
        $region38: #{tpu_custom_call.1} parent=35 // pred_check_branch
          %228 = sbr.rel (%p226) target = $region40
        $region39: #{tpu_custom_call.1} parent=35 // pred_region
          %s229 = smul.u32 16, %s17
          %p230 = scmp.lt.s32.totalorder %s229, 31
          %s231 = scalar_select %p230, %s229, 31
          %s232 = smul.addr %s231, 8
          %s233 = scalar_lea.vmem %s0, %s232
          %s234 = smul.u32 16, %s17
        $region40: #{tpu_custom_call.1} parent=35 // pred_fallthru
          _
      $region36: #{tpu_custom_call.1} parent=5 // pred_fallthru
        _
      %p235 = scmp.le.s32.totalorder 1, %s17
      %p236 = scmp.lt.s32.totalorder %s17, 3
      %p237 = pnand %p235, %p236
      %p238 = pneg %p237
      // Predicated region
      $region41: #{tpu_custom_call.1} parent=5 // pred_check
        _
      $region42: #{tpu_custom_call.1} parent=5 // pred_check_branch
        %240 = sbr.rel (%p237) target = $region44
      $region43: #{tpu_custom_call.1} parent=5 // pred_region
        %s241 = ssub.s32 %s17, 1
        // Predicated region
        $region45: #{tpu_custom_call.1} parent=43 // pred_check
          %p242 = pneg %p85
        $region46: #{tpu_custom_call.1} parent=43 // pred_check_branch
          %244 = sbr.rel (%p242) target = $region48
        $region47: #{tpu_custom_call.1} parent=43 // pred_region
          %245 = dma.done [#allocation3], 2048
        $region48: #{tpu_custom_call.1} parent=43 // pred_fallthru
          _
        // Predicated region
        $region49: #{tpu_custom_call.1} parent=43 // pred_check
          %p246 = pneg %p148
        $region50: #{tpu_custom_call.1} parent=43 // pred_check_branch
          %248 = sbr.rel (%p246) target = $region52
        $region51: #{tpu_custom_call.1} parent=43 // pred_region
          %249 = dma.done [#allocation6], 128
        $region52: #{tpu_custom_call.1} parent=43 // pred_fallthru
          _
        %s250 = smul.u32 16, %s22
        %p251 = scmp.lt.s32.totalorder %s250, 31
        %s252 = scalar_select %p251, %s250, 31
        %s253 = smul.addr %s252, 8
        %s254 = scalar_lea.vmem %s0, %s253
        %p255 = pneg %p43
        %p256 = pneg %p40
        %p257 = pneg %p64
        %p258 = pneg %p61
        %p259 = pneg %p85
        %p260 = pneg %p82
        %p261 = pneg %p106
        %p262 = pneg %p103
        %p263 = pneg %p127
        %p264 = pneg %p124
        %p265 = pneg %p148
        %p266 = pneg %p145
        %p267 = pneg %p174
        %p268 = pneg %p171
        %s269 = sand.u32 %s161, 1
        %s270 = scalar_lea.sflag [#allocation4], %s269
        %s271 = sand.u32 %s161, 1
        %s272 = smul.addr %s271, 16
        %s273 = scalar_lea.vmem [#allocation7], %s272
        %s274 = smul.u32 16, %s22
        %p275 = scmp.lt.s32.totalorder %s274, 31
        %s276 = scalar_select %p275, %s274, 31
        %s277 = smul.addr %s276, 8
        %s278 = scalar_lea.vmem %s0, %s277
        %s279 = smul.u32 16, %s22
        %s280 = smul.u32 16, %s22
        %v281 = vld [vmem:[%s278] sm:$0xff]
        %v282 = vld [vmem:[%s278 + $0x8] sm:$0xff]
        %v283 = vld [vmem:[%s278 + $0x10] sm:$0xff]
        %v284 = vld [vmem:[%s278 + $0x18] sm:$0xff]
        %v285 = vld [vmem:[%s278 + $0x20] sm:$0xff]
        %v286 = vld [vmem:[%s278 + $0x28] sm:$0xff]
        %v287 = vld [vmem:[%s278 + $0x30] sm:$0xff]
        %v288 = vld [vmem:[%s278 + $0x38] sm:$0xff]
        %v289 = vld [vmem:[%s278 + $0x40] sm:$0xff]
        %v290 = vld [vmem:[%s278 + $0x48] sm:$0xff]
        %v291 = vld [vmem:[%s278 + $0x50] sm:$0xff]
        %v292 = vld [vmem:[%s278 + $0x58] sm:$0xff]
        %v293 = vld [vmem:[%s278 + $0x60] sm:$0xff]
        %v294 = vld [vmem:[%s278 + $0x68] sm:$0xff]
        %v295 = vld [vmem:[%s278 + $0x70] sm:$0xff]
        %v296 = vld [vmem:[%s278 + $0x78] sm:$0xff]
        %v297 = vld [vmem:[#allocation5] sm:$0xff]
        %v298 = vlaneseq
        %v299 = vshrl.u32 %v298, 7
        %v300 = vsub.s32 0, %v299
        %v301 = vrot.slane %v281, %v300
        %v302 = vlaneseq
        %v303 = vshrl.u32 %v302, 7
        %v304 = vsub.s32 0, %v303
        %v305 = vrot.slane %v282, %v304
        %v306 = vlaneseq
        %v307 = vshrl.u32 %v306, 7
        %v308 = vsub.s32 0, %v307
        %v309 = vrot.slane %v283, %v308
        %v310 = vlaneseq
        %v311 = vshrl.u32 %v310, 7
        %v312 = vsub.s32 0, %v311
        %v313 = vrot.slane %v284, %v312
        %v314 = vlaneseq
        %v315 = vshrl.u32 %v314, 7
        %v316 = vsub.s32 0, %v315
        %v317 = vrot.slane %v285, %v316
        %v318 = vlaneseq
        %v319 = vshrl.u32 %v318, 7
        %v320 = vsub.s32 0, %v319
        %v321 = vrot.slane %v286, %v320
        %v322 = vlaneseq
        %v323 = vshrl.u32 %v322, 7
        %v324 = vsub.s32 0, %v323
        %v325 = vrot.slane %v287, %v324
        %v326 = vlaneseq
        %v327 = vshrl.u32 %v326, 7
        %v328 = vsub.s32 0, %v327
        %v329 = vrot.slane %v288, %v328
        %v330 = vlaneseq
        %v331 = vshrl.u32 %v330, 7
        %v332 = vsub.s32 0, %v331
        %v333 = vrot.slane %v289, %v332
        %v334 = vlaneseq
        %v335 = vshrl.u32 %v334, 7
        %v336 = vsub.s32 0, %v335
        %v337 = vrot.slane %v290, %v336
        %v338 = vlaneseq
        %v339 = vshrl.u32 %v338, 7
        %v340 = vsub.s32 0, %v339
        %v341 = vrot.slane %v291, %v340
        %v342 = vlaneseq
        %v343 = vshrl.u32 %v342, 7
        %v344 = vsub.s32 0, %v343
        %v345 = vrot.slane %v292, %v344
        %v346 = vlaneseq
        %v347 = vshrl.u32 %v346, 7
        %v348 = vsub.s32 0, %v347
        %v349 = vrot.slane %v293, %v348
        %v350 = vlaneseq
        %v351 = vshrl.u32 %v350, 7
        %v352 = vsub.s32 0, %v351
        %v353 = vrot.slane %v294, %v352
        %v354 = vlaneseq
        %v355 = vshrl.u32 %v354, 7
        %v356 = vsub.s32 0, %v355
        %v357 = vrot.slane %v295, %v356
        %v358 = vlaneseq
        %v359 = vshrl.u32 %v358, 7
        %v360 = vsub.s32 0, %v359
        %v361 = vrot.slane %v296, %v360
        %363 = vset.pattern.permute.xlu0 0
        %364 = vperm.xlu0 %363, %v297
        %v365 = vpop.permute.xlu0 %364
        %v367 = vsub.f32 %v301, %v365
        %v368 = vsub.f32 %v305, %v365
        %v369 = vsub.f32 %v309, %v365
        %v370 = vsub.f32 %v313, %v365
        %v371 = vsub.f32 %v317, %v365
        %v372 = vsub.f32 %v321, %v365
        %v373 = vsub.f32 %v325, %v365
        %v374 = vsub.f32 %v329, %v365
        %v375 = vsub.f32 %v333, %v365
        %v376 = vsub.f32 %v337, %v365
        %v377 = vsub.f32 %v341, %v365
        %v378 = vsub.f32 %v345, %v365
        %v379 = vsub.f32 %v349, %v365
        %v380 = vsub.f32 %v353, %v365
        %v381 = vsub.f32 %v357, %v365
        %v382 = vsub.f32 %v361, %v365
        %v383 = vmul.f32 %v367, 10.0
        %v384 = vmul.f32 %v368, 10.0
        %v385 = vmul.f32 %v369, 10.0
        %v386 = vmul.f32 %v370, 10.0
        %v387 = vmul.f32 %v371, 10.0
        %v388 = vmul.f32 %v372, 10.0
        %v389 = vmul.f32 %v373, 10.0
        %v390 = vmul.f32 %v374, 10.0
        %v391 = vmul.f32 %v375, 10.0
        %v392 = vmul.f32 %v376, 10.0
        %v393 = vmul.f32 %v377, 10.0
        %v394 = vmul.f32 %v378, 10.0
        %v395 = vmul.f32 %v379, 10.0
        %v396 = vmul.f32 %v380, 10.0
        %v397 = vmul.f32 %v381, 10.0
        %v398 = vmul.f32 %v382, 10.0
        %v399 = vtanh.pop %v383
        %v400 = vtanh.pop %v384
        %v401 = vtanh.pop %v385
        %v402 = vtanh.pop %v386
        %v403 = vtanh.pop %v387
        %v404 = vtanh.pop %v388
        %v405 = vtanh.pop %v389
        %v406 = vtanh.pop %v390
        %v407 = vtanh.pop %v391
        %v408 = vtanh.pop %v392
        %v409 = vtanh.pop %v393
        %v410 = vtanh.pop %v394
        %v411 = vtanh.pop %v395
        %v412 = vtanh.pop %v396
        %v413 = vtanh.pop %v397
        %v414 = vtanh.pop %v398
        %v415 = vadd.f32 %v399, 1.0
        %v416 = vadd.f32 %v400, 1.0
        %v417 = vadd.f32 %v401, 1.0
        %v418 = vadd.f32 %v402, 1.0
        %v419 = vadd.f32 %v403, 1.0
        %v420 = vadd.f32 %v404, 1.0
        %v421 = vadd.f32 %v405, 1.0
        %v422 = vadd.f32 %v406, 1.0
        %v423 = vadd.f32 %v407, 1.0
        %v424 = vadd.f32 %v408, 1.0
        %v425 = vadd.f32 %v409, 1.0
        %v426 = vadd.f32 %v410, 1.0
        %v427 = vadd.f32 %v411, 1.0
        %v428 = vadd.f32 %v412, 1.0
        %v429 = vadd.f32 %v413, 1.0
        %v430 = vadd.f32 %v414, 1.0
        %v431 = vmul.f32 %v415, 0.5
        %v432 = vmul.f32 %v416, 0.5
        %v433 = vmul.f32 %v417, 0.5
        %v434 = vmul.f32 %v418, 0.5
        %v435 = vmul.f32 %v419, 0.5
        %v436 = vmul.f32 %v420, 0.5
        %v437 = vmul.f32 %v421, 0.5
        %v438 = vmul.f32 %v422, 0.5
        %v439 = vmul.f32 %v423, 0.5
        %v440 = vmul.f32 %v424, 0.5
        %v441 = vmul.f32 %v425, 0.5
        %v442 = vmul.f32 %v426, 0.5
        %v443 = vmul.f32 %v427, 0.5
        %v444 = vmul.f32 %v428, 0.5
        %v445 = vmul.f32 %v429, 0.5
        %v446 = vmul.f32 %v430, 0.5
        %447 = vset.pattern.permute.xlu0 1
        %448 = vperm.xlu0 %447, %v297
        %v449 = vpop.permute.xlu0 %448
        %v451 = vsub.f32 %v449, %v301
        %v452 = vsub.f32 %v449, %v305
        %v453 = vsub.f32 %v449, %v309
        %v454 = vsub.f32 %v449, %v313
        %v455 = vsub.f32 %v449, %v317
        %v456 = vsub.f32 %v449, %v321
        %v457 = vsub.f32 %v449, %v325
        %v458 = vsub.f32 %v449, %v329
        %v459 = vsub.f32 %v449, %v333
        %v460 = vsub.f32 %v449, %v337
        %v461 = vsub.f32 %v449, %v341
        %v462 = vsub.f32 %v449, %v345
        %v463 = vsub.f32 %v449, %v349
        %v464 = vsub.f32 %v449, %v353
        %v465 = vsub.f32 %v449, %v357
        %v466 = vsub.f32 %v449, %v361
        %v467 = vmul.f32 %v451, 10.0
        %v468 = vmul.f32 %v452, 10.0
        %v469 = vmul.f32 %v453, 10.0
        %v470 = vmul.f32 %v454, 10.0
        %v471 = vmul.f32 %v455, 10.0
        %v472 = vmul.f32 %v456, 10.0
        %v473 = vmul.f32 %v457, 10.0
        %v474 = vmul.f32 %v458, 10.0
        %v475 = vmul.f32 %v459, 10.0
        %v476 = vmul.f32 %v460, 10.0
        %v477 = vmul.f32 %v461, 10.0
        %v478 = vmul.f32 %v462, 10.0
        %v479 = vmul.f32 %v463, 10.0
        %v480 = vmul.f32 %v464, 10.0
        %v481 = vmul.f32 %v465, 10.0
        %v482 = vmul.f32 %v466, 10.0
        %v483 = vtanh.pop %v467
        %v484 = vtanh.pop %v468
        %v485 = vtanh.pop %v469
        %v486 = vtanh.pop %v470
        %v487 = vtanh.pop %v471
        %v488 = vtanh.pop %v472
        %v489 = vtanh.pop %v473
        %v490 = vtanh.pop %v474
        %v491 = vtanh.pop %v475
        %v492 = vtanh.pop %v476
        %v493 = vtanh.pop %v477
        %v494 = vtanh.pop %v478
        %v495 = vtanh.pop %v479
        %v496 = vtanh.pop %v480
        %v497 = vtanh.pop %v481
        %v498 = vtanh.pop %v482
        %v499 = vadd.f32 %v483, 1.0
        %v500 = vadd.f32 %v484, 1.0
        %v501 = vadd.f32 %v485, 1.0
        %v502 = vadd.f32 %v486, 1.0
        %v503 = vadd.f32 %v487, 1.0
        %v504 = vadd.f32 %v488, 1.0
        %v505 = vadd.f32 %v489, 1.0
        %v506 = vadd.f32 %v490, 1.0
        %v507 = vadd.f32 %v491, 1.0
        %v508 = vadd.f32 %v492, 1.0
        %v509 = vadd.f32 %v493, 1.0
        %v510 = vadd.f32 %v494, 1.0
        %v511 = vadd.f32 %v495, 1.0
        %v512 = vadd.f32 %v496, 1.0
        %v513 = vadd.f32 %v497, 1.0
        %v514 = vadd.f32 %v498, 1.0
        %v515 = vmul.f32 %v499, 0.5
        %v516 = vmul.f32 %v500, 0.5
        %v517 = vmul.f32 %v501, 0.5
        %v518 = vmul.f32 %v502, 0.5
        %v519 = vmul.f32 %v503, 0.5
        %v520 = vmul.f32 %v504, 0.5
        %v521 = vmul.f32 %v505, 0.5
        %v522 = vmul.f32 %v506, 0.5
        %v523 = vmul.f32 %v507, 0.5
        %v524 = vmul.f32 %v508, 0.5
        %v525 = vmul.f32 %v509, 0.5
        %v526 = vmul.f32 %v510, 0.5
        %v527 = vmul.f32 %v511, 0.5
        %v528 = vmul.f32 %v512, 0.5
        %v529 = vmul.f32 %v513, 0.5
        %v530 = vmul.f32 %v514, 0.5
        %v531 = vmul.f32 %v431, %v515
        %v532 = vmul.f32 %v432, %v516
        %v533 = vmul.f32 %v433, %v517
        %v534 = vmul.f32 %v434, %v518
        %v535 = vmul.f32 %v435, %v519
        %v536 = vmul.f32 %v436, %v520
        %v537 = vmul.f32 %v437, %v521
        %v538 = vmul.f32 %v438, %v522
        %v539 = vmul.f32 %v439, %v523
        %v540 = vmul.f32 %v440, %v524
        %v541 = vmul.f32 %v441, %v525
        %v542 = vmul.f32 %v442, %v526
        %v543 = vmul.f32 %v443, %v527
        %v544 = vmul.f32 %v444, %v528
        %v545 = vmul.f32 %v445, %v529
        %v546 = vmul.f32 %v446, %v530
        %v547 = vlaneseq
        %v548 = vshrl.u32 %v547, 7
        %v549 = vsub.s32 1, %v548
        %v550 = vrot.slane %v281, %v549
        %v551 = vlaneseq
        %v552 = vshrl.u32 %v551, 7
        %v553 = vsub.s32 1, %v552
        %v554 = vrot.slane %v282, %v553
        %v555 = vlaneseq
        %v556 = vshrl.u32 %v555, 7
        %v557 = vsub.s32 1, %v556
        %v558 = vrot.slane %v283, %v557
        %v559 = vlaneseq
        %v560 = vshrl.u32 %v559, 7
        %v561 = vsub.s32 1, %v560
        %v562 = vrot.slane %v284, %v561
        %v563 = vlaneseq
        %v564 = vshrl.u32 %v563, 7
        %v565 = vsub.s32 1, %v564
        %v566 = vrot.slane %v285, %v565
        %v567 = vlaneseq
        %v568 = vshrl.u32 %v567, 7
        %v569 = vsub.s32 1, %v568
        %v570 = vrot.slane %v286, %v569
        %v571 = vlaneseq
        %v572 = vshrl.u32 %v571, 7
        %v573 = vsub.s32 1, %v572
        %v574 = vrot.slane %v287, %v573
        %v575 = vlaneseq
        %v576 = vshrl.u32 %v575, 7
        %v577 = vsub.s32 1, %v576
        %v578 = vrot.slane %v288, %v577
        %v579 = vlaneseq
        %v580 = vshrl.u32 %v579, 7
        %v581 = vsub.s32 1, %v580
        %v582 = vrot.slane %v289, %v581
        %v583 = vlaneseq
        %v584 = vshrl.u32 %v583, 7
        %v585 = vsub.s32 1, %v584
        %v586 = vrot.slane %v290, %v585
        %v587 = vlaneseq
        %v588 = vshrl.u32 %v587, 7
        %v589 = vsub.s32 1, %v588
        %v590 = vrot.slane %v291, %v589
        %v591 = vlaneseq
        %v592 = vshrl.u32 %v591, 7
        %v593 = vsub.s32 1, %v592
        %v594 = vrot.slane %v292, %v593
        %v595 = vlaneseq
        %v596 = vshrl.u32 %v595, 7
        %v597 = vsub.s32 1, %v596
        %v598 = vrot.slane %v293, %v597
        %v599 = vlaneseq
        %v600 = vshrl.u32 %v599, 7
        %v601 = vsub.s32 1, %v600
        %v602 = vrot.slane %v294, %v601
        %v603 = vlaneseq
        %v604 = vshrl.u32 %v603, 7
        %v605 = vsub.s32 1, %v604
        %v606 = vrot.slane %v295, %v605
        %v607 = vlaneseq
        %v608 = vshrl.u32 %v607, 7
        %v609 = vsub.s32 1, %v608
        %v610 = vrot.slane %v296, %v609
        %611 = vset.pattern.permute.xlu0 2
        %612 = vperm.xlu0 %611, %v297
        %v613 = vpop.permute.xlu0 %612
        %v615 = vsub.f32 %v550, %v613
        %v616 = vsub.f32 %v554, %v613
        %v617 = vsub.f32 %v558, %v613
        %v618 = vsub.f32 %v562, %v613
        %v619 = vsub.f32 %v566, %v613
        %v620 = vsub.f32 %v570, %v613
        %v621 = vsub.f32 %v574, %v613
        %v622 = vsub.f32 %v578, %v613
        %v623 = vsub.f32 %v582, %v613
        %v624 = vsub.f32 %v586, %v613
        %v625 = vsub.f32 %v590, %v613
        %v626 = vsub.f32 %v594, %v613
        %v627 = vsub.f32 %v598, %v613
        %v628 = vsub.f32 %v602, %v613
        %v629 = vsub.f32 %v606, %v613
        %v630 = vsub.f32 %v610, %v613
        %v631 = vmul.f32 %v615, 10.0
        %v632 = vmul.f32 %v616, 10.0
        %v633 = vmul.f32 %v617, 10.0
        %v634 = vmul.f32 %v618, 10.0
        %v635 = vmul.f32 %v619, 10.0
        %v636 = vmul.f32 %v620, 10.0
        %v637 = vmul.f32 %v621, 10.0
        %v638 = vmul.f32 %v622, 10.0
        %v639 = vmul.f32 %v623, 10.0
        %v640 = vmul.f32 %v624, 10.0
        %v641 = vmul.f32 %v625, 10.0
        %v642 = vmul.f32 %v626, 10.0
        %v643 = vmul.f32 %v627, 10.0
        %v644 = vmul.f32 %v628, 10.0
        %v645 = vmul.f32 %v629, 10.0
        %v646 = vmul.f32 %v630, 10.0
        %v647 = vtanh.pop %v631
        %v648 = vtanh.pop %v632
        %v649 = vtanh.pop %v633
        %v650 = vtanh.pop %v634
        %v651 = vtanh.pop %v635
        %v652 = vtanh.pop %v636
        %v653 = vtanh.pop %v637
        %v654 = vtanh.pop %v638
        %v655 = vtanh.pop %v639
        %v656 = vtanh.pop %v640
        %v657 = vtanh.pop %v641
        %v658 = vtanh.pop %v642
        %v659 = vtanh.pop %v643
        %v660 = vtanh.pop %v644
        %v661 = vtanh.pop %v645
        %v662 = vtanh.pop %v646
        %v663 = vadd.f32 %v647, 1.0
        %v664 = vadd.f32 %v648, 1.0
        %v665 = vadd.f32 %v649, 1.0
        %v666 = vadd.f32 %v650, 1.0
        %v667 = vadd.f32 %v651, 1.0
        %v668 = vadd.f32 %v652, 1.0
        %v669 = vadd.f32 %v653, 1.0
        %v670 = vadd.f32 %v654, 1.0
        %v671 = vadd.f32 %v655, 1.0
        %v672 = vadd.f32 %v656, 1.0
        %v673 = vadd.f32 %v657, 1.0
        %v674 = vadd.f32 %v658, 1.0
        %v675 = vadd.f32 %v659, 1.0
        %v676 = vadd.f32 %v660, 1.0
        %v677 = vadd.f32 %v661, 1.0
        %v678 = vadd.f32 %v662, 1.0
        %v679 = vmul.f32 %v663, 0.5
        %v680 = vmul.f32 %v664, 0.5
        %v681 = vmul.f32 %v665, 0.5
        %v682 = vmul.f32 %v666, 0.5
        %v683 = vmul.f32 %v667, 0.5
        %v684 = vmul.f32 %v668, 0.5
        %v685 = vmul.f32 %v669, 0.5
        %v686 = vmul.f32 %v670, 0.5
        %v687 = vmul.f32 %v671, 0.5
        %v688 = vmul.f32 %v672, 0.5
        %v689 = vmul.f32 %v673, 0.5
        %v690 = vmul.f32 %v674, 0.5
        %v691 = vmul.f32 %v675, 0.5
        %v692 = vmul.f32 %v676, 0.5
        %v693 = vmul.f32 %v677, 0.5
        %v694 = vmul.f32 %v678, 0.5
        %v695 = vmul.f32 %v531, %v679
        %v696 = vmul.f32 %v532, %v680
        %v697 = vmul.f32 %v533, %v681
        %v698 = vmul.f32 %v534, %v682
        %v699 = vmul.f32 %v535, %v683
        %v700 = vmul.f32 %v536, %v684
        %v701 = vmul.f32 %v537, %v685
        %v702 = vmul.f32 %v538, %v686
        %v703 = vmul.f32 %v539, %v687
        %v704 = vmul.f32 %v540, %v688
        %v705 = vmul.f32 %v541, %v689
        %v706 = vmul.f32 %v542, %v690
        %v707 = vmul.f32 %v543, %v691
        %v708 = vmul.f32 %v544, %v692
        %v709 = vmul.f32 %v545, %v693
        %v710 = vmul.f32 %v546, %v694
        %711 = vset.pattern.permute.xlu0 3
        %712 = vperm.xlu0 %711, %v297
        %v713 = vpop.permute.xlu0 %712
        %v715 = vsub.f32 %v713, %v550
        %v716 = vsub.f32 %v713, %v554
        %v717 = vsub.f32 %v713, %v558
        %v718 = vsub.f32 %v713, %v562
        %v719 = vsub.f32 %v713, %v566
        %v720 = vsub.f32 %v713, %v570
        %v721 = vsub.f32 %v713, %v574
        %v722 = vsub.f32 %v713, %v578
        %v723 = vsub.f32 %v713, %v582
        %v724 = vsub.f32 %v713, %v586
        %v725 = vsub.f32 %v713, %v590
        %v726 = vsub.f32 %v713, %v594
        %v727 = vsub.f32 %v713, %v598
        %v728 = vsub.f32 %v713, %v602
        %v729 = vsub.f32 %v713, %v606
        %v730 = vsub.f32 %v713, %v610
        %v731 = vmul.f32 %v715, 10.0
        %v732 = vmul.f32 %v716, 10.0
        %v733 = vmul.f32 %v717, 10.0
        %v734 = vmul.f32 %v718, 10.0
        %v735 = vmul.f32 %v719, 10.0
        %v736 = vmul.f32 %v720, 10.0
        %v737 = vmul.f32 %v721, 10.0
        %v738 = vmul.f32 %v722, 10.0
        %v739 = vmul.f32 %v723, 10.0
        %v740 = vmul.f32 %v724, 10.0
        %v741 = vmul.f32 %v725, 10.0
        %v742 = vmul.f32 %v726, 10.0
        %v743 = vmul.f32 %v727, 10.0
        %v744 = vmul.f32 %v728, 10.0
        %v745 = vmul.f32 %v729, 10.0
        %v746 = vmul.f32 %v730, 10.0
        %v747 = vtanh.pop %v731
        %v748 = vtanh.pop %v732
        %v749 = vtanh.pop %v733
        %v750 = vtanh.pop %v734
        %v751 = vtanh.pop %v735
        %v752 = vtanh.pop %v736
        %v753 = vtanh.pop %v737
        %v754 = vtanh.pop %v738
        %v755 = vtanh.pop %v739
        %v756 = vtanh.pop %v740
        %v757 = vtanh.pop %v741
        %v758 = vtanh.pop %v742
        %v759 = vtanh.pop %v743
        %v760 = vtanh.pop %v744
        %v761 = vtanh.pop %v745
        %v762 = vtanh.pop %v746
        %v763 = vadd.f32 %v747, 1.0
        %v764 = vadd.f32 %v748, 1.0
        %v765 = vadd.f32 %v749, 1.0
        %v766 = vadd.f32 %v750, 1.0
        %v767 = vadd.f32 %v751, 1.0
        %v768 = vadd.f32 %v752, 1.0
        %v769 = vadd.f32 %v753, 1.0
        %v770 = vadd.f32 %v754, 1.0
        %v771 = vadd.f32 %v755, 1.0
        %v772 = vadd.f32 %v756, 1.0
        %v773 = vadd.f32 %v757, 1.0
        %v774 = vadd.f32 %v758, 1.0
        %v775 = vadd.f32 %v759, 1.0
        %v776 = vadd.f32 %v760, 1.0
        %v777 = vadd.f32 %v761, 1.0
        %v778 = vadd.f32 %v762, 1.0
        %v779 = vmul.f32 %v763, 0.5
        %v780 = vmul.f32 %v764, 0.5
        %v781 = vmul.f32 %v765, 0.5
        %v782 = vmul.f32 %v766, 0.5
        %v783 = vmul.f32 %v767, 0.5
        %v784 = vmul.f32 %v768, 0.5
        %v785 = vmul.f32 %v769, 0.5
        %v786 = vmul.f32 %v770, 0.5
        %v787 = vmul.f32 %v771, 0.5
        %v788 = vmul.f32 %v772, 0.5
        %v789 = vmul.f32 %v773, 0.5
        %v790 = vmul.f32 %v774, 0.5
        %v791 = vmul.f32 %v775, 0.5
        %v792 = vmul.f32 %v776, 0.5
        %v793 = vmul.f32 %v777, 0.5
        %v794 = vmul.f32 %v778, 0.5
        %v795 = vmul.f32 %v695, %v779
        %v796 = vmul.f32 %v696, %v780
        %v797 = vmul.f32 %v697, %v781
        %v798 = vmul.f32 %v698, %v782
        %v799 = vmul.f32 %v699, %v783
        %v800 = vmul.f32 %v700, %v784
        %v801 = vmul.f32 %v701, %v785
        %v802 = vmul.f32 %v702, %v786
        %v803 = vmul.f32 %v703, %v787
        %v804 = vmul.f32 %v704, %v788
        %v805 = vmul.f32 %v705, %v789
        %v806 = vmul.f32 %v706, %v790
        %v807 = vmul.f32 %v707, %v791
        %v808 = vmul.f32 %v708, %v792
        %v809 = vmul.f32 %v709, %v793
        %v810 = vmul.f32 %v710, %v794
        %811 = vset.pattern.permute.xlu0 4
        %812 = vperm.xlu0 %811, %v297
        %v813 = vpop.permute.xlu0 %812
        %vm815 = vcmp.lt.f32.partialorder %v813, %v301
        %vm816 = vcmp.lt.f32.partialorder %v813, %v305
        %vm817 = vcmp.lt.f32.partialorder %v813, %v309
        %vm818 = vcmp.lt.f32.partialorder %v813, %v313
        %vm819 = vcmp.lt.f32.partialorder %v813, %v317
        %vm820 = vcmp.lt.f32.partialorder %v813, %v321
        %vm821 = vcmp.lt.f32.partialorder %v813, %v325
        %vm822 = vcmp.lt.f32.partialorder %v813, %v329
        %vm823 = vcmp.lt.f32.partialorder %v813, %v333
        %vm824 = vcmp.lt.f32.partialorder %v813, %v337
        %vm825 = vcmp.lt.f32.partialorder %v813, %v341
        %vm826 = vcmp.lt.f32.partialorder %v813, %v345
        %vm827 = vcmp.lt.f32.partialorder %v813, %v349
        %vm828 = vcmp.lt.f32.partialorder %v813, %v353
        %vm829 = vcmp.lt.f32.partialorder %v813, %v357
        %vm830 = vcmp.lt.f32.partialorder %v813, %v361
        %831 = vset.pattern.permute.xlu0 5
        %832 = vperm.xlu0 %831, %v297
        %v833 = vpop.permute.xlu0 %832
        %vm835 = vcmp.lt.f32.partialorder %v301, %v833
        %vm836 = vcmp.lt.f32.partialorder %v305, %v833
        %vm837 = vcmp.lt.f32.partialorder %v309, %v833
        %vm838 = vcmp.lt.f32.partialorder %v313, %v833
        %vm839 = vcmp.lt.f32.partialorder %v317, %v833
        %vm840 = vcmp.lt.f32.partialorder %v321, %v833
        %vm841 = vcmp.lt.f32.partialorder %v325, %v833
        %vm842 = vcmp.lt.f32.partialorder %v329, %v833
        %vm843 = vcmp.lt.f32.partialorder %v333, %v833
        %vm844 = vcmp.lt.f32.partialorder %v337, %v833
        %vm845 = vcmp.lt.f32.partialorder %v341, %v833
        %vm846 = vcmp.lt.f32.partialorder %v345, %v833
        %vm847 = vcmp.lt.f32.partialorder %v349, %v833
        %vm848 = vcmp.lt.f32.partialorder %v353, %v833
        %vm849 = vcmp.lt.f32.partialorder %v357, %v833
        %vm850 = vcmp.lt.f32.partialorder %v361, %v833
        %vm851 = vmand %vm815, %vm835
        %vm852 = vmand %vm816, %vm836
        %vm853 = vmand %vm817, %vm837
        %vm854 = vmand %vm818, %vm838
        %vm855 = vmand %vm819, %vm839
        %vm856 = vmand %vm820, %vm840
        %vm857 = vmand %vm821, %vm841
        %vm858 = vmand %vm822, %vm842
        %vm859 = vmand %vm823, %vm843
        %vm860 = vmand %vm824, %vm844
        %vm861 = vmand %vm825, %vm845
        %vm862 = vmand %vm826, %vm846
        %vm863 = vmand %vm827, %vm847
        %vm864 = vmand %vm828, %vm848
        %vm865 = vmand %vm829, %vm849
        %vm866 = vmand %vm830, %vm850
        %867 = vset.pattern.permute.xlu0 6
        %868 = vperm.xlu0 %867, %v297
        %v869 = vpop.permute.xlu0 %868
        %vm871 = vcmp.lt.f32.partialorder %v869, %v550
        %vm872 = vcmp.lt.f32.partialorder %v869, %v554
        %vm873 = vcmp.lt.f32.partialorder %v869, %v558
        %vm874 = vcmp.lt.f32.partialorder %v869, %v562
        %vm875 = vcmp.lt.f32.partialorder %v869, %v566
        %vm876 = vcmp.lt.f32.partialorder %v869, %v570
        %vm877 = vcmp.lt.f32.partialorder %v869, %v574
        %vm878 = vcmp.lt.f32.partialorder %v869, %v578
        %vm879 = vcmp.lt.f32.partialorder %v869, %v582
        %vm880 = vcmp.lt.f32.partialorder %v869, %v586
        %vm881 = vcmp.lt.f32.partialorder %v869, %v590
        %vm882 = vcmp.lt.f32.partialorder %v869, %v594
        %vm883 = vcmp.lt.f32.partialorder %v869, %v598
        %vm884 = vcmp.lt.f32.partialorder %v869, %v602
        %vm885 = vcmp.lt.f32.partialorder %v869, %v606
        %vm886 = vcmp.lt.f32.partialorder %v869, %v610
        %vm887 = vmand %vm851, %vm871
        %vm888 = vmand %vm852, %vm872
        %vm889 = vmand %vm853, %vm873
        %vm890 = vmand %vm854, %vm874
        %vm891 = vmand %vm855, %vm875
        %vm892 = vmand %vm856, %vm876
        %vm893 = vmand %vm857, %vm877
        %vm894 = vmand %vm858, %vm878
        %vm895 = vmand %vm859, %vm879
        %vm896 = vmand %vm860, %vm880
        %vm897 = vmand %vm861, %vm881
        %vm898 = vmand %vm862, %vm882
        %vm899 = vmand %vm863, %vm883
        %vm900 = vmand %vm864, %vm884
        %vm901 = vmand %vm865, %vm885
        %vm902 = vmand %vm866, %vm886
        %903 = vset.pattern.permute.xlu0 7
        %904 = vperm.xlu0 %903, %v297
        %v905 = vpop.permute.xlu0 %904
        %vm907 = vcmp.lt.f32.partialorder %v550, %v905
        %vm908 = vcmp.lt.f32.partialorder %v554, %v905
        %vm909 = vcmp.lt.f32.partialorder %v558, %v905
        %vm910 = vcmp.lt.f32.partialorder %v562, %v905
        %vm911 = vcmp.lt.f32.partialorder %v566, %v905
        %vm912 = vcmp.lt.f32.partialorder %v570, %v905
        %vm913 = vcmp.lt.f32.partialorder %v574, %v905
        %vm914 = vcmp.lt.f32.partialorder %v578, %v905
        %vm915 = vcmp.lt.f32.partialorder %v582, %v905
        %vm916 = vcmp.lt.f32.partialorder %v586, %v905
        %vm917 = vcmp.lt.f32.partialorder %v590, %v905
        %vm918 = vcmp.lt.f32.partialorder %v594, %v905
        %vm919 = vcmp.lt.f32.partialorder %v598, %v905
        %vm920 = vcmp.lt.f32.partialorder %v602, %v905
        %vm921 = vcmp.lt.f32.partialorder %v606, %v905
        %vm922 = vcmp.lt.f32.partialorder %v610, %v905
        %vm923 = vmand %vm887, %vm907
        %vm924 = vmand %vm888, %vm908
        %vm925 = vmand %vm889, %vm909
        %vm926 = vmand %vm890, %vm910
        %vm927 = vmand %vm891, %vm911
        %vm928 = vmand %vm892, %vm912
        %vm929 = vmand %vm893, %vm913
        %vm930 = vmand %vm894, %vm914
        %vm931 = vmand %vm895, %vm915
        %vm932 = vmand %vm896, %vm916
        %vm933 = vmand %vm897, %vm917
        %vm934 = vmand %vm898, %vm918
        %vm935 = vmand %vm899, %vm919
        %vm936 = vmand %vm900, %vm920
        %vm937 = vmand %vm901, %vm921
        %vm938 = vmand %vm902, %vm922
        %v939 = vsel %vm923, 1, 0
        %v940 = vsel %vm924, 1, 0
        %v941 = vsel %vm925, 1, 0
        %v942 = vsel %vm926, 1, 0
        %v943 = vsel %vm927, 1, 0
        %v944 = vsel %vm928, 1, 0
        %v945 = vsel %vm929, 1, 0
        %v946 = vsel %vm930, 1, 0
        %v947 = vsel %vm931, 1, 0
        %v948 = vsel %vm932, 1, 0
        %v949 = vsel %vm933, 1, 0
        %v950 = vsel %vm934, 1, 0
        %v951 = vsel %vm935, 1, 0
        %v952 = vsel %vm936, 1, 0
        %v953 = vsel %vm937, 1, 0
        %v954 = vsel %vm938, 1, 0
        %v955 = vcvt.s32.f32 %v939
        %v956 = vcvt.s32.f32 %v940
        %v957 = vcvt.s32.f32 %v941
        %v958 = vcvt.s32.f32 %v942
        %v959 = vcvt.s32.f32 %v943
        %v960 = vcvt.s32.f32 %v944
        %v961 = vcvt.s32.f32 %v945
        %v962 = vcvt.s32.f32 %v946
        %v963 = vcvt.s32.f32 %v947
        %v964 = vcvt.s32.f32 %v948
        %v965 = vcvt.s32.f32 %v949
        %v966 = vcvt.s32.f32 %v950
        %v967 = vcvt.s32.f32 %v951
        %v968 = vcvt.s32.f32 %v952
        %v969 = vcvt.s32.f32 %v953
        %v970 = vcvt.s32.f32 %v954
        %v971 = vld [vmem:[%s1] sm:$0xff]
        %v972 = vld [vmem:[%s1 + $0x8] sm:$0xff]
        %v973 = vld [vmem:[%s1 + $0x10] sm:$0xff]
        %v974 = vld [vmem:[%s1 + $0x18] sm:$0xff]
        %v975 = vld [vmem:[%s1 + $0x20] sm:$0xff]
        %v976 = vld [vmem:[%s1 + $0x28] sm:$0xff]
        %v977 = vld [vmem:[%s1 + $0x30] sm:$0xff]
        %v978 = vld [vmem:[%s1 + $0x38] sm:$0xff]
        %v979 = vld [vmem:[%s1 + $0x40] sm:$0xff]
        %v980 = vld [vmem:[%s1 + $0x48] sm:$0xff]
        %v981 = vld [vmem:[%s1 + $0x50] sm:$0xff]
        %v982 = vld [vmem:[%s1 + $0x58] sm:$0xff]
        %v983 = vld [vmem:[%s1 + $0x60] sm:$0xff]
        %v984 = vld [vmem:[%s1 + $0x68] sm:$0xff]
        %v985 = vld [vmem:[%s1 + $0x70] sm:$0xff]
        %v986 = vld [vmem:[%s1 + $0x78] sm:$0xff]
        %vm987 = vcmask 64512
        %v989 = vsel %vm987, %v971, 0
        %v992 = vsel %vm987, %v972, 0
        %v995 = vsel %vm987, %v973, 0
        %v998 = vsel %vm987, %v974, 0
        %v1001 = vsel %vm987, %v975, 0
        %v1004 = vsel %vm987, %v976, 0
        %v1007 = vsel %vm987, %v977, 0
        %v1010 = vsel %vm987, %v978, 0
        %v1013 = vsel %vm987, %v979, 0
        %v1016 = vsel %vm987, %v980, 0
        %v1019 = vsel %vm987, %v981, 0
        %v1022 = vsel %vm987, %v982, 0
        %v1025 = vsel %vm987, %v983, 0
        %v1028 = vsel %vm987, %v984, 0
        %v1031 = vsel %vm987, %v985, 0
        %v1034 = vsel %vm987, %v986, 0
        %1036 = vmatprep.subr.mxu0 0.0
        %1037 = vmatpush1.msra.mxu0 0.0
        %1038 = vmatprep.subr.mxu0 0.0
        %1039 = vmatpush1.msra.mxu0 0.0
        %1040 = vmatprep.subr.mxu0 0.0
        %1041 = vmatpush1.msra.mxu0 0.0
        %1042 = vmatprep.subr.mxu0 0.0
        %1043 = vmatpush1.msra.mxu0 0.0
        %1044 = vmatprep.subr.mxu0 0.0
        %1045 = vmatpush1.msra.mxu0 0.0
        %1046 = vmatprep.subr.mxu0 0.0
        %1047 = vmatpush1.msra.mxu0 0.0
        %1048 = vmatprep.subr.mxu0 0.0
        %1049 = vmatpush1.msra.mxu0 0.0
        %1050 = vmatprep.subr.mxu0 0.0
        %1051 = vmatpush1.msra.mxu0 0.0
        %1052 = vmatprep.subr.mxu0 0.0
        %1053 = vmatpush1.msra.mxu0 0.0
        %1054 = vmatprep.subr.mxu0 0.0
        %1055 = vmatpush1.msra.mxu0 0.0
        %1056 = vmatprep.subr.mxu0 0.0
        %1057 = vmatpush1.msra.mxu0 0.0
        %1058 = vmatprep.subr.mxu0 0.0
        %1059 = vmatpush1.msra.mxu0 0.0
        %1060 = vmatprep.subr.mxu0 0.0
        %1061 = vmatpush1.msra.mxu0 0.0
        %1062 = vmatprep.subr.mxu0 0.0
        %1063 = vmatpush1.msra.mxu0 0.0
        %1064 = vmatprep.subr.mxu0 0.0
        %1065 = vmatpush1.msra.mxu0 0.0
        %1066 = vmatprep.subr.mxu0 %v282
        %1067 = vmatpush1.msra.mxu0 %v281
        %1068 = vmatprep.subr.mxu0 0.0
        %1069 = vmatpush2.msra.mxu0 0.0
        %1070 = vmatprep.subr.mxu0 0.0
        %1071 = vmatpush2.msra.mxu0 0.0
        %1072 = vmatprep.subr.mxu0 0.0
        %1073 = vmatpush2.msra.mxu0 0.0
        %1074 = vmatprep.subr.mxu0 0.0
        %1075 = vmatpush2.msra.mxu0 0.0
        %1076 = vmatprep.subr.mxu0 0.0
        %1077 = vmatpush2.msra.mxu0 0.0
        %1078 = vmatprep.subr.mxu0 0.0
        %1079 = vmatpush2.msra.mxu0 0.0
        %1080 = vmatprep.subr.mxu0 0.0
        %1081 = vmatpush2.msra.mxu0 0.0
        %1082 = vmatprep.subr.mxu0 0.0
        %1083 = vmatpush2.msra.mxu0 0.0
        %1084 = vmatprep.subr.mxu0 0.0
        %1085 = vmatpush2.msra.mxu0 0.0
        %1086 = vmatprep.subr.mxu0 0.0
        %1087 = vmatpush2.msra.mxu0 0.0
        %1088 = vmatprep.subr.mxu0 0.0
        %1089 = vmatpush2.msra.mxu0 0.0
        %1090 = vmatprep.subr.mxu0 0.0
        %1091 = vmatpush2.msra.mxu0 0.0
        %1092 = vmatprep.subr.mxu0 0.0
        %1093 = vmatpush2.msra.mxu0 0.0
        %1094 = vmatprep.subr.mxu0 0.0
        %1095 = vmatpush2.msra.mxu0 0.0
        %1096 = vmatprep.subr.mxu0 0.0
        %1097 = vmatpush2.msra.mxu0 0.0
        %1098 = vmatprep.subr.mxu0 0.0
        %1099 = vmatpush2.msra.mxu0 0.0
        %1100 = vmatprep.mubr.f32.mxu0 0.0
        %1101 = vmatmul.mubr.f32.gmra.mxu0 %v989
        %v1102 = vpop.f32.mrf.mxu0
        %v1103 = vadd.f32 0.0, %v1102
        %v1104 = vpop.f32.mrf.mxu0
        %v1105 = vadd.f32 0.0, %v1104
        %1106 = vmatprep.mubr.f32.mxu0 0.0
        %1107 = vmatmul.mubr.f32.gmra.mxu0 %v992
        %v1108 = vpop.f32.mrf.mxu0
        %v1109 = vadd.f32 0.0, %v1108
        %v1110 = vpop.f32.mrf.mxu0
        %v1111 = vadd.f32 0.0, %v1110
        %1112 = vmatprep.mubr.f32.mxu0 0.0
        %1113 = vmatmul.mubr.f32.gmra.mxu0 %v995
        %v1114 = vpop.f32.mrf.mxu0
        %v1115 = vadd.f32 0.0, %v1114
        %v1116 = vpop.f32.mrf.mxu0
        %v1117 = vadd.f32 0.0, %v1116
        %1118 = vmatprep.mubr.f32.mxu0 0.0
        %1119 = vmatmul.mubr.f32.gmra.mxu0 %v998
        %v1120 = vpop.f32.mrf.mxu0
        %v1121 = vadd.f32 0.0, %v1120
        %v1122 = vpop.f32.mrf.mxu0
        %v1123 = vadd.f32 0.0, %v1122
        %1124 = vmatprep.mubr.f32.mxu0 0.0
        %1125 = vmatmul.mubr.f32.gmra.mxu0 %v1001
        %v1126 = vpop.f32.mrf.mxu0
        %v1127 = vadd.f32 0.0, %v1126
        %v1128 = vpop.f32.mrf.mxu0
        %v1129 = vadd.f32 0.0, %v1128
        %1130 = vmatprep.mubr.f32.mxu0 0.0
        %1131 = vmatmul.mubr.f32.gmra.mxu0 %v1004
        %v1132 = vpop.f32.mrf.mxu0
        %v1133 = vadd.f32 0.0, %v1132
        %v1134 = vpop.f32.mrf.mxu0
        %v1135 = vadd.f32 0.0, %v1134
        %1136 = vmatprep.mubr.f32.mxu0 0.0
        %1137 = vmatmul.mubr.f32.gmra.mxu0 %v1007
        %v1138 = vpop.f32.mrf.mxu0
        %v1139 = vadd.f32 0.0, %v1138
        %v1140 = vpop.f32.mrf.mxu0
        %v1141 = vadd.f32 0.0, %v1140
        %1142 = vmatprep.mubr.f32.mxu0 0.0
        %1143 = vmatmul.mubr.f32.gmra.mxu0 %v1010
        %v1144 = vpop.f32.mrf.mxu0
        %v1145 = vadd.f32 0.0, %v1144
        %v1146 = vpop.f32.mrf.mxu0
        %v1147 = vadd.f32 0.0, %v1146
        %1148 = vmatprep.mubr.f32.mxu0 0.0
        %1149 = vmatmul.mubr.f32.gmra.mxu0 %v1013
        %v1150 = vpop.f32.mrf.mxu0
        %v1151 = vadd.f32 0.0, %v1150
        %v1152 = vpop.f32.mrf.mxu0
        %v1153 = vadd.f32 0.0, %v1152
        %1154 = vmatprep.mubr.f32.mxu0 0.0
        %1155 = vmatmul.mubr.f32.gmra.mxu0 %v1016
        %v1156 = vpop.f32.mrf.mxu0
        %v1157 = vadd.f32 0.0, %v1156
        %v1158 = vpop.f32.mrf.mxu0
        %v1159 = vadd.f32 0.0, %v1158
        %1160 = vmatprep.mubr.f32.mxu0 0.0
        %1161 = vmatmul.mubr.f32.gmra.mxu0 %v1019
        %v1162 = vpop.f32.mrf.mxu0
        %v1163 = vadd.f32 0.0, %v1162
        %v1164 = vpop.f32.mrf.mxu0
        %v1165 = vadd.f32 0.0, %v1164
        %1166 = vmatprep.mubr.f32.mxu0 0.0
        %1167 = vmatmul.mubr.f32.gmra.mxu0 %v1022
        %v1168 = vpop.f32.mrf.mxu0
        %v1169 = vadd.f32 0.0, %v1168
        %v1170 = vpop.f32.mrf.mxu0
        %v1171 = vadd.f32 0.0, %v1170
        %1172 = vmatprep.mubr.f32.mxu0 0.0
        %1173 = vmatmul.mubr.f32.gmra.mxu0 %v1025
        %v1174 = vpop.f32.mrf.mxu0
        %v1175 = vadd.f32 0.0, %v1174
        %v1176 = vpop.f32.mrf.mxu0
        %v1177 = vadd.f32 0.0, %v1176
        %1178 = vmatprep.mubr.f32.mxu0 0.0
        %1179 = vmatmul.mubr.f32.gmra.mxu0 %v1028
        %v1180 = vpop.f32.mrf.mxu0
        %v1181 = vadd.f32 0.0, %v1180
        %v1182 = vpop.f32.mrf.mxu0
        %v1183 = vadd.f32 0.0, %v1182
        %1184 = vmatprep.mubr.f32.mxu0 0.0
        %1185 = vmatmul.mubr.f32.gmra.mxu0 %v1031
        %v1186 = vpop.f32.mrf.mxu0
        %v1187 = vadd.f32 0.0, %v1186
        %v1188 = vpop.f32.mrf.mxu0
        %v1189 = vadd.f32 0.0, %v1188
        %1190 = vmatprep.mubr.f32.mxu0 0.0
        %1191 = vmatmul.mubr.f32.gmra.mxu0 %v1034
        %v1192 = vpop.f32.mrf.mxu0
        %v1193 = vadd.f32 0.0, %v1192
        %v1194 = vpop.f32.mrf.mxu0
        %v1195 = vadd.f32 0.0, %v1194
        %1196 = vdwg.mxu0
        %1197 = vmatprep.subr.mxu0 0.0
        %1198 = vmatpush1.msra.mxu0 0.0
        %1199 = vmatprep.subr.mxu0 0.0
        %1200 = vmatpush1.msra.mxu0 0.0
        %1201 = vmatprep.subr.mxu0 0.0
        %1202 = vmatpush1.msra.mxu0 0.0
        %1203 = vmatprep.subr.mxu0 0.0
        %1204 = vmatpush1.msra.mxu0 0.0
        %1205 = vmatprep.subr.mxu0 0.0
        %1206 = vmatpush1.msra.mxu0 0.0
        %1207 = vmatprep.subr.mxu0 0.0
        %1208 = vmatpush1.msra.mxu0 0.0
        %1209 = vmatprep.subr.mxu0 0.0
        %1210 = vmatpush1.msra.mxu0 0.0
        %1211 = vmatprep.subr.mxu0 0.0
        %1212 = vmatpush1.msra.mxu0 0.0
        %1213 = vmatprep.subr.mxu0 0.0
        %1214 = vmatpush1.msra.mxu0 0.0
        %1215 = vmatprep.subr.mxu0 0.0
        %1216 = vmatpush1.msra.mxu0 0.0
        %1217 = vmatprep.subr.mxu0 0.0
        %1218 = vmatpush1.msra.mxu0 0.0
        %1219 = vmatprep.subr.mxu0 0.0
        %1220 = vmatpush1.msra.mxu0 0.0
        %1221 = vmatprep.subr.mxu0 0.0
        %1222 = vmatpush1.msra.mxu0 0.0
        %1223 = vmatprep.subr.mxu0 0.0
        %1224 = vmatpush1.msra.mxu0 0.0
        %1225 = vmatprep.subr.mxu0 0.0
        %1226 = vmatpush1.msra.mxu0 0.0
        %1227 = vmatprep.subr.mxu0 %v284
        %1228 = vmatpush1.msra.mxu0 %v283
        %1229 = vmatprep.subr.mxu0 0.0
        %1230 = vmatpush2.msra.mxu0 0.0
        %1231 = vmatprep.subr.mxu0 0.0
        %1232 = vmatpush2.msra.mxu0 0.0
        %1233 = vmatprep.subr.mxu0 0.0
        %1234 = vmatpush2.msra.mxu0 0.0
        %1235 = vmatprep.subr.mxu0 0.0
        %1236 = vmatpush2.msra.mxu0 0.0
        %1237 = vmatprep.subr.mxu0 0.0
        %1238 = vmatpush2.msra.mxu0 0.0
        %1239 = vmatprep.subr.mxu0 0.0
        %1240 = vmatpush2.msra.mxu0 0.0
        %1241 = vmatprep.subr.mxu0 0.0
        %1242 = vmatpush2.msra.mxu0 0.0
        %1243 = vmatprep.subr.mxu0 0.0
        %1244 = vmatpush2.msra.mxu0 0.0
        %1245 = vmatprep.subr.mxu0 0.0
        %1246 = vmatpush2.msra.mxu0 0.0
        %1247 = vmatprep.subr.mxu0 0.0
        %1248 = vmatpush2.msra.mxu0 0.0
        %1249 = vmatprep.subr.mxu0 0.0
        %1250 = vmatpush2.msra.mxu0 0.0
        %1251 = vmatprep.subr.mxu0 0.0
        %1252 = vmatpush2.msra.mxu0 0.0
        %1253 = vmatprep.subr.mxu0 0.0
        %1254 = vmatpush2.msra.mxu0 0.0
        %1255 = vmatprep.subr.mxu0 0.0
        %1256 = vmatpush2.msra.mxu0 0.0
        %1257 = vmatprep.subr.mxu0 0.0
        %1258 = vmatpush2.msra.mxu0 0.0
        %1259 = vmatprep.subr.mxu0 0.0
        %1260 = vmatpush2.msra.mxu0 0.0
        %1261 = vmatprep.mubr.f32.mxu0 0.0
        %1262 = vmatmul.mubr.f32.gmra.mxu0 %v989
        %v1263 = vpop.f32.mrf.mxu0
        %v1264 = vadd.f32 0.0, %v1263
        %v1265 = vpop.f32.mrf.mxu0
        %v1266 = vadd.f32 0.0, %v1265
        %1267 = vmatprep.mubr.f32.mxu0 0.0
        %1268 = vmatmul.mubr.f32.gmra.mxu0 %v992
        %v1269 = vpop.f32.mrf.mxu0
        %v1270 = vadd.f32 0.0, %v1269
        %v1271 = vpop.f32.mrf.mxu0
        %v1272 = vadd.f32 0.0, %v1271
        %1273 = vmatprep.mubr.f32.mxu0 0.0
        %1274 = vmatmul.mubr.f32.gmra.mxu0 %v995
        %v1275 = vpop.f32.mrf.mxu0
        %v1276 = vadd.f32 0.0, %v1275
        %v1277 = vpop.f32.mrf.mxu0
        %v1278 = vadd.f32 0.0, %v1277
        %1279 = vmatprep.mubr.f32.mxu0 0.0
        %1280 = vmatmul.mubr.f32.gmra.mxu0 %v998
        %v1281 = vpop.f32.mrf.mxu0
        %v1282 = vadd.f32 0.0, %v1281
        %v1283 = vpop.f32.mrf.mxu0
        %v1284 = vadd.f32 0.0, %v1283
        %1285 = vmatprep.mubr.f32.mxu0 0.0
        %1286 = vmatmul.mubr.f32.gmra.mxu0 %v1001
        %v1287 = vpop.f32.mrf.mxu0
        %v1288 = vadd.f32 0.0, %v1287
        %v1289 = vpop.f32.mrf.mxu0
        %v1290 = vadd.f32 0.0, %v1289
        %1291 = vmatprep.mubr.f32.mxu0 0.0
        %1292 = vmatmul.mubr.f32.gmra.mxu0 %v1004
        %v1293 = vpop.f32.mrf.mxu0
        %v1294 = vadd.f32 0.0, %v1293
        %v1295 = vpop.f32.mrf.mxu0
        %v1296 = vadd.f32 0.0, %v1295
        %1297 = vmatprep.mubr.f32.mxu0 0.0
        %1298 = vmatmul.mubr.f32.gmra.mxu0 %v1007
        %v1299 = vpop.f32.mrf.mxu0
        %v1300 = vadd.f32 0.0, %v1299
        %v1301 = vpop.f32.mrf.mxu0
        %v1302 = vadd.f32 0.0, %v1301
        %1303 = vmatprep.mubr.f32.mxu0 0.0
        %1304 = vmatmul.mubr.f32.gmra.mxu0 %v1010
        %v1305 = vpop.f32.mrf.mxu0
        %v1306 = vadd.f32 0.0, %v1305
        %v1307 = vpop.f32.mrf.mxu0
        %v1308 = vadd.f32 0.0, %v1307
        %1309 = vmatprep.mubr.f32.mxu0 0.0
        %1310 = vmatmul.mubr.f32.gmra.mxu0 %v1013
        %v1311 = vpop.f32.mrf.mxu0
        %v1312 = vadd.f32 0.0, %v1311
        %v1313 = vpop.f32.mrf.mxu0
        %v1314 = vadd.f32 0.0, %v1313
        %1315 = vmatprep.mubr.f32.mxu0 0.0
        %1316 = vmatmul.mubr.f32.gmra.mxu0 %v1016
        %v1317 = vpop.f32.mrf.mxu0
        %v1318 = vadd.f32 0.0, %v1317
        %v1319 = vpop.f32.mrf.mxu0
        %v1320 = vadd.f32 0.0, %v1319
        %1321 = vmatprep.mubr.f32.mxu0 0.0
        %1322 = vmatmul.mubr.f32.gmra.mxu0 %v1019
        %v1323 = vpop.f32.mrf.mxu0
        %v1324 = vadd.f32 0.0, %v1323
        %v1325 = vpop.f32.mrf.mxu0
        %v1326 = vadd.f32 0.0, %v1325
        %1327 = vmatprep.mubr.f32.mxu0 0.0
        %1328 = vmatmul.mubr.f32.gmra.mxu0 %v1022
        %v1329 = vpop.f32.mrf.mxu0
        %v1330 = vadd.f32 0.0, %v1329
        %v1331 = vpop.f32.mrf.mxu0
        %v1332 = vadd.f32 0.0, %v1331
        %1333 = vmatprep.mubr.f32.mxu0 0.0
        %1334 = vmatmul.mubr.f32.gmra.mxu0 %v1025
        %v1335 = vpop.f32.mrf.mxu0
        %v1336 = vadd.f32 0.0, %v1335
        %v1337 = vpop.f32.mrf.mxu0
        %v1338 = vadd.f32 0.0, %v1337
        %1339 = vmatprep.mubr.f32.mxu0 0.0
        %1340 = vmatmul.mubr.f32.gmra.mxu0 %v1028
        %v1341 = vpop.f32.mrf.mxu0
        %v1342 = vadd.f32 0.0, %v1341
        %v1343 = vpop.f32.mrf.mxu0
        %v1344 = vadd.f32 0.0, %v1343
        %1345 = vmatprep.mubr.f32.mxu0 0.0
        %1346 = vmatmul.mubr.f32.gmra.mxu0 %v1031
        %v1347 = vpop.f32.mrf.mxu0
        %v1348 = vadd.f32 0.0, %v1347
        %v1349 = vpop.f32.mrf.mxu0
        %v1350 = vadd.f32 0.0, %v1349
        %1351 = vmatprep.mubr.f32.mxu0 0.0
        %1352 = vmatmul.mubr.f32.gmra.mxu0 %v1034
        %v1353 = vpop.f32.mrf.mxu0
        %v1354 = vadd.f32 0.0, %v1353
        %v1355 = vpop.f32.mrf.mxu0
        %v1356 = vadd.f32 0.0, %v1355
        %1357 = vdwg.mxu0
        %1358 = vmatprep.subr.mxu0 0.0
        %1359 = vmatpush1.msra.mxu0 0.0
        %1360 = vmatprep.subr.mxu0 0.0
        %1361 = vmatpush1.msra.mxu0 0.0
        %1362 = vmatprep.subr.mxu0 0.0
        %1363 = vmatpush1.msra.mxu0 0.0
        %1364 = vmatprep.subr.mxu0 0.0
        %1365 = vmatpush1.msra.mxu0 0.0
        %1366 = vmatprep.subr.mxu0 0.0
        %1367 = vmatpush1.msra.mxu0 0.0
        %1368 = vmatprep.subr.mxu0 0.0
        %1369 = vmatpush1.msra.mxu0 0.0
        %1370 = vmatprep.subr.mxu0 0.0
        %1371 = vmatpush1.msra.mxu0 0.0
        %1372 = vmatprep.subr.mxu0 0.0
        %1373 = vmatpush1.msra.mxu0 0.0
        %1374 = vmatprep.subr.mxu0 0.0
        %1375 = vmatpush1.msra.mxu0 0.0
        %1376 = vmatprep.subr.mxu0 0.0
        %1377 = vmatpush1.msra.mxu0 0.0
        %1378 = vmatprep.subr.mxu0 0.0
        %1379 = vmatpush1.msra.mxu0 0.0
        %1380 = vmatprep.subr.mxu0 0.0
        %1381 = vmatpush1.msra.mxu0 0.0
        %1382 = vmatprep.subr.mxu0 0.0
        %1383 = vmatpush1.msra.mxu0 0.0
        %1384 = vmatprep.subr.mxu0 0.0
        %1385 = vmatpush1.msra.mxu0 0.0
        %1386 = vmatprep.subr.mxu0 0.0
        %1387 = vmatpush1.msra.mxu0 0.0
        %1388 = vmatprep.subr.mxu0 %v286
        %1389 = vmatpush1.msra.mxu0 %v285
        %1390 = vmatprep.subr.mxu0 0.0
        %1391 = vmatpush2.msra.mxu0 0.0
        %1392 = vmatprep.subr.mxu0 0.0
        %1393 = vmatpush2.msra.mxu0 0.0
        %1394 = vmatprep.subr.mxu0 0.0
        %1395 = vmatpush2.msra.mxu0 0.0
        %1396 = vmatprep.subr.mxu0 0.0
        %1397 = vmatpush2.msra.mxu0 0.0
        %1398 = vmatprep.subr.mxu0 0.0
        %1399 = vmatpush2.msra.mxu0 0.0
        %1400 = vmatprep.subr.mxu0 0.0
        %1401 = vmatpush2.msra.mxu0 0.0
        %1402 = vmatprep.subr.mxu0 0.0
        %1403 = vmatpush2.msra.mxu0 0.0
        %1404 = vmatprep.subr.mxu0 0.0
        %1405 = vmatpush2.msra.mxu0 0.0
        %1406 = vmatprep.subr.mxu0 0.0
        %1407 = vmatpush2.msra.mxu0 0.0
        %1408 = vmatprep.subr.mxu0 0.0
        %1409 = vmatpush2.msra.mxu0 0.0
        %1410 = vmatprep.subr.mxu0 0.0
        %1411 = vmatpush2.msra.mxu0 0.0
        %1412 = vmatprep.subr.mxu0 0.0
        %1413 = vmatpush2.msra.mxu0 0.0
        %1414 = vmatprep.subr.mxu0 0.0
        %1415 = vmatpush2.msra.mxu0 0.0
        %1416 = vmatprep.subr.mxu0 0.0
        %1417 = vmatpush2.msra.mxu0 0.0
        %1418 = vmatprep.subr.mxu0 0.0
        %1419 = vmatpush2.msra.mxu0 0.0
        %1420 = vmatprep.subr.mxu0 0.0
        %1421 = vmatpush2.msra.mxu0 0.0
        %1422 = vmatprep.mubr.f32.mxu0 0.0
        %1423 = vmatmul.mubr.f32.gmra.mxu0 %v989
        %v1424 = vpop.f32.mrf.mxu0
        %v1425 = vadd.f32 0.0, %v1424
        %v1426 = vpop.f32.mrf.mxu0
        %v1427 = vadd.f32 0.0, %v1426
        %1428 = vmatprep.mubr.f32.mxu0 0.0
        %1429 = vmatmul.mubr.f32.gmra.mxu0 %v992
        %v1430 = vpop.f32.mrf.mxu0
        %v1431 = vadd.f32 0.0, %v1430
        %v1432 = vpop.f32.mrf.mxu0
        %v1433 = vadd.f32 0.0, %v1432
        %1434 = vmatprep.mubr.f32.mxu0 0.0
        %1435 = vmatmul.mubr.f32.gmra.mxu0 %v995
        %v1436 = vpop.f32.mrf.mxu0
        %v1437 = vadd.f32 0.0, %v1436
        %v1438 = vpop.f32.mrf.mxu0
        %v1439 = vadd.f32 0.0, %v1438
        %1440 = vmatprep.mubr.f32.mxu0 0.0
        %1441 = vmatmul.mubr.f32.gmra.mxu0 %v998
        %v1442 = vpop.f32.mrf.mxu0
        %v1443 = vadd.f32 0.0, %v1442
        %v1444 = vpop.f32.mrf.mxu0
        %v1445 = vadd.f32 0.0, %v1444
        %1446 = vmatprep.mubr.f32.mxu0 0.0
        %1447 = vmatmul.mubr.f32.gmra.mxu0 %v1001
        %v1448 = vpop.f32.mrf.mxu0
        %v1449 = vadd.f32 0.0, %v1448
        %v1450 = vpop.f32.mrf.mxu0
        %v1451 = vadd.f32 0.0, %v1450
        %1452 = vmatprep.mubr.f32.mxu0 0.0
        %1453 = vmatmul.mubr.f32.gmra.mxu0 %v1004
        %v1454 = vpop.f32.mrf.mxu0
        %v1455 = vadd.f32 0.0, %v1454
        %v1456 = vpop.f32.mrf.mxu0
        %v1457 = vadd.f32 0.0, %v1456
        %1458 = vmatprep.mubr.f32.mxu0 0.0
        %1459 = vmatmul.mubr.f32.gmra.mxu0 %v1007
        %v1460 = vpop.f32.mrf.mxu0
        %v1461 = vadd.f32 0.0, %v1460
        %v1462 = vpop.f32.mrf.mxu0
        %v1463 = vadd.f32 0.0, %v1462
        %1464 = vmatprep.mubr.f32.mxu0 0.0
        %1465 = vmatmul.mubr.f32.gmra.mxu0 %v1010
        %v1466 = vpop.f32.mrf.mxu0
        %v1467 = vadd.f32 0.0, %v1466
        %v1468 = vpop.f32.mrf.mxu0
        %v1469 = vadd.f32 0.0, %v1468
        %1470 = vmatprep.mubr.f32.mxu0 0.0
        %1471 = vmatmul.mubr.f32.gmra.mxu0 %v1013
        %v1472 = vpop.f32.mrf.mxu0
        %v1473 = vadd.f32 0.0, %v1472
        %v1474 = vpop.f32.mrf.mxu0
        %v1475 = vadd.f32 0.0, %v1474
        %1476 = vmatprep.mubr.f32.mxu0 0.0
        %1477 = vmatmul.mubr.f32.gmra.mxu0 %v1016
        %v1478 = vpop.f32.mrf.mxu0
        %v1479 = vadd.f32 0.0, %v1478
        %v1480 = vpop.f32.mrf.mxu0
        %v1481 = vadd.f32 0.0, %v1480
        %1482 = vmatprep.mubr.f32.mxu0 0.0
        %1483 = vmatmul.mubr.f32.gmra.mxu0 %v1019
        %v1484 = vpop.f32.mrf.mxu0
        %v1485 = vadd.f32 0.0, %v1484
        %v1486 = vpop.f32.mrf.mxu0
        %v1487 = vadd.f32 0.0, %v1486
        %1488 = vmatprep.mubr.f32.mxu0 0.0
        %1489 = vmatmul.mubr.f32.gmra.mxu0 %v1022
        %v1490 = vpop.f32.mrf.mxu0
        %v1491 = vadd.f32 0.0, %v1490
        %v1492 = vpop.f32.mrf.mxu0
        %v1493 = vadd.f32 0.0, %v1492
        %1494 = vmatprep.mubr.f32.mxu0 0.0
        %1495 = vmatmul.mubr.f32.gmra.mxu0 %v1025
        %v1496 = vpop.f32.mrf.mxu0
        %v1497 = vadd.f32 0.0, %v1496
        %v1498 = vpop.f32.mrf.mxu0
        %v1499 = vadd.f32 0.0, %v1498
        %1500 = vmatprep.mubr.f32.mxu0 0.0
        %1501 = vmatmul.mubr.f32.gmra.mxu0 %v1028
        %v1502 = vpop.f32.mrf.mxu0
        %v1503 = vadd.f32 0.0, %v1502
        %v1504 = vpop.f32.mrf.mxu0
        %v1505 = vadd.f32 0.0, %v1504
        %1506 = vmatprep.mubr.f32.mxu0 0.0
        %1507 = vmatmul.mubr.f32.gmra.mxu0 %v1031
        %v1508 = vpop.f32.mrf.mxu0
        %v1509 = vadd.f32 0.0, %v1508
        %v1510 = vpop.f32.mrf.mxu0
        %v1511 = vadd.f32 0.0, %v1510
        %1512 = vmatprep.mubr.f32.mxu0 0.0
        %1513 = vmatmul.mubr.f32.gmra.mxu0 %v1034
        %v1514 = vpop.f32.mrf.mxu0
        %v1515 = vadd.f32 0.0, %v1514
        %v1516 = vpop.f32.mrf.mxu0
        %v1517 = vadd.f32 0.0, %v1516
        %1518 = vdwg.mxu0
        %1519 = vmatprep.subr.mxu0 0.0
        %1520 = vmatpush1.msra.mxu0 0.0
        %1521 = vmatprep.subr.mxu0 0.0
        %1522 = vmatpush1.msra.mxu0 0.0
        %1523 = vmatprep.subr.mxu0 0.0
        %1524 = vmatpush1.msra.mxu0 0.0
        %1525 = vmatprep.subr.mxu0 0.0
        %1526 = vmatpush1.msra.mxu0 0.0
        %1527 = vmatprep.subr.mxu0 0.0
        %1528 = vmatpush1.msra.mxu0 0.0
        %1529 = vmatprep.subr.mxu0 0.0
        %1530 = vmatpush1.msra.mxu0 0.0
        %1531 = vmatprep.subr.mxu0 0.0
        %1532 = vmatpush1.msra.mxu0 0.0
        %1533 = vmatprep.subr.mxu0 0.0
        %1534 = vmatpush1.msra.mxu0 0.0
        %1535 = vmatprep.subr.mxu0 0.0
        %1536 = vmatpush1.msra.mxu0 0.0
        %1537 = vmatprep.subr.mxu0 0.0
        %1538 = vmatpush1.msra.mxu0 0.0
        %1539 = vmatprep.subr.mxu0 0.0
        %1540 = vmatpush1.msra.mxu0 0.0
        %1541 = vmatprep.subr.mxu0 0.0
        %1542 = vmatpush1.msra.mxu0 0.0
        %1543 = vmatprep.subr.mxu0 0.0
        %1544 = vmatpush1.msra.mxu0 0.0
        %1545 = vmatprep.subr.mxu0 0.0
        %1546 = vmatpush1.msra.mxu0 0.0
        %1547 = vmatprep.subr.mxu0 0.0
        %1548 = vmatpush1.msra.mxu0 0.0
        %1549 = vmatprep.subr.mxu0 %v288
        %1550 = vmatpush1.msra.mxu0 %v287
        %1551 = vmatprep.subr.mxu0 0.0
        %1552 = vmatpush2.msra.mxu0 0.0
        %1553 = vmatprep.subr.mxu0 0.0
        %1554 = vmatpush2.msra.mxu0 0.0
        %1555 = vmatprep.subr.mxu0 0.0
        %1556 = vmatpush2.msra.mxu0 0.0
        %1557 = vmatprep.subr.mxu0 0.0
        %1558 = vmatpush2.msra.mxu0 0.0
        %1559 = vmatprep.subr.mxu0 0.0
        %1560 = vmatpush2.msra.mxu0 0.0
        %1561 = vmatprep.subr.mxu0 0.0
        %1562 = vmatpush2.msra.mxu0 0.0
        %1563 = vmatprep.subr.mxu0 0.0
        %1564 = vmatpush2.msra.mxu0 0.0
        %1565 = vmatprep.subr.mxu0 0.0
        %1566 = vmatpush2.msra.mxu0 0.0
        %1567 = vmatprep.subr.mxu0 0.0
        %1568 = vmatpush2.msra.mxu0 0.0
        %1569 = vmatprep.subr.mxu0 0.0
        %1570 = vmatpush2.msra.mxu0 0.0
        %1571 = vmatprep.subr.mxu0 0.0
        %1572 = vmatpush2.msra.mxu0 0.0
        %1573 = vmatprep.subr.mxu0 0.0
        %1574 = vmatpush2.msra.mxu0 0.0
        %1575 = vmatprep.subr.mxu0 0.0
        %1576 = vmatpush2.msra.mxu0 0.0
        %1577 = vmatprep.subr.mxu0 0.0
        %1578 = vmatpush2.msra.mxu0 0.0
        %1579 = vmatprep.subr.mxu0 0.0
        %1580 = vmatpush2.msra.mxu0 0.0
        %1581 = vmatprep.subr.mxu0 0.0
        %1582 = vmatpush2.msra.mxu0 0.0
        %1583 = vmatprep.mubr.f32.mxu0 0.0
        %1584 = vmatmul.mubr.f32.gmra.mxu0 %v989
        %v1585 = vpop.f32.mrf.mxu0
        %v1586 = vadd.f32 0.0, %v1585
        %v1587 = vpop.f32.mrf.mxu0
        %v1588 = vadd.f32 0.0, %v1587
        %1589 = vmatprep.mubr.f32.mxu0 0.0
        %1590 = vmatmul.mubr.f32.gmra.mxu0 %v992
        %v1591 = vpop.f32.mrf.mxu0
        %v1592 = vadd.f32 0.0, %v1591
        %v1593 = vpop.f32.mrf.mxu0
        %v1594 = vadd.f32 0.0, %v1593
        %1595 = vmatprep.mubr.f32.mxu0 0.0
        %1596 = vmatmul.mubr.f32.gmra.mxu0 %v995
        %v1597 = vpop.f32.mrf.mxu0
        %v1598 = vadd.f32 0.0, %v1597
        %v1599 = vpop.f32.mrf.mxu0
        %v1600 = vadd.f32 0.0, %v1599
        %1601 = vmatprep.mubr.f32.mxu0 0.0
        %1602 = vmatmul.mubr.f32.gmra.mxu0 %v998
        %v1603 = vpop.f32.mrf.mxu0
        %v1604 = vadd.f32 0.0, %v1603
        %v1605 = vpop.f32.mrf.mxu0
        %v1606 = vadd.f32 0.0, %v1605
        %1607 = vmatprep.mubr.f32.mxu0 0.0
        %1608 = vmatmul.mubr.f32.gmra.mxu0 %v1001
        %v1609 = vpop.f32.mrf.mxu0
        %v1610 = vadd.f32 0.0, %v1609
        %v1611 = vpop.f32.mrf.mxu0
        %v1612 = vadd.f32 0.0, %v1611
        %1613 = vmatprep.mubr.f32.mxu0 0.0
        %1614 = vmatmul.mubr.f32.gmra.mxu0 %v1004
        %v1615 = vpop.f32.mrf.mxu0
        %v1616 = vadd.f32 0.0, %v1615
        %v1617 = vpop.f32.mrf.mxu0
        %v1618 = vadd.f32 0.0, %v1617
        %1619 = vmatprep.mubr.f32.mxu0 0.0
        %1620 = vmatmul.mubr.f32.gmra.mxu0 %v1007
        %v1621 = vpop.f32.mrf.mxu0
        %v1622 = vadd.f32 0.0, %v1621
        %v1623 = vpop.f32.mrf.mxu0
        %v1624 = vadd.f32 0.0, %v1623
        %1625 = vmatprep.mubr.f32.mxu0 0.0
        %1626 = vmatmul.mubr.f32.gmra.mxu0 %v1010
        %v1627 = vpop.f32.mrf.mxu0
        %v1628 = vadd.f32 0.0, %v1627
        %v1629 = vpop.f32.mrf.mxu0
        %v1630 = vadd.f32 0.0, %v1629
        %1631 = vmatprep.mubr.f32.mxu0 0.0
        %1632 = vmatmul.mubr.f32.gmra.mxu0 %v1013
        %v1633 = vpop.f32.mrf.mxu0
        %v1634 = vadd.f32 0.0, %v1633
        %v1635 = vpop.f32.mrf.mxu0
        %v1636 = vadd.f32 0.0, %v1635
        %1637 = vmatprep.mubr.f32.mxu0 0.0
        %1638 = vmatmul.mubr.f32.gmra.mxu0 %v1016
        %v1639 = vpop.f32.mrf.mxu0
        %v1640 = vadd.f32 0.0, %v1639
        %v1641 = vpop.f32.mrf.mxu0
        %v1642 = vadd.f32 0.0, %v1641
        %1643 = vmatprep.mubr.f32.mxu0 0.0
        %1644 = vmatmul.mubr.f32.gmra.mxu0 %v1019
        %v1645 = vpop.f32.mrf.mxu0
        %v1646 = vadd.f32 0.0, %v1645
        %v1647 = vpop.f32.mrf.mxu0
        %v1648 = vadd.f32 0.0, %v1647
        %1649 = vmatprep.mubr.f32.mxu0 0.0
        %1650 = vmatmul.mubr.f32.gmra.mxu0 %v1022
        %v1651 = vpop.f32.mrf.mxu0
        %v1652 = vadd.f32 0.0, %v1651
        %v1653 = vpop.f32.mrf.mxu0
        %v1654 = vadd.f32 0.0, %v1653
        %1655 = vmatprep.mubr.f32.mxu0 0.0
        %1656 = vmatmul.mubr.f32.gmra.mxu0 %v1025
        %v1657 = vpop.f32.mrf.mxu0
        %v1658 = vadd.f32 0.0, %v1657
        %v1659 = vpop.f32.mrf.mxu0
        %v1660 = vadd.f32 0.0, %v1659
        %1661 = vmatprep.mubr.f32.mxu0 0.0
        %1662 = vmatmul.mubr.f32.gmra.mxu0 %v1028
        %v1663 = vpop.f32.mrf.mxu0
        %v1664 = vadd.f32 0.0, %v1663
        %v1665 = vpop.f32.mrf.mxu0
        %v1666 = vadd.f32 0.0, %v1665
        %1667 = vmatprep.mubr.f32.mxu0 0.0
        %1668 = vmatmul.mubr.f32.gmra.mxu0 %v1031
        %v1669 = vpop.f32.mrf.mxu0
        %v1670 = vadd.f32 0.0, %v1669
        %v1671 = vpop.f32.mrf.mxu0
        %v1672 = vadd.f32 0.0, %v1671
        %1673 = vmatprep.mubr.f32.mxu0 0.0
        %1674 = vmatmul.mubr.f32.gmra.mxu0 %v1034
        %v1675 = vpop.f32.mrf.mxu0
        %v1676 = vadd.f32 0.0, %v1675
        %v1677 = vpop.f32.mrf.mxu0
        %v1678 = vadd.f32 0.0, %v1677
        %1679 = vdwg.mxu0
        %1680 = vmatprep.subr.mxu0 0.0
        %1681 = vmatpush1.msra.mxu0 0.0
        %1682 = vmatprep.subr.mxu0 0.0
        %1683 = vmatpush1.msra.mxu0 0.0
        %1684 = vmatprep.subr.mxu0 0.0
        %1685 = vmatpush1.msra.mxu0 0.0
        %1686 = vmatprep.subr.mxu0 0.0
        %1687 = vmatpush1.msra.mxu0 0.0
        %1688 = vmatprep.subr.mxu0 0.0
        %1689 = vmatpush1.msra.mxu0 0.0
        %1690 = vmatprep.subr.mxu0 0.0
        %1691 = vmatpush1.msra.mxu0 0.0
        %1692 = vmatprep.subr.mxu0 0.0
        %1693 = vmatpush1.msra.mxu0 0.0
        %1694 = vmatprep.subr.mxu0 0.0
        %1695 = vmatpush1.msra.mxu0 0.0
        %1696 = vmatprep.subr.mxu0 0.0
        %1697 = vmatpush1.msra.mxu0 0.0
        %1698 = vmatprep.subr.mxu0 0.0
        %1699 = vmatpush1.msra.mxu0 0.0
        %1700 = vmatprep.subr.mxu0 0.0
        %1701 = vmatpush1.msra.mxu0 0.0
        %1702 = vmatprep.subr.mxu0 0.0
        %1703 = vmatpush1.msra.mxu0 0.0
        %1704 = vmatprep.subr.mxu0 0.0
        %1705 = vmatpush1.msra.mxu0 0.0
        %1706 = vmatprep.subr.mxu0 0.0
        %1707 = vmatpush1.msra.mxu0 0.0
        %1708 = vmatprep.subr.mxu0 0.0
        %1709 = vmatpush1.msra.mxu0 0.0
        %1710 = vmatprep.subr.mxu0 %v290
        %1711 = vmatpush1.msra.mxu0 %v289
        %1712 = vmatprep.subr.mxu0 0.0
        %1713 = vmatpush2.msra.mxu0 0.0
        %1714 = vmatprep.subr.mxu0 0.0
        %1715 = vmatpush2.msra.mxu0 0.0
        %1716 = vmatprep.subr.mxu0 0.0
        %1717 = vmatpush2.msra.mxu0 0.0
        %1718 = vmatprep.subr.mxu0 0.0
        %1719 = vmatpush2.msra.mxu0 0.0
        %1720 = vmatprep.subr.mxu0 0.0
        %1721 = vmatpush2.msra.mxu0 0.0
        %1722 = vmatprep.subr.mxu0 0.0
        %1723 = vmatpush2.msra.mxu0 0.0
        %1724 = vmatprep.subr.mxu0 0.0
        %1725 = vmatpush2.msra.mxu0 0.0
        %1726 = vmatprep.subr.mxu0 0.0
        %1727 = vmatpush2.msra.mxu0 0.0
        %1728 = vmatprep.subr.mxu0 0.0
        %1729 = vmatpush2.msra.mxu0 0.0
        %1730 = vmatprep.subr.mxu0 0.0
        %1731 = vmatpush2.msra.mxu0 0.0
        %1732 = vmatprep.subr.mxu0 0.0
        %1733 = vmatpush2.msra.mxu0 0.0
        %1734 = vmatprep.subr.mxu0 0.0
        %1735 = vmatpush2.msra.mxu0 0.0
        %1736 = vmatprep.subr.mxu0 0.0
        %1737 = vmatpush2.msra.mxu0 0.0
        %1738 = vmatprep.subr.mxu0 0.0
        %1739 = vmatpush2.msra.mxu0 0.0
        %1740 = vmatprep.subr.mxu0 0.0
        %1741 = vmatpush2.msra.mxu0 0.0
        %1742 = vmatprep.subr.mxu0 0.0
        %1743 = vmatpush2.msra.mxu0 0.0
        %1744 = vmatprep.mubr.f32.mxu0 0.0
        %1745 = vmatmul.mubr.f32.gmra.mxu0 %v989
        %v1746 = vpop.f32.mrf.mxu0
        %v1747 = vadd.f32 0.0, %v1746
        %v1748 = vpop.f32.mrf.mxu0
        %v1749 = vadd.f32 0.0, %v1748
        %1750 = vmatprep.mubr.f32.mxu0 0.0
        %1751 = vmatmul.mubr.f32.gmra.mxu0 %v992
        %v1752 = vpop.f32.mrf.mxu0
        %v1753 = vadd.f32 0.0, %v1752
        %v1754 = vpop.f32.mrf.mxu0
        %v1755 = vadd.f32 0.0, %v1754
        %1756 = vmatprep.mubr.f32.mxu0 0.0
        %1757 = vmatmul.mubr.f32.gmra.mxu0 %v995
        %v1758 = vpop.f32.mrf.mxu0
        %v1759 = vadd.f32 0.0, %v1758
        %v1760 = vpop.f32.mrf.mxu0
        %v1761 = vadd.f32 0.0, %v1760
        %1762 = vmatprep.mubr.f32.mxu0 0.0
        %1763 = vmatmul.mubr.f32.gmra.mxu0 %v998
        %v1764 = vpop.f32.mrf.mxu0
        %v1765 = vadd.f32 0.0, %v1764
        %v1766 = vpop.f32.mrf.mxu0
        %v1767 = vadd.f32 0.0, %v1766
        %1768 = vmatprep.mubr.f32.mxu0 0.0
        %1769 = vmatmul.mubr.f32.gmra.mxu0 %v1001
        %v1770 = vpop.f32.mrf.mxu0
        %v1771 = vadd.f32 0.0, %v1770
        %v1772 = vpop.f32.mrf.mxu0
        %v1773 = vadd.f32 0.0, %v1772
        %1774 = vmatprep.mubr.f32.mxu0 0.0
        %1775 = vmatmul.mubr.f32.gmra.mxu0 %v1004
        %v1776 = vpop.f32.mrf.mxu0
        %v1777 = vadd.f32 0.0, %v1776
        %v1778 = vpop.f32.mrf.mxu0
        %v1779 = vadd.f32 0.0, %v1778
        %1780 = vmatprep.mubr.f32.mxu0 0.0
        %1781 = vmatmul.mubr.f32.gmra.mxu0 %v1007
        %v1782 = vpop.f32.mrf.mxu0
        %v1783 = vadd.f32 0.0, %v1782
        %v1784 = vpop.f32.mrf.mxu0
        %v1785 = vadd.f32 0.0, %v1784
        %1786 = vmatprep.mubr.f32.mxu0 0.0
        %1787 = vmatmul.mubr.f32.gmra.mxu0 %v1010
        %v1788 = vpop.f32.mrf.mxu0
        %v1789 = vadd.f32 0.0, %v1788
        %v1790 = vpop.f32.mrf.mxu0
        %v1791 = vadd.f32 0.0, %v1790
        %1792 = vmatprep.mubr.f32.mxu0 0.0
        %1793 = vmatmul.mubr.f32.gmra.mxu0 %v1013
        %v1794 = vpop.f32.mrf.mxu0
        %v1795 = vadd.f32 0.0, %v1794
        %v1796 = vpop.f32.mrf.mxu0
        %v1797 = vadd.f32 0.0, %v1796
        %1798 = vmatprep.mubr.f32.mxu0 0.0
        %1799 = vmatmul.mubr.f32.gmra.mxu0 %v1016
        %v1800 = vpop.f32.mrf.mxu0
        %v1801 = vadd.f32 0.0, %v1800
        %v1802 = vpop.f32.mrf.mxu0
        %v1803 = vadd.f32 0.0, %v1802
        %1804 = vmatprep.mubr.f32.mxu0 0.0
        %1805 = vmatmul.mubr.f32.gmra.mxu0 %v1019
        %v1806 = vpop.f32.mrf.mxu0
        %v1807 = vadd.f32 0.0, %v1806
        %v1808 = vpop.f32.mrf.mxu0
        %v1809 = vadd.f32 0.0, %v1808
        %1810 = vmatprep.mubr.f32.mxu0 0.0
        %1811 = vmatmul.mubr.f32.gmra.mxu0 %v1022
        %v1812 = vpop.f32.mrf.mxu0
        %v1813 = vadd.f32 0.0, %v1812
        %v1814 = vpop.f32.mrf.mxu0
        %v1815 = vadd.f32 0.0, %v1814
        %1816 = vmatprep.mubr.f32.mxu0 0.0
        %1817 = vmatmul.mubr.f32.gmra.mxu0 %v1025
        %v1818 = vpop.f32.mrf.mxu0
        %v1819 = vadd.f32 0.0, %v1818
        %v1820 = vpop.f32.mrf.mxu0
        %v1821 = vadd.f32 0.0, %v1820
        %1822 = vmatprep.mubr.f32.mxu0 0.0
        %1823 = vmatmul.mubr.f32.gmra.mxu0 %v1028
        %v1824 = vpop.f32.mrf.mxu0
        %v1825 = vadd.f32 0.0, %v1824
        %v1826 = vpop.f32.mrf.mxu0
        %v1827 = vadd.f32 0.0, %v1826
        %1828 = vmatprep.mubr.f32.mxu0 0.0
        %1829 = vmatmul.mubr.f32.gmra.mxu0 %v1031
        %v1830 = vpop.f32.mrf.mxu0
        %v1831 = vadd.f32 0.0, %v1830
        %v1832 = vpop.f32.mrf.mxu0
        %v1833 = vadd.f32 0.0, %v1832
        %1834 = vmatprep.mubr.f32.mxu0 0.0
        %1835 = vmatmul.mubr.f32.gmra.mxu0 %v1034
        %v1836 = vpop.f32.mrf.mxu0
        %v1837 = vadd.f32 0.0, %v1836
        %v1838 = vpop.f32.mrf.mxu0
        %v1839 = vadd.f32 0.0, %v1838
        %1840 = vdwg.mxu0
        %1841 = vmatprep.subr.mxu0 0.0
        %1842 = vmatpush1.msra.mxu0 0.0
        %1843 = vmatprep.subr.mxu0 0.0
        %1844 = vmatpush1.msra.mxu0 0.0
        %1845 = vmatprep.subr.mxu0 0.0
        %1846 = vmatpush1.msra.mxu0 0.0
        %1847 = vmatprep.subr.mxu0 0.0
        %1848 = vmatpush1.msra.mxu0 0.0
        %1849 = vmatprep.subr.mxu0 0.0
        %1850 = vmatpush1.msra.mxu0 0.0
        %1851 = vmatprep.subr.mxu0 0.0
        %1852 = vmatpush1.msra.mxu0 0.0
        %1853 = vmatprep.subr.mxu0 0.0
        %1854 = vmatpush1.msra.mxu0 0.0
        %1855 = vmatprep.subr.mxu0 0.0
        %1856 = vmatpush1.msra.mxu0 0.0
        %1857 = vmatprep.subr.mxu0 0.0
        %1858 = vmatpush1.msra.mxu0 0.0
        %1859 = vmatprep.subr.mxu0 0.0
        %1860 = vmatpush1.msra.mxu0 0.0
        %1861 = vmatprep.subr.mxu0 0.0
        %1862 = vmatpush1.msra.mxu0 0.0
        %1863 = vmatprep.subr.mxu0 0.0
        %1864 = vmatpush1.msra.mxu0 0.0
        %1865 = vmatprep.subr.mxu0 0.0
        %1866 = vmatpush1.msra.mxu0 0.0
        %1867 = vmatprep.subr.mxu0 0.0
        %1868 = vmatpush1.msra.mxu0 0.0
        %1869 = vmatprep.subr.mxu0 0.0
        %1870 = vmatpush1.msra.mxu0 0.0
        %1871 = vmatprep.subr.mxu0 %v292
        %1872 = vmatpush1.msra.mxu0 %v291
        %1873 = vmatprep.subr.mxu0 0.0
        %1874 = vmatpush2.msra.mxu0 0.0
        %1875 = vmatprep.subr.mxu0 0.0
        %1876 = vmatpush2.msra.mxu0 0.0
        %1877 = vmatprep.subr.mxu0 0.0
        %1878 = vmatpush2.msra.mxu0 0.0
        %1879 = vmatprep.subr.mxu0 0.0
        %1880 = vmatpush2.msra.mxu0 0.0
        %1881 = vmatprep.subr.mxu0 0.0
        %1882 = vmatpush2.msra.mxu0 0.0
        %1883 = vmatprep.subr.mxu0 0.0
        %1884 = vmatpush2.msra.mxu0 0.0
        %1885 = vmatprep.subr.mxu0 0.0
        %1886 = vmatpush2.msra.mxu0 0.0
        %1887 = vmatprep.subr.mxu0 0.0
        %1888 = vmatpush2.msra.mxu0 0.0
        %1889 = vmatprep.subr.mxu0 0.0
        %1890 = vmatpush2.msra.mxu0 0.0
        %1891 = vmatprep.subr.mxu0 0.0
        %1892 = vmatpush2.msra.mxu0 0.0
        %1893 = vmatprep.subr.mxu0 0.0
        %1894 = vmatpush2.msra.mxu0 0.0
        %1895 = vmatprep.subr.mxu0 0.0
        %1896 = vmatpush2.msra.mxu0 0.0
        %1897 = vmatprep.subr.mxu0 0.0
        %1898 = vmatpush2.msra.mxu0 0.0
        %1899 = vmatprep.subr.mxu0 0.0
        %1900 = vmatpush2.msra.mxu0 0.0
        %1901 = vmatprep.subr.mxu0 0.0
        %1902 = vmatpush2.msra.mxu0 0.0
        %1903 = vmatprep.subr.mxu0 0.0
        %1904 = vmatpush2.msra.mxu0 0.0
        %1905 = vmatprep.mubr.f32.mxu0 0.0
        %1906 = vmatmul.mubr.f32.gmra.mxu0 %v989
        %v1907 = vpop.f32.mrf.mxu0
        %v1908 = vadd.f32 0.0, %v1907
        %v1909 = vpop.f32.mrf.mxu0
        %v1910 = vadd.f32 0.0, %v1909
        %1911 = vmatprep.mubr.f32.mxu0 0.0
        %1912 = vmatmul.mubr.f32.gmra.mxu0 %v992
        %v1913 = vpop.f32.mrf.mxu0
        %v1914 = vadd.f32 0.0, %v1913
        %v1915 = vpop.f32.mrf.mxu0
        %v1916 = vadd.f32 0.0, %v1915
        %1917 = vmatprep.mubr.f32.mxu0 0.0
        %1918 = vmatmul.mubr.f32.gmra.mxu0 %v995
        %v1919 = vpop.f32.mrf.mxu0
        %v1920 = vadd.f32 0.0, %v1919
        %v1921 = vpop.f32.mrf.mxu0
        %v1922 = vadd.f32 0.0, %v1921
        %1923 = vmatprep.mubr.f32.mxu0 0.0
        %1924 = vmatmul.mubr.f32.gmra.mxu0 %v998
        %v1925 = vpop.f32.mrf.mxu0
        %v1926 = vadd.f32 0.0, %v1925
        %v1927 = vpop.f32.mrf.mxu0
        %v1928 = vadd.f32 0.0, %v1927
        %1929 = vmatprep.mubr.f32.mxu0 0.0
        %1930 = vmatmul.mubr.f32.gmra.mxu0 %v1001
        %v1931 = vpop.f32.mrf.mxu0
        %v1932 = vadd.f32 0.0, %v1931
        %v1933 = vpop.f32.mrf.mxu0
        %v1934 = vadd.f32 0.0, %v1933
        %1935 = vmatprep.mubr.f32.mxu0 0.0
        %1936 = vmatmul.mubr.f32.gmra.mxu0 %v1004
        %v1937 = vpop.f32.mrf.mxu0
        %v1938 = vadd.f32 0.0, %v1937
        %v1939 = vpop.f32.mrf.mxu0
        %v1940 = vadd.f32 0.0, %v1939
        %1941 = vmatprep.mubr.f32.mxu0 0.0
        %1942 = vmatmul.mubr.f32.gmra.mxu0 %v1007
        %v1943 = vpop.f32.mrf.mxu0
        %v1944 = vadd.f32 0.0, %v1943
        %v1945 = vpop.f32.mrf.mxu0
        %v1946 = vadd.f32 0.0, %v1945
        %1947 = vmatprep.mubr.f32.mxu0 0.0
        %1948 = vmatmul.mubr.f32.gmra.mxu0 %v1010
        %v1949 = vpop.f32.mrf.mxu0
        %v1950 = vadd.f32 0.0, %v1949
        %v1951 = vpop.f32.mrf.mxu0
        %v1952 = vadd.f32 0.0, %v1951
        %1953 = vmatprep.mubr.f32.mxu0 0.0
        %1954 = vmatmul.mubr.f32.gmra.mxu0 %v1013
        %v1955 = vpop.f32.mrf.mxu0
        %v1956 = vadd.f32 0.0, %v1955
        %v1957 = vpop.f32.mrf.mxu0
        %v1958 = vadd.f32 0.0, %v1957
        %1959 = vmatprep.mubr.f32.mxu0 0.0
        %1960 = vmatmul.mubr.f32.gmra.mxu0 %v1016
        %v1961 = vpop.f32.mrf.mxu0
        %v1962 = vadd.f32 0.0, %v1961
        %v1963 = vpop.f32.mrf.mxu0
        %v1964 = vadd.f32 0.0, %v1963
        %1965 = vmatprep.mubr.f32.mxu0 0.0
        %1966 = vmatmul.mubr.f32.gmra.mxu0 %v1019
        %v1967 = vpop.f32.mrf.mxu0
        %v1968 = vadd.f32 0.0, %v1967
        %v1969 = vpop.f32.mrf.mxu0
        %v1970 = vadd.f32 0.0, %v1969
        %1971 = vmatprep.mubr.f32.mxu0 0.0
        %1972 = vmatmul.mubr.f32.gmra.mxu0 %v1022
        %v1973 = vpop.f32.mrf.mxu0
        %v1974 = vadd.f32 0.0, %v1973
        %v1975 = vpop.f32.mrf.mxu0
        %v1976 = vadd.f32 0.0, %v1975
        %1977 = vmatprep.mubr.f32.mxu0 0.0
        %1978 = vmatmul.mubr.f32.gmra.mxu0 %v1025
        %v1979 = vpop.f32.mrf.mxu0
        %v1980 = vadd.f32 0.0, %v1979
        %v1981 = vpop.f32.mrf.mxu0
        %v1982 = vadd.f32 0.0, %v1981
        %1983 = vmatprep.mubr.f32.mxu0 0.0
        %1984 = vmatmul.mubr.f32.gmra.mxu0 %v1028
        %v1985 = vpop.f32.mrf.mxu0
        %v1986 = vadd.f32 0.0, %v1985
        %v1987 = vpop.f32.mrf.mxu0
        %v1988 = vadd.f32 0.0, %v1987
        %1989 = vmatprep.mubr.f32.mxu0 0.0
        %1990 = vmatmul.mubr.f32.gmra.mxu0 %v1031
        %v1991 = vpop.f32.mrf.mxu0
        %v1992 = vadd.f32 0.0, %v1991
        %v1993 = vpop.f32.mrf.mxu0
        %v1994 = vadd.f32 0.0, %v1993
        %1995 = vmatprep.mubr.f32.mxu0 0.0
        %1996 = vmatmul.mubr.f32.gmra.mxu0 %v1034
        %v1997 = vpop.f32.mrf.mxu0
        %v1998 = vadd.f32 0.0, %v1997
        %v1999 = vpop.f32.mrf.mxu0
        %v2000 = vadd.f32 0.0, %v1999
        %2001 = vdwg.mxu0
        %2002 = vmatprep.subr.mxu0 0.0
        %2003 = vmatpush1.msra.mxu0 0.0
        %2004 = vmatprep.subr.mxu0 0.0
        %2005 = vmatpush1.msra.mxu0 0.0
        %2006 = vmatprep.subr.mxu0 0.0
        %2007 = vmatpush1.msra.mxu0 0.0
        %2008 = vmatprep.subr.mxu0 0.0
        %2009 = vmatpush1.msra.mxu0 0.0
        %2010 = vmatprep.subr.mxu0 0.0
        %2011 = vmatpush1.msra.mxu0 0.0
        %2012 = vmatprep.subr.mxu0 0.0
        %2013 = vmatpush1.msra.mxu0 0.0
        %2014 = vmatprep.subr.mxu0 0.0
        %2015 = vmatpush1.msra.mxu0 0.0
        %2016 = vmatprep.subr.mxu0 0.0
        %2017 = vmatpush1.msra.mxu0 0.0
        %2018 = vmatprep.subr.mxu0 0.0
        %2019 = vmatpush1.msra.mxu0 0.0
        %2020 = vmatprep.subr.mxu0 0.0
        %2021 = vmatpush1.msra.mxu0 0.0
        %2022 = vmatprep.subr.mxu0 0.0
        %2023 = vmatpush1.msra.mxu0 0.0
        %2024 = vmatprep.subr.mxu0 0.0
        %2025 = vmatpush1.msra.mxu0 0.0
        %2026 = vmatprep.subr.mxu0 0.0
        %2027 = vmatpush1.msra.mxu0 0.0
        %2028 = vmatprep.subr.mxu0 0.0
        %2029 = vmatpush1.msra.mxu0 0.0
        %2030 = vmatprep.subr.mxu0 0.0
        %2031 = vmatpush1.msra.mxu0 0.0
        %2032 = vmatprep.subr.mxu0 %v294
        %2033 = vmatpush1.msra.mxu0 %v293
        %2034 = vmatprep.subr.mxu0 0.0
        %2035 = vmatpush2.msra.mxu0 0.0
        %2036 = vmatprep.subr.mxu0 0.0
        %2037 = vmatpush2.msra.mxu0 0.0
        %2038 = vmatprep.subr.mxu0 0.0
        %2039 = vmatpush2.msra.mxu0 0.0
        %2040 = vmatprep.subr.mxu0 0.0
        %2041 = vmatpush2.msra.mxu0 0.0
        %2042 = vmatprep.subr.mxu0 0.0
        %2043 = vmatpush2.msra.mxu0 0.0
        %2044 = vmatprep.subr.mxu0 0.0
        %2045 = vmatpush2.msra.mxu0 0.0
        %2046 = vmatprep.subr.mxu0 0.0
        %2047 = vmatpush2.msra.mxu0 0.0
        %2048 = vmatprep.subr.mxu0 0.0
        %2049 = vmatpush2.msra.mxu0 0.0
        %2050 = vmatprep.subr.mxu0 0.0
        %2051 = vmatpush2.msra.mxu0 0.0
        %2052 = vmatprep.subr.mxu0 0.0
        %2053 = vmatpush2.msra.mxu0 0.0
        %2054 = vmatprep.subr.mxu0 0.0
        %2055 = vmatpush2.msra.mxu0 0.0
        %2056 = vmatprep.subr.mxu0 0.0
        %2057 = vmatpush2.msra.mxu0 0.0
        %2058 = vmatprep.subr.mxu0 0.0
        %2059 = vmatpush2.msra.mxu0 0.0
        %2060 = vmatprep.subr.mxu0 0.0
        %2061 = vmatpush2.msra.mxu0 0.0
        %2062 = vmatprep.subr.mxu0 0.0
        %2063 = vmatpush2.msra.mxu0 0.0
        %2064 = vmatprep.subr.mxu0 0.0
        %2065 = vmatpush2.msra.mxu0 0.0
        %2066 = vmatprep.mubr.f32.mxu0 0.0
        %2067 = vmatmul.mubr.f32.gmra.mxu0 %v989
        %v2068 = vpop.f32.mrf.mxu0
        %v2069 = vadd.f32 0.0, %v2068
        %v2070 = vpop.f32.mrf.mxu0
        %v2071 = vadd.f32 0.0, %v2070
        %2072 = vmatprep.mubr.f32.mxu0 0.0
        %2073 = vmatmul.mubr.f32.gmra.mxu0 %v992
        %v2074 = vpop.f32.mrf.mxu0
        %v2075 = vadd.f32 0.0, %v2074
        %v2076 = vpop.f32.mrf.mxu0
        %v2077 = vadd.f32 0.0, %v2076
        %2078 = vmatprep.mubr.f32.mxu0 0.0
        %2079 = vmatmul.mubr.f32.gmra.mxu0 %v995
        %v2080 = vpop.f32.mrf.mxu0
        %v2081 = vadd.f32 0.0, %v2080
        %v2082 = vpop.f32.mrf.mxu0
        %v2083 = vadd.f32 0.0, %v2082
        %2084 = vmatprep.mubr.f32.mxu0 0.0
        %2085 = vmatmul.mubr.f32.gmra.mxu0 %v998
        %v2086 = vpop.f32.mrf.mxu0
        %v2087 = vadd.f32 0.0, %v2086
        %v2088 = vpop.f32.mrf.mxu0
        %v2089 = vadd.f32 0.0, %v2088
        %2090 = vmatprep.mubr.f32.mxu0 0.0
        %2091 = vmatmul.mubr.f32.gmra.mxu0 %v1001
        %v2092 = vpop.f32.mrf.mxu0
        %v2093 = vadd.f32 0.0, %v2092
        %v2094 = vpop.f32.mrf.mxu0
        %v2095 = vadd.f32 0.0, %v2094
        %2096 = vmatprep.mubr.f32.mxu0 0.0
        %2097 = vmatmul.mubr.f32.gmra.mxu0 %v1004
        %v2098 = vpop.f32.mrf.mxu0
        %v2099 = vadd.f32 0.0, %v2098
        %v2100 = vpop.f32.mrf.mxu0
        %v2101 = vadd.f32 0.0, %v2100
        %2102 = vmatprep.mubr.f32.mxu0 0.0
        %2103 = vmatmul.mubr.f32.gmra.mxu0 %v1007
        %v2104 = vpop.f32.mrf.mxu0
        %v2105 = vadd.f32 0.0, %v2104
        %v2106 = vpop.f32.mrf.mxu0
        %v2107 = vadd.f32 0.0, %v2106
        %2108 = vmatprep.mubr.f32.mxu0 0.0
        %2109 = vmatmul.mubr.f32.gmra.mxu0 %v1010
        %v2110 = vpop.f32.mrf.mxu0
        %v2111 = vadd.f32 0.0, %v2110
        %v2112 = vpop.f32.mrf.mxu0
        %v2113 = vadd.f32 0.0, %v2112
        %2114 = vmatprep.mubr.f32.mxu0 0.0
        %2115 = vmatmul.mubr.f32.gmra.mxu0 %v1013
        %v2116 = vpop.f32.mrf.mxu0
        %v2117 = vadd.f32 0.0, %v2116
        %v2118 = vpop.f32.mrf.mxu0
        %v2119 = vadd.f32 0.0, %v2118
        %2120 = vmatprep.mubr.f32.mxu0 0.0
        %2121 = vmatmul.mubr.f32.gmra.mxu0 %v1016
        %v2122 = vpop.f32.mrf.mxu0
        %v2123 = vadd.f32 0.0, %v2122
        %v2124 = vpop.f32.mrf.mxu0
        %v2125 = vadd.f32 0.0, %v2124
        %2126 = vmatprep.mubr.f32.mxu0 0.0
        %2127 = vmatmul.mubr.f32.gmra.mxu0 %v1019
        %v2128 = vpop.f32.mrf.mxu0
        %v2129 = vadd.f32 0.0, %v2128
        %v2130 = vpop.f32.mrf.mxu0
        %v2131 = vadd.f32 0.0, %v2130
        %2132 = vmatprep.mubr.f32.mxu0 0.0
        %2133 = vmatmul.mubr.f32.gmra.mxu0 %v1022
        %v2134 = vpop.f32.mrf.mxu0
        %v2135 = vadd.f32 0.0, %v2134
        %v2136 = vpop.f32.mrf.mxu0
        %v2137 = vadd.f32 0.0, %v2136
        %2138 = vmatprep.mubr.f32.mxu0 0.0
        %2139 = vmatmul.mubr.f32.gmra.mxu0 %v1025
        %v2140 = vpop.f32.mrf.mxu0
        %v2141 = vadd.f32 0.0, %v2140
        %v2142 = vpop.f32.mrf.mxu0
        %v2143 = vadd.f32 0.0, %v2142
        %2144 = vmatprep.mubr.f32.mxu0 0.0
        %2145 = vmatmul.mubr.f32.gmra.mxu0 %v1028
        %v2146 = vpop.f32.mrf.mxu0
        %v2147 = vadd.f32 0.0, %v2146
        %v2148 = vpop.f32.mrf.mxu0
        %v2149 = vadd.f32 0.0, %v2148
        %2150 = vmatprep.mubr.f32.mxu0 0.0
        %2151 = vmatmul.mubr.f32.gmra.mxu0 %v1031
        %v2152 = vpop.f32.mrf.mxu0
        %v2153 = vadd.f32 0.0, %v2152
        %v2154 = vpop.f32.mrf.mxu0
        %v2155 = vadd.f32 0.0, %v2154
        %2156 = vmatprep.mubr.f32.mxu0 0.0
        %2157 = vmatmul.mubr.f32.gmra.mxu0 %v1034
        %v2158 = vpop.f32.mrf.mxu0
        %v2159 = vadd.f32 0.0, %v2158
        %v2160 = vpop.f32.mrf.mxu0
        %v2161 = vadd.f32 0.0, %v2160
        %2162 = vdwg.mxu0
        %2163 = vmatprep.subr.mxu0 0.0
        %2164 = vmatpush1.msra.mxu0 0.0
        %2165 = vmatprep.subr.mxu0 0.0
        %2166 = vmatpush1.msra.mxu0 0.0
        %2167 = vmatprep.subr.mxu0 0.0
        %2168 = vmatpush1.msra.mxu0 0.0
        %2169 = vmatprep.subr.mxu0 0.0
        %2170 = vmatpush1.msra.mxu0 0.0
        %2171 = vmatprep.subr.mxu0 0.0
        %2172 = vmatpush1.msra.mxu0 0.0
        %2173 = vmatprep.subr.mxu0 0.0
        %2174 = vmatpush1.msra.mxu0 0.0
        %2175 = vmatprep.subr.mxu0 0.0
        %2176 = vmatpush1.msra.mxu0 0.0
        %2177 = vmatprep.subr.mxu0 0.0
        %2178 = vmatpush1.msra.mxu0 0.0
        %2179 = vmatprep.subr.mxu0 0.0
        %2180 = vmatpush1.msra.mxu0 0.0
        %2181 = vmatprep.subr.mxu0 0.0
        %2182 = vmatpush1.msra.mxu0 0.0
        %2183 = vmatprep.subr.mxu0 0.0
        %2184 = vmatpush1.msra.mxu0 0.0
        %2185 = vmatprep.subr.mxu0 0.0
        %2186 = vmatpush1.msra.mxu0 0.0
        %2187 = vmatprep.subr.mxu0 0.0
        %2188 = vmatpush1.msra.mxu0 0.0
        %2189 = vmatprep.subr.mxu0 0.0
        %2190 = vmatpush1.msra.mxu0 0.0
        %2191 = vmatprep.subr.mxu0 0.0
        %2192 = vmatpush1.msra.mxu0 0.0
        %2193 = vmatprep.subr.mxu0 %v296
        %2194 = vmatpush1.msra.mxu0 %v295
        %2195 = vmatprep.subr.mxu0 0.0
        %2196 = vmatpush2.msra.mxu0 0.0
        %2197 = vmatprep.subr.mxu0 0.0
        %2198 = vmatpush2.msra.mxu0 0.0
        %2199 = vmatprep.subr.mxu0 0.0
        %2200 = vmatpush2.msra.mxu0 0.0
        %2201 = vmatprep.subr.mxu0 0.0
        %2202 = vmatpush2.msra.mxu0 0.0
        %2203 = vmatprep.subr.mxu0 0.0
        %2204 = vmatpush2.msra.mxu0 0.0
        %2205 = vmatprep.subr.mxu0 0.0
        %2206 = vmatpush2.msra.mxu0 0.0
        %2207 = vmatprep.subr.mxu0 0.0
        %2208 = vmatpush2.msra.mxu0 0.0
        %2209 = vmatprep.subr.mxu0 0.0
        %2210 = vmatpush2.msra.mxu0 0.0
        %2211 = vmatprep.subr.mxu0 0.0
        %2212 = vmatpush2.msra.mxu0 0.0
        %2213 = vmatprep.subr.mxu0 0.0
        %2214 = vmatpush2.msra.mxu0 0.0
        %2215 = vmatprep.subr.mxu0 0.0
        %2216 = vmatpush2.msra.mxu0 0.0
        %2217 = vmatprep.subr.mxu0 0.0
        %2218 = vmatpush2.msra.mxu0 0.0
        %2219 = vmatprep.subr.mxu0 0.0
        %2220 = vmatpush2.msra.mxu0 0.0
        %2221 = vmatprep.subr.mxu0 0.0
        %2222 = vmatpush2.msra.mxu0 0.0
        %2223 = vmatprep.subr.mxu0 0.0
        %2224 = vmatpush2.msra.mxu0 0.0
        %2225 = vmatprep.subr.mxu0 0.0
        %2226 = vmatpush2.msra.mxu0 0.0
        %2227 = vmatprep.mubr.f32.mxu0 0.0
        %2228 = vmatmul.mubr.f32.gmra.mxu0 %v989
        %v2229 = vpop.f32.mrf.mxu0
        %v2230 = vadd.f32 0.0, %v2229
        %v2231 = vpop.f32.mrf.mxu0
        %v2232 = vadd.f32 0.0, %v2231
        %2233 = vmatprep.mubr.f32.mxu0 0.0
        %2234 = vmatmul.mubr.f32.gmra.mxu0 %v992
        %v2235 = vpop.f32.mrf.mxu0
        %v2236 = vadd.f32 0.0, %v2235
        %v2237 = vpop.f32.mrf.mxu0
        %v2238 = vadd.f32 0.0, %v2237
        %2239 = vmatprep.mubr.f32.mxu0 0.0
        %2240 = vmatmul.mubr.f32.gmra.mxu0 %v995
        %v2241 = vpop.f32.mrf.mxu0
        %v2242 = vadd.f32 0.0, %v2241
        %v2243 = vpop.f32.mrf.mxu0
        %v2244 = vadd.f32 0.0, %v2243
        %2245 = vmatprep.mubr.f32.mxu0 0.0
        %2246 = vmatmul.mubr.f32.gmra.mxu0 %v998
        %v2247 = vpop.f32.mrf.mxu0
        %v2248 = vadd.f32 0.0, %v2247
        %v2249 = vpop.f32.mrf.mxu0
        %v2250 = vadd.f32 0.0, %v2249
        %2251 = vmatprep.mubr.f32.mxu0 0.0
        %2252 = vmatmul.mubr.f32.gmra.mxu0 %v1001
        %v2253 = vpop.f32.mrf.mxu0
        %v2254 = vadd.f32 0.0, %v2253
        %v2255 = vpop.f32.mrf.mxu0
        %v2256 = vadd.f32 0.0, %v2255
        %2257 = vmatprep.mubr.f32.mxu0 0.0
        %2258 = vmatmul.mubr.f32.gmra.mxu0 %v1004
        %v2259 = vpop.f32.mrf.mxu0
        %v2260 = vadd.f32 0.0, %v2259
        %v2261 = vpop.f32.mrf.mxu0
        %v2262 = vadd.f32 0.0, %v2261
        %2263 = vmatprep.mubr.f32.mxu0 0.0
        %2264 = vmatmul.mubr.f32.gmra.mxu0 %v1007
        %v2265 = vpop.f32.mrf.mxu0
        %v2266 = vadd.f32 0.0, %v2265
        %v2267 = vpop.f32.mrf.mxu0
        %v2268 = vadd.f32 0.0, %v2267
        %2269 = vmatprep.mubr.f32.mxu0 0.0
        %2270 = vmatmul.mubr.f32.gmra.mxu0 %v1010
        %v2271 = vpop.f32.mrf.mxu0
        %v2272 = vadd.f32 0.0, %v2271
        %v2273 = vpop.f32.mrf.mxu0
        %v2274 = vadd.f32 0.0, %v2273
        %2275 = vmatprep.mubr.f32.mxu0 0.0
        %2276 = vmatmul.mubr.f32.gmra.mxu0 %v1013
        %v2277 = vpop.f32.mrf.mxu0
        %v2278 = vadd.f32 0.0, %v2277
        %v2279 = vpop.f32.mrf.mxu0
        %v2280 = vadd.f32 0.0, %v2279
        %2281 = vmatprep.mubr.f32.mxu0 0.0
        %2282 = vmatmul.mubr.f32.gmra.mxu0 %v1016
        %v2283 = vpop.f32.mrf.mxu0
        %v2284 = vadd.f32 0.0, %v2283
        %v2285 = vpop.f32.mrf.mxu0
        %v2286 = vadd.f32 0.0, %v2285
        %2287 = vmatprep.mubr.f32.mxu0 0.0
        %2288 = vmatmul.mubr.f32.gmra.mxu0 %v1019
        %v2289 = vpop.f32.mrf.mxu0
        %v2290 = vadd.f32 0.0, %v2289
        %v2291 = vpop.f32.mrf.mxu0
        %v2292 = vadd.f32 0.0, %v2291
        %2293 = vmatprep.mubr.f32.mxu0 0.0
        %2294 = vmatmul.mubr.f32.gmra.mxu0 %v1022
        %v2295 = vpop.f32.mrf.mxu0
        %v2296 = vadd.f32 0.0, %v2295
        %v2297 = vpop.f32.mrf.mxu0
        %v2298 = vadd.f32 0.0, %v2297
        %2299 = vmatprep.mubr.f32.mxu0 0.0
        %2300 = vmatmul.mubr.f32.gmra.mxu0 %v1025
        %v2301 = vpop.f32.mrf.mxu0
        %v2302 = vadd.f32 0.0, %v2301
        %v2303 = vpop.f32.mrf.mxu0
        %v2304 = vadd.f32 0.0, %v2303
        %2305 = vmatprep.mubr.f32.mxu0 0.0
        %2306 = vmatmul.mubr.f32.gmra.mxu0 %v1028
        %v2307 = vpop.f32.mrf.mxu0
        %v2308 = vadd.f32 0.0, %v2307
        %v2309 = vpop.f32.mrf.mxu0
        %v2310 = vadd.f32 0.0, %v2309
        %2311 = vmatprep.mubr.f32.mxu0 0.0
        %2312 = vmatmul.mubr.f32.gmra.mxu0 %v1031
        %v2313 = vpop.f32.mrf.mxu0
        %v2314 = vadd.f32 0.0, %v2313
        %v2315 = vpop.f32.mrf.mxu0
        %v2316 = vadd.f32 0.0, %v2315
        %2317 = vmatprep.mubr.f32.mxu0 0.0
        %2318 = vmatmul.mubr.f32.gmra.mxu0 %v1034
        %v2319 = vpop.f32.mrf.mxu0
        %v2320 = vadd.f32 0.0, %v2319
        %v2321 = vpop.f32.mrf.mxu0
        %v2322 = vadd.f32 0.0, %v2321
        %2323 = vdwg.mxu0
        %v2324 = vtanh.pop %v1103
        %v2325 = vtanh.pop %v1105
        %v2326 = vtanh.pop %v1264
        %v2327 = vtanh.pop %v1266
        %v2328 = vtanh.pop %v1425
        %v2329 = vtanh.pop %v1427
        %v2330 = vtanh.pop %v1586
        %v2331 = vtanh.pop %v1588
        %v2332 = vtanh.pop %v1747
        %v2333 = vtanh.pop %v1749
        %v2334 = vtanh.pop %v1908
        %v2335 = vtanh.pop %v1910
        %v2336 = vtanh.pop %v2069
        %v2337 = vtanh.pop %v2071
        %v2338 = vtanh.pop %v2230
        %v2339 = vtanh.pop %v2232
        %v2340 = vtanh.pop %v1109
        %v2341 = vtanh.pop %v1111
        %v2342 = vtanh.pop %v1270
        %v2343 = vtanh.pop %v1272
        %v2344 = vtanh.pop %v1431
        %v2345 = vtanh.pop %v1433
        %v2346 = vtanh.pop %v1592
        %v2347 = vtanh.pop %v1594
        %v2348 = vtanh.pop %v1753
        %v2349 = vtanh.pop %v1755
        %v2350 = vtanh.pop %v1914
        %v2351 = vtanh.pop %v1916
        %v2352 = vtanh.pop %v2075
        %v2353 = vtanh.pop %v2077
        %v2354 = vtanh.pop %v2236
        %v2355 = vtanh.pop %v2238
        %v2356 = vtanh.pop %v1115
        %v2357 = vtanh.pop %v1117
        %v2358 = vtanh.pop %v1276
        %v2359 = vtanh.pop %v1278
        %v2360 = vtanh.pop %v1437
        %v2361 = vtanh.pop %v1439
        %v2362 = vtanh.pop %v1598
        %v2363 = vtanh.pop %v1600
        %v2364 = vtanh.pop %v1759
        %v2365 = vtanh.pop %v1761
        %v2366 = vtanh.pop %v1920
        %v2367 = vtanh.pop %v1922
        %v2368 = vtanh.pop %v2081
        %v2369 = vtanh.pop %v2083
        %v2370 = vtanh.pop %v2242
        %v2371 = vtanh.pop %v2244
        %v2372 = vtanh.pop %v1121
        %v2373 = vtanh.pop %v1123
        %v2374 = vtanh.pop %v1282
        %v2375 = vtanh.pop %v1284
        %v2376 = vtanh.pop %v1443
        %v2377 = vtanh.pop %v1445
        %v2378 = vtanh.pop %v1604
        %v2379 = vtanh.pop %v1606
        %v2380 = vtanh.pop %v1765
        %v2381 = vtanh.pop %v1767
        %v2382 = vtanh.pop %v1926
        %v2383 = vtanh.pop %v1928
        %v2384 = vtanh.pop %v2087
        %v2385 = vtanh.pop %v2089
        %v2386 = vtanh.pop %v2248
        %v2387 = vtanh.pop %v2250
        %v2388 = vtanh.pop %v1127
        %v2389 = vtanh.pop %v1129
        %v2390 = vtanh.pop %v1288
        %v2391 = vtanh.pop %v1290
        %v2392 = vtanh.pop %v1449
        %v2393 = vtanh.pop %v1451
        %v2394 = vtanh.pop %v1610
        %v2395 = vtanh.pop %v1612
        %v2396 = vtanh.pop %v1771
        %v2397 = vtanh.pop %v1773
        %v2398 = vtanh.pop %v1932
        %v2399 = vtanh.pop %v1934
        %v2400 = vtanh.pop %v2093
        %v2401 = vtanh.pop %v2095
        %v2402 = vtanh.pop %v2254
        %v2403 = vtanh.pop %v2256
        %v2404 = vtanh.pop %v1133
        %v2405 = vtanh.pop %v1135
        %v2406 = vtanh.pop %v1294
        %v2407 = vtanh.pop %v1296
        %v2408 = vtanh.pop %v1455
        %v2409 = vtanh.pop %v1457
        %v2410 = vtanh.pop %v1616
        %v2411 = vtanh.pop %v1618
        %v2412 = vtanh.pop %v1777
        %v2413 = vtanh.pop %v1779
        %v2414 = vtanh.pop %v1938
        %v2415 = vtanh.pop %v1940
        %v2416 = vtanh.pop %v2099
        %v2417 = vtanh.pop %v2101
        %v2418 = vtanh.pop %v2260
        %v2419 = vtanh.pop %v2262
        %v2420 = vtanh.pop %v1139
        %v2421 = vtanh.pop %v1141
        %v2422 = vtanh.pop %v1300
        %v2423 = vtanh.pop %v1302
        %v2424 = vtanh.pop %v1461
        %v2425 = vtanh.pop %v1463
        %v2426 = vtanh.pop %v1622
        %v2427 = vtanh.pop %v1624
        %v2428 = vtanh.pop %v1783
        %v2429 = vtanh.pop %v1785
        %v2430 = vtanh.pop %v1944
        %v2431 = vtanh.pop %v1946
        %v2432 = vtanh.pop %v2105
        %v2433 = vtanh.pop %v2107
        %v2434 = vtanh.pop %v2266
        %v2435 = vtanh.pop %v2268
        %v2436 = vtanh.pop %v1145
        %v2437 = vtanh.pop %v1147
        %v2438 = vtanh.pop %v1306
        %v2439 = vtanh.pop %v1308
        %v2440 = vtanh.pop %v1467
        %v2441 = vtanh.pop %v1469
        %v2442 = vtanh.pop %v1628
        %v2443 = vtanh.pop %v1630
        %v2444 = vtanh.pop %v1789
        %v2445 = vtanh.pop %v1791
        %v2446 = vtanh.pop %v1950
        %v2447 = vtanh.pop %v1952
        %v2448 = vtanh.pop %v2111
        %v2449 = vtanh.pop %v2113
        %v2450 = vtanh.pop %v2272
        %v2451 = vtanh.pop %v2274
        %v2452 = vtanh.pop %v1151
        %v2453 = vtanh.pop %v1153
        %v2454 = vtanh.pop %v1312
        %v2455 = vtanh.pop %v1314
        %v2456 = vtanh.pop %v1473
        %v2457 = vtanh.pop %v1475
        %v2458 = vtanh.pop %v1634
        %v2459 = vtanh.pop %v1636
        %v2460 = vtanh.pop %v1795
        %v2461 = vtanh.pop %v1797
        %v2462 = vtanh.pop %v1956
        %v2463 = vtanh.pop %v1958
        %v2464 = vtanh.pop %v2117
        %v2465 = vtanh.pop %v2119
        %v2466 = vtanh.pop %v2278
        %v2467 = vtanh.pop %v2280
        %v2468 = vtanh.pop %v1157
        %v2469 = vtanh.pop %v1159
        %v2470 = vtanh.pop %v1318
        %v2471 = vtanh.pop %v1320
        %v2472 = vtanh.pop %v1479
        %v2473 = vtanh.pop %v1481
        %v2474 = vtanh.pop %v1640
        %v2475 = vtanh.pop %v1642
        %v2476 = vtanh.pop %v1801
        %v2477 = vtanh.pop %v1803
        %v2478 = vtanh.pop %v1962
        %v2479 = vtanh.pop %v1964
        %v2480 = vtanh.pop %v2123
        %v2481 = vtanh.pop %v2125
        %v2482 = vtanh.pop %v2284
        %v2483 = vtanh.pop %v2286
        %v2484 = vtanh.pop %v1163
        %v2485 = vtanh.pop %v1165
        %v2486 = vtanh.pop %v1324
        %v2487 = vtanh.pop %v1326
        %v2488 = vtanh.pop %v1485
        %v2489 = vtanh.pop %v1487
        %v2490 = vtanh.pop %v1646
        %v2491 = vtanh.pop %v1648
        %v2492 = vtanh.pop %v1807
        %v2493 = vtanh.pop %v1809
        %v2494 = vtanh.pop %v1968
        %v2495 = vtanh.pop %v1970
        %v2496 = vtanh.pop %v2129
        %v2497 = vtanh.pop %v2131
        %v2498 = vtanh.pop %v2290
        %v2499 = vtanh.pop %v2292
        %v2500 = vtanh.pop %v1169
        %v2501 = vtanh.pop %v1171
        %v2502 = vtanh.pop %v1330
        %v2503 = vtanh.pop %v1332
        %v2504 = vtanh.pop %v1491
        %v2505 = vtanh.pop %v1493
        %v2506 = vtanh.pop %v1652
        %v2507 = vtanh.pop %v1654
        %v2508 = vtanh.pop %v1813
        %v2509 = vtanh.pop %v1815
        %v2510 = vtanh.pop %v1974
        %v2511 = vtanh.pop %v1976
        %v2512 = vtanh.pop %v2135
        %v2513 = vtanh.pop %v2137
        %v2514 = vtanh.pop %v2296
        %v2515 = vtanh.pop %v2298
        %v2516 = vtanh.pop %v1175
        %v2517 = vtanh.pop %v1177
        %v2518 = vtanh.pop %v1336
        %v2519 = vtanh.pop %v1338
        %v2520 = vtanh.pop %v1497
        %v2521 = vtanh.pop %v1499
        %v2522 = vtanh.pop %v1658
        %v2523 = vtanh.pop %v1660
        %v2524 = vtanh.pop %v1819
        %v2525 = vtanh.pop %v1821
        %v2526 = vtanh.pop %v1980
        %v2527 = vtanh.pop %v1982
        %v2528 = vtanh.pop %v2141
        %v2529 = vtanh.pop %v2143
        %v2530 = vtanh.pop %v2302
        %v2531 = vtanh.pop %v2304
        %v2532 = vtanh.pop %v1181
        %v2533 = vtanh.pop %v1183
        %v2534 = vtanh.pop %v1342
        %v2535 = vtanh.pop %v1344
        %v2536 = vtanh.pop %v1503
        %v2537 = vtanh.pop %v1505
        %v2538 = vtanh.pop %v1664
        %v2539 = vtanh.pop %v1666
        %v2540 = vtanh.pop %v1825
        %v2541 = vtanh.pop %v1827
        %v2542 = vtanh.pop %v1986
        %v2543 = vtanh.pop %v1988
        %v2544 = vtanh.pop %v2147
        %v2545 = vtanh.pop %v2149
        %v2546 = vtanh.pop %v2308
        %v2547 = vtanh.pop %v2310
        %v2548 = vtanh.pop %v1187
        %v2549 = vtanh.pop %v1189
        %v2550 = vtanh.pop %v1348
        %v2551 = vtanh.pop %v1350
        %v2552 = vtanh.pop %v1509
        %v2553 = vtanh.pop %v1511
        %v2554 = vtanh.pop %v1670
        %v2555 = vtanh.pop %v1672
        %v2556 = vtanh.pop %v1831
        %v2557 = vtanh.pop %v1833
        %v2558 = vtanh.pop %v1992
        %v2559 = vtanh.pop %v1994
        %v2560 = vtanh.pop %v2153
        %v2561 = vtanh.pop %v2155
        %v2562 = vtanh.pop %v2314
        %v2563 = vtanh.pop %v2316
        %v2564 = vtanh.pop %v1193
        %v2565 = vtanh.pop %v1195
        %v2566 = vtanh.pop %v1354
        %v2567 = vtanh.pop %v1356
        %v2568 = vtanh.pop %v1515
        %v2569 = vtanh.pop %v1517
        %v2570 = vtanh.pop %v1676
        %v2571 = vtanh.pop %v1678
        %v2572 = vtanh.pop %v1837
        %v2573 = vtanh.pop %v1839
        %v2574 = vtanh.pop %v1998
        %v2575 = vtanh.pop %v2000
        %v2576 = vtanh.pop %v2159
        %v2577 = vtanh.pop %v2161
        %v2578 = vtanh.pop %v2320
        %v2579 = vtanh.pop %v2322
        %v2580 = vld [vmem:[#allocation2] sm:$0xff]
        %v2581 = vld [vmem:[#allocation2 + $0x8] sm:$0xff]
        %v2582 = vld [vmem:[#allocation2 + $0x10] sm:$0xff]
        %v2583 = vld [vmem:[#allocation2 + $0x18] sm:$0xff]
        %v2584 = vld [vmem:[#allocation2 + $0x20] sm:$0xff]
        %v2585 = vld [vmem:[#allocation2 + $0x28] sm:$0xff]
        %v2586 = vld [vmem:[#allocation2 + $0x30] sm:$0xff]
        %v2587 = vld [vmem:[#allocation2 + $0x38] sm:$0xff]
        %v2588 = vld [vmem:[#allocation2 + $0x40] sm:$0xff]
        %v2589 = vld [vmem:[#allocation2 + $0x48] sm:$0xff]
        %v2590 = vld [vmem:[#allocation2 + $0x50] sm:$0xff]
        %v2591 = vld [vmem:[#allocation2 + $0x58] sm:$0xff]
        %v2592 = vld [vmem:[#allocation2 + $0x60] sm:$0xff]
        %v2593 = vld [vmem:[#allocation2 + $0x68] sm:$0xff]
        %v2594 = vld [vmem:[#allocation2 + $0x70] sm:$0xff]
        %v2595 = vld [vmem:[#allocation2 + $0x78] sm:$0xff]
        %v2596 = vld [vmem:[%s3] sm:$0xff]
        %v2597 = vld [vmem:[%s3 + $0x8] sm:$0xff]
        %v2598 = vld [vmem:[%s3 + $0x10] sm:$0xff]
        %v2599 = vld [vmem:[%s3 + $0x18] sm:$0xff]
        %v2600 = vld [vmem:[%s3 + $0x20] sm:$0xff]
        %v2601 = vld [vmem:[%s3 + $0x28] sm:$0xff]
        %v2602 = vld [vmem:[%s3 + $0x30] sm:$0xff]
        %v2603 = vld [vmem:[%s3 + $0x38] sm:$0xff]
        %v2604 = vld [vmem:[%s3 + $0x40] sm:$0xff]
        %v2605 = vld [vmem:[%s3 + $0x48] sm:$0xff]
        %v2606 = vld [vmem:[%s3 + $0x50] sm:$0xff]
        %v2607 = vld [vmem:[%s3 + $0x58] sm:$0xff]
        %v2608 = vld [vmem:[%s3 + $0x60] sm:$0xff]
        %v2609 = vld [vmem:[%s3 + $0x68] sm:$0xff]
        %v2610 = vld [vmem:[%s3 + $0x70] sm:$0xff]
        %v2611 = vld [vmem:[%s3 + $0x78] sm:$0xff]
        %2613 = vset.pattern.permute.xlu0 0
        %2614 = vperm.xlu0 %2613, %v2596
        %v2615 = vpop.permute.xlu0 %2614
        %2618 = vset.pattern.permute.xlu0 0
        %2619 = vperm.xlu0 %2618, %v2597
        %v2620 = vpop.permute.xlu0 %2619
        %2623 = vset.pattern.permute.xlu0 0
        %2624 = vperm.xlu0 %2623, %v2598
        %v2625 = vpop.permute.xlu0 %2624
        %2628 = vset.pattern.permute.xlu0 0
        %2629 = vperm.xlu0 %2628, %v2599
        %v2630 = vpop.permute.xlu0 %2629
        %2633 = vset.pattern.permute.xlu0 0
        %2634 = vperm.xlu0 %2633, %v2600
        %v2635 = vpop.permute.xlu0 %2634
        %2638 = vset.pattern.permute.xlu0 0
        %2639 = vperm.xlu0 %2638, %v2601
        %v2640 = vpop.permute.xlu0 %2639
        %2643 = vset.pattern.permute.xlu0 0
        %2644 = vperm.xlu0 %2643, %v2602
        %v2645 = vpop.permute.xlu0 %2644
        %2648 = vset.pattern.permute.xlu0 0
        %2649 = vperm.xlu0 %2648, %v2603
        %v2650 = vpop.permute.xlu0 %2649
        %2653 = vset.pattern.permute.xlu0 0
        %2654 = vperm.xlu0 %2653, %v2604
        %v2655 = vpop.permute.xlu0 %2654
        %2658 = vset.pattern.permute.xlu0 0
        %2659 = vperm.xlu0 %2658, %v2605
        %v2660 = vpop.permute.xlu0 %2659
        %2663 = vset.pattern.permute.xlu0 0
        %2664 = vperm.xlu0 %2663, %v2606
        %v2665 = vpop.permute.xlu0 %2664
        %2668 = vset.pattern.permute.xlu0 0
        %2669 = vperm.xlu0 %2668, %v2607
        %v2670 = vpop.permute.xlu0 %2669
        %2673 = vset.pattern.permute.xlu0 0
        %2674 = vperm.xlu0 %2673, %v2608
        %v2675 = vpop.permute.xlu0 %2674
        %2678 = vset.pattern.permute.xlu0 0
        %2679 = vperm.xlu0 %2678, %v2609
        %v2680 = vpop.permute.xlu0 %2679
        %2683 = vset.pattern.permute.xlu0 0
        %2684 = vperm.xlu0 %2683, %v2610
        %v2685 = vpop.permute.xlu0 %2684
        %2688 = vset.pattern.permute.xlu0 0
        %2689 = vperm.xlu0 %2688, %v2611
        %v2690 = vpop.permute.xlu0 %2689
        %2692 = vmatprep.subr.mxu0 %v2565
        %2693 = vmatpush1.msra.mxu0 %v2564
        %2694 = vmatprep.subr.mxu0 %v2549
        %2695 = vmatpush1.msra.mxu0 %v2548
        %2696 = vmatprep.subr.mxu0 %v2533
        %2697 = vmatpush1.msra.mxu0 %v2532
        %2698 = vmatprep.subr.mxu0 %v2517
        %2699 = vmatpush1.msra.mxu0 %v2516
        %2700 = vmatprep.subr.mxu0 %v2501
        %2701 = vmatpush1.msra.mxu0 %v2500
        %2702 = vmatprep.subr.mxu0 %v2485
        %2703 = vmatpush1.msra.mxu0 %v2484
        %2704 = vmatprep.subr.mxu0 %v2469
        %2705 = vmatpush1.msra.mxu0 %v2468
        %2706 = vmatprep.subr.mxu0 %v2453
        %2707 = vmatpush1.msra.mxu0 %v2452
        %2708 = vmatprep.subr.mxu0 %v2437
        %2709 = vmatpush1.msra.mxu0 %v2436
        %2710 = vmatprep.subr.mxu0 %v2421
        %2711 = vmatpush1.msra.mxu0 %v2420
        %2712 = vmatprep.subr.mxu0 %v2405
        %2713 = vmatpush1.msra.mxu0 %v2404
        %2714 = vmatprep.subr.mxu0 %v2389
        %2715 = vmatpush1.msra.mxu0 %v2388
        %2716 = vmatprep.subr.mxu0 %v2373
        %2717 = vmatpush1.msra.mxu0 %v2372
        %2718 = vmatprep.subr.mxu0 %v2357
        %2719 = vmatpush1.msra.mxu0 %v2356
        %2720 = vmatprep.subr.mxu0 %v2341
        %2721 = vmatpush1.msra.mxu0 %v2340
        %2722 = vmatprep.subr.mxu0 %v2325
        %2723 = vmatpush1.msra.mxu0 %v2324
        %2724 = vmatprep.subr.mxu0 0.0
        %2725 = vmatpush2.msra.mxu0 0.0
        %2726 = vmatprep.subr.mxu0 0.0
        %2727 = vmatpush2.msra.mxu0 0.0
        %2728 = vmatprep.subr.mxu0 0.0
        %2729 = vmatpush2.msra.mxu0 0.0
        %2730 = vmatprep.subr.mxu0 0.0
        %2731 = vmatpush2.msra.mxu0 0.0
        %2732 = vmatprep.subr.mxu0 0.0
        %2733 = vmatpush2.msra.mxu0 0.0
        %2734 = vmatprep.subr.mxu0 0.0
        %2735 = vmatpush2.msra.mxu0 0.0
        %2736 = vmatprep.subr.mxu0 0.0
        %2737 = vmatpush2.msra.mxu0 0.0
        %2738 = vmatprep.subr.mxu0 0.0
        %2739 = vmatpush2.msra.mxu0 0.0
        %2740 = vmatprep.subr.mxu0 0.0
        %2741 = vmatpush2.msra.mxu0 0.0
        %2742 = vmatprep.subr.mxu0 0.0
        %2743 = vmatpush2.msra.mxu0 0.0
        %2744 = vmatprep.subr.mxu0 0.0
        %2745 = vmatpush2.msra.mxu0 0.0
        %2746 = vmatprep.subr.mxu0 0.0
        %2747 = vmatpush2.msra.mxu0 0.0
        %2748 = vmatprep.subr.mxu0 0.0
        %2749 = vmatpush2.msra.mxu0 0.0
        %2750 = vmatprep.subr.mxu0 0.0
        %2751 = vmatpush2.msra.mxu0 0.0
        %2752 = vmatprep.subr.mxu0 0.0
        %2753 = vmatpush2.msra.mxu0 0.0
        %2754 = vmatprep.subr.mxu0 0.0
        %2755 = vmatpush2.msra.mxu0 0.0
        %2756 = vmatprep.mubr.f32.mxu0 0.0
        %2757 = vmatmul.mubr.f32.gmra.mxu0 %v2580
        %v2758 = vpop.f32.mrf.mxu0
        %v2759 = vadd.f32 %v2615, %v2758
        %v2760 = vpop.f32.mrf.mxu0
        %v2761 = vadd.f32 %v2615, %v2760
        %2762 = vmatprep.mubr.f32.mxu0 0.0
        %2763 = vmatmul.mubr.f32.gmra.mxu0 %v2581
        %v2764 = vpop.f32.mrf.mxu0
        %v2765 = vadd.f32 %v2620, %v2764
        %v2766 = vpop.f32.mrf.mxu0
        %v2767 = vadd.f32 %v2620, %v2766
        %2768 = vmatprep.mubr.f32.mxu0 0.0
        %2769 = vmatmul.mubr.f32.gmra.mxu0 %v2582
        %v2770 = vpop.f32.mrf.mxu0
        %v2771 = vadd.f32 %v2625, %v2770
        %v2772 = vpop.f32.mrf.mxu0
        %v2773 = vadd.f32 %v2625, %v2772
        %2774 = vmatprep.mubr.f32.mxu0 0.0
        %2775 = vmatmul.mubr.f32.gmra.mxu0 %v2583
        %v2776 = vpop.f32.mrf.mxu0
        %v2777 = vadd.f32 %v2630, %v2776
        %v2778 = vpop.f32.mrf.mxu0
        %v2779 = vadd.f32 %v2630, %v2778
        %2780 = vmatprep.mubr.f32.mxu0 0.0
        %2781 = vmatmul.mubr.f32.gmra.mxu0 %v2584
        %v2782 = vpop.f32.mrf.mxu0
        %v2783 = vadd.f32 %v2635, %v2782
        %v2784 = vpop.f32.mrf.mxu0
        %v2785 = vadd.f32 %v2635, %v2784
        %2786 = vmatprep.mubr.f32.mxu0 0.0
        %2787 = vmatmul.mubr.f32.gmra.mxu0 %v2585
        %v2788 = vpop.f32.mrf.mxu0
        %v2789 = vadd.f32 %v2640, %v2788
        %v2790 = vpop.f32.mrf.mxu0
        %v2791 = vadd.f32 %v2640, %v2790
        %2792 = vmatprep.mubr.f32.mxu0 0.0
        %2793 = vmatmul.mubr.f32.gmra.mxu0 %v2586
        %v2794 = vpop.f32.mrf.mxu0
        %v2795 = vadd.f32 %v2645, %v2794
        %v2796 = vpop.f32.mrf.mxu0
        %v2797 = vadd.f32 %v2645, %v2796
        %2798 = vmatprep.mubr.f32.mxu0 0.0
        %2799 = vmatmul.mubr.f32.gmra.mxu0 %v2587
        %v2800 = vpop.f32.mrf.mxu0
        %v2801 = vadd.f32 %v2650, %v2800
        %v2802 = vpop.f32.mrf.mxu0
        %v2803 = vadd.f32 %v2650, %v2802
        %2804 = vmatprep.mubr.f32.mxu0 0.0
        %2805 = vmatmul.mubr.f32.gmra.mxu0 %v2588
        %v2806 = vpop.f32.mrf.mxu0
        %v2807 = vadd.f32 %v2655, %v2806
        %v2808 = vpop.f32.mrf.mxu0
        %v2809 = vadd.f32 %v2655, %v2808
        %2810 = vmatprep.mubr.f32.mxu0 0.0
        %2811 = vmatmul.mubr.f32.gmra.mxu0 %v2589
        %v2812 = vpop.f32.mrf.mxu0
        %v2813 = vadd.f32 %v2660, %v2812
        %v2814 = vpop.f32.mrf.mxu0
        %v2815 = vadd.f32 %v2660, %v2814
        %2816 = vmatprep.mubr.f32.mxu0 0.0
        %2817 = vmatmul.mubr.f32.gmra.mxu0 %v2590
        %v2818 = vpop.f32.mrf.mxu0
        %v2819 = vadd.f32 %v2665, %v2818
        %v2820 = vpop.f32.mrf.mxu0
        %v2821 = vadd.f32 %v2665, %v2820
        %2822 = vmatprep.mubr.f32.mxu0 0.0
        %2823 = vmatmul.mubr.f32.gmra.mxu0 %v2591
        %v2824 = vpop.f32.mrf.mxu0
        %v2825 = vadd.f32 %v2670, %v2824
        %v2826 = vpop.f32.mrf.mxu0
        %v2827 = vadd.f32 %v2670, %v2826
        %2828 = vmatprep.mubr.f32.mxu0 0.0
        %2829 = vmatmul.mubr.f32.gmra.mxu0 %v2592
        %v2830 = vpop.f32.mrf.mxu0
        %v2831 = vadd.f32 %v2675, %v2830
        %v2832 = vpop.f32.mrf.mxu0
        %v2833 = vadd.f32 %v2675, %v2832
        %2834 = vmatprep.mubr.f32.mxu0 0.0
        %2835 = vmatmul.mubr.f32.gmra.mxu0 %v2593
        %v2836 = vpop.f32.mrf.mxu0
        %v2837 = vadd.f32 %v2680, %v2836
        %v2838 = vpop.f32.mrf.mxu0
        %v2839 = vadd.f32 %v2680, %v2838
        %2840 = vmatprep.mubr.f32.mxu0 0.0
        %2841 = vmatmul.mubr.f32.gmra.mxu0 %v2594
        %v2842 = vpop.f32.mrf.mxu0
        %v2843 = vadd.f32 %v2685, %v2842
        %v2844 = vpop.f32.mrf.mxu0
        %v2845 = vadd.f32 %v2685, %v2844
        %2846 = vmatprep.mubr.f32.mxu0 0.0
        %2847 = vmatmul.mubr.f32.gmra.mxu0 %v2595
        %v2848 = vpop.f32.mrf.mxu0
        %v2849 = vadd.f32 %v2690, %v2848
        %v2850 = vpop.f32.mrf.mxu0
        %v2851 = vadd.f32 %v2690, %v2850
        %2852 = vdwg.mxu0
        %2853 = vmatprep.subr.mxu0 %v2567
        %2854 = vmatpush1.msra.mxu0 %v2566
        %2855 = vmatprep.subr.mxu0 %v2551
        %2856 = vmatpush1.msra.mxu0 %v2550
        %2857 = vmatprep.subr.mxu0 %v2535
        %2858 = vmatpush1.msra.mxu0 %v2534
        %2859 = vmatprep.subr.mxu0 %v2519
        %2860 = vmatpush1.msra.mxu0 %v2518
        %2861 = vmatprep.subr.mxu0 %v2503
        %2862 = vmatpush1.msra.mxu0 %v2502
        %2863 = vmatprep.subr.mxu0 %v2487
        %2864 = vmatpush1.msra.mxu0 %v2486
        %2865 = vmatprep.subr.mxu0 %v2471
        %2866 = vmatpush1.msra.mxu0 %v2470
        %2867 = vmatprep.subr.mxu0 %v2455
        %2868 = vmatpush1.msra.mxu0 %v2454
        %2869 = vmatprep.subr.mxu0 %v2439
        %2870 = vmatpush1.msra.mxu0 %v2438
        %2871 = vmatprep.subr.mxu0 %v2423
        %2872 = vmatpush1.msra.mxu0 %v2422
        %2873 = vmatprep.subr.mxu0 %v2407
        %2874 = vmatpush1.msra.mxu0 %v2406
        %2875 = vmatprep.subr.mxu0 %v2391
        %2876 = vmatpush1.msra.mxu0 %v2390
        %2877 = vmatprep.subr.mxu0 %v2375
        %2878 = vmatpush1.msra.mxu0 %v2374
        %2879 = vmatprep.subr.mxu0 %v2359
        %2880 = vmatpush1.msra.mxu0 %v2358
        %2881 = vmatprep.subr.mxu0 %v2343
        %2882 = vmatpush1.msra.mxu0 %v2342
        %2883 = vmatprep.subr.mxu0 %v2327
        %2884 = vmatpush1.msra.mxu0 %v2326
        %2885 = vmatprep.subr.mxu0 0.0
        %2886 = vmatpush2.msra.mxu0 0.0
        %2887 = vmatprep.subr.mxu0 0.0
        %2888 = vmatpush2.msra.mxu0 0.0
        %2889 = vmatprep.subr.mxu0 0.0
        %2890 = vmatpush2.msra.mxu0 0.0
        %2891 = vmatprep.subr.mxu0 0.0
        %2892 = vmatpush2.msra.mxu0 0.0
        %2893 = vmatprep.subr.mxu0 0.0
        %2894 = vmatpush2.msra.mxu0 0.0
        %2895 = vmatprep.subr.mxu0 0.0
        %2896 = vmatpush2.msra.mxu0 0.0
        %2897 = vmatprep.subr.mxu0 0.0
        %2898 = vmatpush2.msra.mxu0 0.0
        %2899 = vmatprep.subr.mxu0 0.0
        %2900 = vmatpush2.msra.mxu0 0.0
        %2901 = vmatprep.subr.mxu0 0.0
        %2902 = vmatpush2.msra.mxu0 0.0
        %2903 = vmatprep.subr.mxu0 0.0
        %2904 = vmatpush2.msra.mxu0 0.0
        %2905 = vmatprep.subr.mxu0 0.0
        %2906 = vmatpush2.msra.mxu0 0.0
        %2907 = vmatprep.subr.mxu0 0.0
        %2908 = vmatpush2.msra.mxu0 0.0
        %2909 = vmatprep.subr.mxu0 0.0
        %2910 = vmatpush2.msra.mxu0 0.0
        %2911 = vmatprep.subr.mxu0 0.0
        %2912 = vmatpush2.msra.mxu0 0.0
        %2913 = vmatprep.subr.mxu0 0.0
        %2914 = vmatpush2.msra.mxu0 0.0
        %2915 = vmatprep.subr.mxu0 0.0
        %2916 = vmatpush2.msra.mxu0 0.0
        %2917 = vmatprep.mubr.f32.mxu0 0.0
        %2918 = vmatmul.mubr.f32.gmra.mxu0 %v2580
        %v2919 = vpop.f32.mrf.mxu0
        %v2920 = vadd.f32 %v2615, %v2919
        %v2921 = vpop.f32.mrf.mxu0
        %v2922 = vadd.f32 %v2615, %v2921
        %2923 = vmatprep.mubr.f32.mxu0 0.0
        %2924 = vmatmul.mubr.f32.gmra.mxu0 %v2581
        %v2925 = vpop.f32.mrf.mxu0
        %v2926 = vadd.f32 %v2620, %v2925
        %v2927 = vpop.f32.mrf.mxu0
        %v2928 = vadd.f32 %v2620, %v2927
        %2929 = vmatprep.mubr.f32.mxu0 0.0
        %2930 = vmatmul.mubr.f32.gmra.mxu0 %v2582
        %v2931 = vpop.f32.mrf.mxu0
        %v2932 = vadd.f32 %v2625, %v2931
        %v2933 = vpop.f32.mrf.mxu0
        %v2934 = vadd.f32 %v2625, %v2933
        %2935 = vmatprep.mubr.f32.mxu0 0.0
        %2936 = vmatmul.mubr.f32.gmra.mxu0 %v2583
        %v2937 = vpop.f32.mrf.mxu0
        %v2938 = vadd.f32 %v2630, %v2937
        %v2939 = vpop.f32.mrf.mxu0
        %v2940 = vadd.f32 %v2630, %v2939
        %2941 = vmatprep.mubr.f32.mxu0 0.0
        %2942 = vmatmul.mubr.f32.gmra.mxu0 %v2584
        %v2943 = vpop.f32.mrf.mxu0
        %v2944 = vadd.f32 %v2635, %v2943
        %v2945 = vpop.f32.mrf.mxu0
        %v2946 = vadd.f32 %v2635, %v2945
        %2947 = vmatprep.mubr.f32.mxu0 0.0
        %2948 = vmatmul.mubr.f32.gmra.mxu0 %v2585
        %v2949 = vpop.f32.mrf.mxu0
        %v2950 = vadd.f32 %v2640, %v2949
        %v2951 = vpop.f32.mrf.mxu0
        %v2952 = vadd.f32 %v2640, %v2951
        %2953 = vmatprep.mubr.f32.mxu0 0.0
        %2954 = vmatmul.mubr.f32.gmra.mxu0 %v2586
        %v2955 = vpop.f32.mrf.mxu0
        %v2956 = vadd.f32 %v2645, %v2955
        %v2957 = vpop.f32.mrf.mxu0
        %v2958 = vadd.f32 %v2645, %v2957
        %2959 = vmatprep.mubr.f32.mxu0 0.0
        %2960 = vmatmul.mubr.f32.gmra.mxu0 %v2587
        %v2961 = vpop.f32.mrf.mxu0
        %v2962 = vadd.f32 %v2650, %v2961
        %v2963 = vpop.f32.mrf.mxu0
        %v2964 = vadd.f32 %v2650, %v2963
        %2965 = vmatprep.mubr.f32.mxu0 0.0
        %2966 = vmatmul.mubr.f32.gmra.mxu0 %v2588
        %v2967 = vpop.f32.mrf.mxu0
        %v2968 = vadd.f32 %v2655, %v2967
        %v2969 = vpop.f32.mrf.mxu0
        %v2970 = vadd.f32 %v2655, %v2969
        %2971 = vmatprep.mubr.f32.mxu0 0.0
        %2972 = vmatmul.mubr.f32.gmra.mxu0 %v2589
        %v2973 = vpop.f32.mrf.mxu0
        %v2974 = vadd.f32 %v2660, %v2973
        %v2975 = vpop.f32.mrf.mxu0
        %v2976 = vadd.f32 %v2660, %v2975
        %2977 = vmatprep.mubr.f32.mxu0 0.0
        %2978 = vmatmul.mubr.f32.gmra.mxu0 %v2590
        %v2979 = vpop.f32.mrf.mxu0
        %v2980 = vadd.f32 %v2665, %v2979
        %v2981 = vpop.f32.mrf.mxu0
        %v2982 = vadd.f32 %v2665, %v2981
        %2983 = vmatprep.mubr.f32.mxu0 0.0
        %2984 = vmatmul.mubr.f32.gmra.mxu0 %v2591
        %v2985 = vpop.f32.mrf.mxu0
        %v2986 = vadd.f32 %v2670, %v2985
        %v2987 = vpop.f32.mrf.mxu0
        %v2988 = vadd.f32 %v2670, %v2987
        %2989 = vmatprep.mubr.f32.mxu0 0.0
        %2990 = vmatmul.mubr.f32.gmra.mxu0 %v2592
        %v2991 = vpop.f32.mrf.mxu0
        %v2992 = vadd.f32 %v2675, %v2991
        %v2993 = vpop.f32.mrf.mxu0
        %v2994 = vadd.f32 %v2675, %v2993
        %2995 = vmatprep.mubr.f32.mxu0 0.0
        %2996 = vmatmul.mubr.f32.gmra.mxu0 %v2593
        %v2997 = vpop.f32.mrf.mxu0
        %v2998 = vadd.f32 %v2680, %v2997
        %v2999 = vpop.f32.mrf.mxu0
        %v3000 = vadd.f32 %v2680, %v2999
        %3001 = vmatprep.mubr.f32.mxu0 0.0
        %3002 = vmatmul.mubr.f32.gmra.mxu0 %v2594
        %v3003 = vpop.f32.mrf.mxu0
        %v3004 = vadd.f32 %v2685, %v3003
        %v3005 = vpop.f32.mrf.mxu0
        %v3006 = vadd.f32 %v2685, %v3005
        %3007 = vmatprep.mubr.f32.mxu0 0.0
        %3008 = vmatmul.mubr.f32.gmra.mxu0 %v2595
        %v3009 = vpop.f32.mrf.mxu0
        %v3010 = vadd.f32 %v2690, %v3009
        %v3011 = vpop.f32.mrf.mxu0
        %v3012 = vadd.f32 %v2690, %v3011
        %3013 = vdwg.mxu0
        %3014 = vmatprep.subr.mxu0 %v2569
        %3015 = vmatpush1.msra.mxu0 %v2568
        %3016 = vmatprep.subr.mxu0 %v2553
        %3017 = vmatpush1.msra.mxu0 %v2552
        %3018 = vmatprep.subr.mxu0 %v2537
        %3019 = vmatpush1.msra.mxu0 %v2536
        %3020 = vmatprep.subr.mxu0 %v2521
        %3021 = vmatpush1.msra.mxu0 %v2520
        %3022 = vmatprep.subr.mxu0 %v2505
        %3023 = vmatpush1.msra.mxu0 %v2504
        %3024 = vmatprep.subr.mxu0 %v2489
        %3025 = vmatpush1.msra.mxu0 %v2488
        %3026 = vmatprep.subr.mxu0 %v2473
        %3027 = vmatpush1.msra.mxu0 %v2472
        %3028 = vmatprep.subr.mxu0 %v2457
        %3029 = vmatpush1.msra.mxu0 %v2456
        %3030 = vmatprep.subr.mxu0 %v2441
        %3031 = vmatpush1.msra.mxu0 %v2440
        %3032 = vmatprep.subr.mxu0 %v2425
        %3033 = vmatpush1.msra.mxu0 %v2424
        %3034 = vmatprep.subr.mxu0 %v2409
        %3035 = vmatpush1.msra.mxu0 %v2408
        %3036 = vmatprep.subr.mxu0 %v2393
        %3037 = vmatpush1.msra.mxu0 %v2392
        %3038 = vmatprep.subr.mxu0 %v2377
        %3039 = vmatpush1.msra.mxu0 %v2376
        %3040 = vmatprep.subr.mxu0 %v2361
        %3041 = vmatpush1.msra.mxu0 %v2360
        %3042 = vmatprep.subr.mxu0 %v2345
        %3043 = vmatpush1.msra.mxu0 %v2344
        %3044 = vmatprep.subr.mxu0 %v2329
        %3045 = vmatpush1.msra.mxu0 %v2328
        %3046 = vmatprep.subr.mxu0 0.0
        %3047 = vmatpush2.msra.mxu0 0.0
        %3048 = vmatprep.subr.mxu0 0.0
        %3049 = vmatpush2.msra.mxu0 0.0
        %3050 = vmatprep.subr.mxu0 0.0
        %3051 = vmatpush2.msra.mxu0 0.0
        %3052 = vmatprep.subr.mxu0 0.0
        %3053 = vmatpush2.msra.mxu0 0.0
        %3054 = vmatprep.subr.mxu0 0.0
        %3055 = vmatpush2.msra.mxu0 0.0
        %3056 = vmatprep.subr.mxu0 0.0
        %3057 = vmatpush2.msra.mxu0 0.0
        %3058 = vmatprep.subr.mxu0 0.0
        %3059 = vmatpush2.msra.mxu0 0.0
        %3060 = vmatprep.subr.mxu0 0.0
        %3061 = vmatpush2.msra.mxu0 0.0
        %3062 = vmatprep.subr.mxu0 0.0
        %3063 = vmatpush2.msra.mxu0 0.0
        %3064 = vmatprep.subr.mxu0 0.0
        %3065 = vmatpush2.msra.mxu0 0.0
        %3066 = vmatprep.subr.mxu0 0.0
        %3067 = vmatpush2.msra.mxu0 0.0
        %3068 = vmatprep.subr.mxu0 0.0
        %3069 = vmatpush2.msra.mxu0 0.0
        %3070 = vmatprep.subr.mxu0 0.0
        %3071 = vmatpush2.msra.mxu0 0.0
        %3072 = vmatprep.subr.mxu0 0.0
        %3073 = vmatpush2.msra.mxu0 0.0
        %3074 = vmatprep.subr.mxu0 0.0
        %3075 = vmatpush2.msra.mxu0 0.0
        %3076 = vmatprep.subr.mxu0 0.0
        %3077 = vmatpush2.msra.mxu0 0.0
        %3078 = vmatprep.mubr.f32.mxu0 0.0
        %3079 = vmatmul.mubr.f32.gmra.mxu0 %v2580
        %v3080 = vpop.f32.mrf.mxu0
        %v3081 = vadd.f32 %v2615, %v3080
        %v3082 = vpop.f32.mrf.mxu0
        %v3083 = vadd.f32 %v2615, %v3082
        %3084 = vmatprep.mubr.f32.mxu0 0.0
        %3085 = vmatmul.mubr.f32.gmra.mxu0 %v2581
        %v3086 = vpop.f32.mrf.mxu0
        %v3087 = vadd.f32 %v2620, %v3086
        %v3088 = vpop.f32.mrf.mxu0
        %v3089 = vadd.f32 %v2620, %v3088
        %3090 = vmatprep.mubr.f32.mxu0 0.0
        %3091 = vmatmul.mubr.f32.gmra.mxu0 %v2582
        %v3092 = vpop.f32.mrf.mxu0
        %v3093 = vadd.f32 %v2625, %v3092
        %v3094 = vpop.f32.mrf.mxu0
        %v3095 = vadd.f32 %v2625, %v3094
        %3096 = vmatprep.mubr.f32.mxu0 0.0
        %3097 = vmatmul.mubr.f32.gmra.mxu0 %v2583
        %v3098 = vpop.f32.mrf.mxu0
        %v3099 = vadd.f32 %v2630, %v3098
        %v3100 = vpop.f32.mrf.mxu0
        %v3101 = vadd.f32 %v2630, %v3100
        %3102 = vmatprep.mubr.f32.mxu0 0.0
        %3103 = vmatmul.mubr.f32.gmra.mxu0 %v2584
        %v3104 = vpop.f32.mrf.mxu0
        %v3105 = vadd.f32 %v2635, %v3104
        %v3106 = vpop.f32.mrf.mxu0
        %v3107 = vadd.f32 %v2635, %v3106
        %3108 = vmatprep.mubr.f32.mxu0 0.0
        %3109 = vmatmul.mubr.f32.gmra.mxu0 %v2585
        %v3110 = vpop.f32.mrf.mxu0
        %v3111 = vadd.f32 %v2640, %v3110
        %v3112 = vpop.f32.mrf.mxu0
        %v3113 = vadd.f32 %v2640, %v3112
        %3114 = vmatprep.mubr.f32.mxu0 0.0
        %3115 = vmatmul.mubr.f32.gmra.mxu0 %v2586
        %v3116 = vpop.f32.mrf.mxu0
        %v3117 = vadd.f32 %v2645, %v3116
        %v3118 = vpop.f32.mrf.mxu0
        %v3119 = vadd.f32 %v2645, %v3118
        %3120 = vmatprep.mubr.f32.mxu0 0.0
        %3121 = vmatmul.mubr.f32.gmra.mxu0 %v2587
        %v3122 = vpop.f32.mrf.mxu0
        %v3123 = vadd.f32 %v2650, %v3122
        %v3124 = vpop.f32.mrf.mxu0
        %v3125 = vadd.f32 %v2650, %v3124
        %3126 = vmatprep.mubr.f32.mxu0 0.0
        %3127 = vmatmul.mubr.f32.gmra.mxu0 %v2588
        %v3128 = vpop.f32.mrf.mxu0
        %v3129 = vadd.f32 %v2655, %v3128
        %v3130 = vpop.f32.mrf.mxu0
        %v3131 = vadd.f32 %v2655, %v3130
        %3132 = vmatprep.mubr.f32.mxu0 0.0
        %3133 = vmatmul.mubr.f32.gmra.mxu0 %v2589
        %v3134 = vpop.f32.mrf.mxu0
        %v3135 = vadd.f32 %v2660, %v3134
        %v3136 = vpop.f32.mrf.mxu0
        %v3137 = vadd.f32 %v2660, %v3136
        %3138 = vmatprep.mubr.f32.mxu0 0.0
        %3139 = vmatmul.mubr.f32.gmra.mxu0 %v2590
        %v3140 = vpop.f32.mrf.mxu0
        %v3141 = vadd.f32 %v2665, %v3140
        %v3142 = vpop.f32.mrf.mxu0
        %v3143 = vadd.f32 %v2665, %v3142
        %3144 = vmatprep.mubr.f32.mxu0 0.0
        %3145 = vmatmul.mubr.f32.gmra.mxu0 %v2591
        %v3146 = vpop.f32.mrf.mxu0
        %v3147 = vadd.f32 %v2670, %v3146
        %v3148 = vpop.f32.mrf.mxu0
        %v3149 = vadd.f32 %v2670, %v3148
        %3150 = vmatprep.mubr.f32.mxu0 0.0
        %3151 = vmatmul.mubr.f32.gmra.mxu0 %v2592
        %v3152 = vpop.f32.mrf.mxu0
        %v3153 = vadd.f32 %v2675, %v3152
        %v3154 = vpop.f32.mrf.mxu0
        %v3155 = vadd.f32 %v2675, %v3154
        %3156 = vmatprep.mubr.f32.mxu0 0.0
        %3157 = vmatmul.mubr.f32.gmra.mxu0 %v2593
        %v3158 = vpop.f32.mrf.mxu0
        %v3159 = vadd.f32 %v2680, %v3158
        %v3160 = vpop.f32.mrf.mxu0
        %v3161 = vadd.f32 %v2680, %v3160
        %3162 = vmatprep.mubr.f32.mxu0 0.0
        %3163 = vmatmul.mubr.f32.gmra.mxu0 %v2594
        %v3164 = vpop.f32.mrf.mxu0
        %v3165 = vadd.f32 %v2685, %v3164
        %v3166 = vpop.f32.mrf.mxu0
        %v3167 = vadd.f32 %v2685, %v3166
        %3168 = vmatprep.mubr.f32.mxu0 0.0
        %3169 = vmatmul.mubr.f32.gmra.mxu0 %v2595
        %v3170 = vpop.f32.mrf.mxu0
        %v3171 = vadd.f32 %v2690, %v3170
        %v3172 = vpop.f32.mrf.mxu0
        %v3173 = vadd.f32 %v2690, %v3172
        %3174 = vdwg.mxu0
        %3175 = vmatprep.subr.mxu0 %v2571
        %3176 = vmatpush1.msra.mxu0 %v2570
        %3177 = vmatprep.subr.mxu0 %v2555
        %3178 = vmatpush1.msra.mxu0 %v2554
        %3179 = vmatprep.subr.mxu0 %v2539
        %3180 = vmatpush1.msra.mxu0 %v2538
        %3181 = vmatprep.subr.mxu0 %v2523
        %3182 = vmatpush1.msra.mxu0 %v2522
        %3183 = vmatprep.subr.mxu0 %v2507
        %3184 = vmatpush1.msra.mxu0 %v2506
        %3185 = vmatprep.subr.mxu0 %v2491
        %3186 = vmatpush1.msra.mxu0 %v2490
        %3187 = vmatprep.subr.mxu0 %v2475
        %3188 = vmatpush1.msra.mxu0 %v2474
        %3189 = vmatprep.subr.mxu0 %v2459
        %3190 = vmatpush1.msra.mxu0 %v2458
        %3191 = vmatprep.subr.mxu0 %v2443
        %3192 = vmatpush1.msra.mxu0 %v2442
        %3193 = vmatprep.subr.mxu0 %v2427
        %3194 = vmatpush1.msra.mxu0 %v2426
        %3195 = vmatprep.subr.mxu0 %v2411
        %3196 = vmatpush1.msra.mxu0 %v2410
        %3197 = vmatprep.subr.mxu0 %v2395
        %3198 = vmatpush1.msra.mxu0 %v2394
        %3199 = vmatprep.subr.mxu0 %v2379
        %3200 = vmatpush1.msra.mxu0 %v2378
        %3201 = vmatprep.subr.mxu0 %v2363
        %3202 = vmatpush1.msra.mxu0 %v2362
        %3203 = vmatprep.subr.mxu0 %v2347
        %3204 = vmatpush1.msra.mxu0 %v2346
        %3205 = vmatprep.subr.mxu0 %v2331
        %3206 = vmatpush1.msra.mxu0 %v2330
        %3207 = vmatprep.subr.mxu0 0.0
        %3208 = vmatpush2.msra.mxu0 0.0
        %3209 = vmatprep.subr.mxu0 0.0
        %3210 = vmatpush2.msra.mxu0 0.0
        %3211 = vmatprep.subr.mxu0 0.0
        %3212 = vmatpush2.msra.mxu0 0.0
        %3213 = vmatprep.subr.mxu0 0.0
        %3214 = vmatpush2.msra.mxu0 0.0
        %3215 = vmatprep.subr.mxu0 0.0
        %3216 = vmatpush2.msra.mxu0 0.0
        %3217 = vmatprep.subr.mxu0 0.0
        %3218 = vmatpush2.msra.mxu0 0.0
        %3219 = vmatprep.subr.mxu0 0.0
        %3220 = vmatpush2.msra.mxu0 0.0
        %3221 = vmatprep.subr.mxu0 0.0
        %3222 = vmatpush2.msra.mxu0 0.0
        %3223 = vmatprep.subr.mxu0 0.0
        %3224 = vmatpush2.msra.mxu0 0.0
        %3225 = vmatprep.subr.mxu0 0.0
        %3226 = vmatpush2.msra.mxu0 0.0
        %3227 = vmatprep.subr.mxu0 0.0
        %3228 = vmatpush2.msra.mxu0 0.0
        %3229 = vmatprep.subr.mxu0 0.0
        %3230 = vmatpush2.msra.mxu0 0.0
        %3231 = vmatprep.subr.mxu0 0.0
        %3232 = vmatpush2.msra.mxu0 0.0
        %3233 = vmatprep.subr.mxu0 0.0
        %3234 = vmatpush2.msra.mxu0 0.0
        %3235 = vmatprep.subr.mxu0 0.0
        %3236 = vmatpush2.msra.mxu0 0.0
        %3237 = vmatprep.subr.mxu0 0.0
        %3238 = vmatpush2.msra.mxu0 0.0
        %3239 = vmatprep.mubr.f32.mxu0 0.0
        %3240 = vmatmul.mubr.f32.gmra.mxu0 %v2580
        %v3241 = vpop.f32.mrf.mxu0
        %v3242 = vadd.f32 %v2615, %v3241
        %v3243 = vpop.f32.mrf.mxu0
        %v3244 = vadd.f32 %v2615, %v3243
        %3245 = vmatprep.mubr.f32.mxu0 0.0
        %3246 = vmatmul.mubr.f32.gmra.mxu0 %v2581
        %v3247 = vpop.f32.mrf.mxu0
        %v3248 = vadd.f32 %v2620, %v3247
        %v3249 = vpop.f32.mrf.mxu0
        %v3250 = vadd.f32 %v2620, %v3249
        %3251 = vmatprep.mubr.f32.mxu0 0.0
        %3252 = vmatmul.mubr.f32.gmra.mxu0 %v2582
        %v3253 = vpop.f32.mrf.mxu0
        %v3254 = vadd.f32 %v2625, %v3253
        %v3255 = vpop.f32.mrf.mxu0
        %v3256 = vadd.f32 %v2625, %v3255
        %3257 = vmatprep.mubr.f32.mxu0 0.0
        %3258 = vmatmul.mubr.f32.gmra.mxu0 %v2583
        %v3259 = vpop.f32.mrf.mxu0
        %v3260 = vadd.f32 %v2630, %v3259
        %v3261 = vpop.f32.mrf.mxu0
        %v3262 = vadd.f32 %v2630, %v3261
        %3263 = vmatprep.mubr.f32.mxu0 0.0
        %3264 = vmatmul.mubr.f32.gmra.mxu0 %v2584
        %v3265 = vpop.f32.mrf.mxu0
        %v3266 = vadd.f32 %v2635, %v3265
        %v3267 = vpop.f32.mrf.mxu0
        %v3268 = vadd.f32 %v2635, %v3267
        %3269 = vmatprep.mubr.f32.mxu0 0.0
        %3270 = vmatmul.mubr.f32.gmra.mxu0 %v2585
        %v3271 = vpop.f32.mrf.mxu0
        %v3272 = vadd.f32 %v2640, %v3271
        %v3273 = vpop.f32.mrf.mxu0
        %v3274 = vadd.f32 %v2640, %v3273
        %3275 = vmatprep.mubr.f32.mxu0 0.0
        %3276 = vmatmul.mubr.f32.gmra.mxu0 %v2586
        %v3277 = vpop.f32.mrf.mxu0
        %v3278 = vadd.f32 %v2645, %v3277
        %v3279 = vpop.f32.mrf.mxu0
        %v3280 = vadd.f32 %v2645, %v3279
        %3281 = vmatprep.mubr.f32.mxu0 0.0
        %3282 = vmatmul.mubr.f32.gmra.mxu0 %v2587
        %v3283 = vpop.f32.mrf.mxu0
        %v3284 = vadd.f32 %v2650, %v3283
        %v3285 = vpop.f32.mrf.mxu0
        %v3286 = vadd.f32 %v2650, %v3285
        %3287 = vmatprep.mubr.f32.mxu0 0.0
        %3288 = vmatmul.mubr.f32.gmra.mxu0 %v2588
        %v3289 = vpop.f32.mrf.mxu0
        %v3290 = vadd.f32 %v2655, %v3289
        %v3291 = vpop.f32.mrf.mxu0
        %v3292 = vadd.f32 %v2655, %v3291
        %3293 = vmatprep.mubr.f32.mxu0 0.0
        %3294 = vmatmul.mubr.f32.gmra.mxu0 %v2589
        %v3295 = vpop.f32.mrf.mxu0
        %v3296 = vadd.f32 %v2660, %v3295
        %v3297 = vpop.f32.mrf.mxu0
        %v3298 = vadd.f32 %v2660, %v3297
        %3299 = vmatprep.mubr.f32.mxu0 0.0
        %3300 = vmatmul.mubr.f32.gmra.mxu0 %v2590
        %v3301 = vpop.f32.mrf.mxu0
        %v3302 = vadd.f32 %v2665, %v3301
        %v3303 = vpop.f32.mrf.mxu0
        %v3304 = vadd.f32 %v2665, %v3303
        %3305 = vmatprep.mubr.f32.mxu0 0.0
        %3306 = vmatmul.mubr.f32.gmra.mxu0 %v2591
        %v3307 = vpop.f32.mrf.mxu0
        %v3308 = vadd.f32 %v2670, %v3307
        %v3309 = vpop.f32.mrf.mxu0
        %v3310 = vadd.f32 %v2670, %v3309
        %3311 = vmatprep.mubr.f32.mxu0 0.0
        %3312 = vmatmul.mubr.f32.gmra.mxu0 %v2592
        %v3313 = vpop.f32.mrf.mxu0
        %v3314 = vadd.f32 %v2675, %v3313
        %v3315 = vpop.f32.mrf.mxu0
        %v3316 = vadd.f32 %v2675, %v3315
        %3317 = vmatprep.mubr.f32.mxu0 0.0
        %3318 = vmatmul.mubr.f32.gmra.mxu0 %v2593
        %v3319 = vpop.f32.mrf.mxu0
        %v3320 = vadd.f32 %v2680, %v3319
        %v3321 = vpop.f32.mrf.mxu0
        %v3322 = vadd.f32 %v2680, %v3321
        %3323 = vmatprep.mubr.f32.mxu0 0.0
        %3324 = vmatmul.mubr.f32.gmra.mxu0 %v2594
        %v3325 = vpop.f32.mrf.mxu0
        %v3326 = vadd.f32 %v2685, %v3325
        %v3327 = vpop.f32.mrf.mxu0
        %v3328 = vadd.f32 %v2685, %v3327
        %3329 = vmatprep.mubr.f32.mxu0 0.0
        %3330 = vmatmul.mubr.f32.gmra.mxu0 %v2595
        %v3331 = vpop.f32.mrf.mxu0
        %v3332 = vadd.f32 %v2690, %v3331
        %v3333 = vpop.f32.mrf.mxu0
        %v3334 = vadd.f32 %v2690, %v3333
        %3335 = vdwg.mxu0
        %3336 = vmatprep.subr.mxu0 %v2573
        %3337 = vmatpush1.msra.mxu0 %v2572
        %3338 = vmatprep.subr.mxu0 %v2557
        %3339 = vmatpush1.msra.mxu0 %v2556
        %3340 = vmatprep.subr.mxu0 %v2541
        %3341 = vmatpush1.msra.mxu0 %v2540
        %3342 = vmatprep.subr.mxu0 %v2525
        %3343 = vmatpush1.msra.mxu0 %v2524
        %3344 = vmatprep.subr.mxu0 %v2509
        %3345 = vmatpush1.msra.mxu0 %v2508
        %3346 = vmatprep.subr.mxu0 %v2493
        %3347 = vmatpush1.msra.mxu0 %v2492
        %3348 = vmatprep.subr.mxu0 %v2477
        %3349 = vmatpush1.msra.mxu0 %v2476
        %3350 = vmatprep.subr.mxu0 %v2461
        %3351 = vmatpush1.msra.mxu0 %v2460
        %3352 = vmatprep.subr.mxu0 %v2445
        %3353 = vmatpush1.msra.mxu0 %v2444
        %3354 = vmatprep.subr.mxu0 %v2429
        %3355 = vmatpush1.msra.mxu0 %v2428
        %3356 = vmatprep.subr.mxu0 %v2413
        %3357 = vmatpush1.msra.mxu0 %v2412
        %3358 = vmatprep.subr.mxu0 %v2397
        %3359 = vmatpush1.msra.mxu0 %v2396
        %3360 = vmatprep.subr.mxu0 %v2381
        %3361 = vmatpush1.msra.mxu0 %v2380
        %3362 = vmatprep.subr.mxu0 %v2365
        %3363 = vmatpush1.msra.mxu0 %v2364
        %3364 = vmatprep.subr.mxu0 %v2349
        %3365 = vmatpush1.msra.mxu0 %v2348
        %3366 = vmatprep.subr.mxu0 %v2333
        %3367 = vmatpush1.msra.mxu0 %v2332
        %3368 = vmatprep.subr.mxu0 0.0
        %3369 = vmatpush2.msra.mxu0 0.0
        %3370 = vmatprep.subr.mxu0 0.0
        %3371 = vmatpush2.msra.mxu0 0.0
        %3372 = vmatprep.subr.mxu0 0.0
        %3373 = vmatpush2.msra.mxu0 0.0
        %3374 = vmatprep.subr.mxu0 0.0
        %3375 = vmatpush2.msra.mxu0 0.0
        %3376 = vmatprep.subr.mxu0 0.0
        %3377 = vmatpush2.msra.mxu0 0.0
        %3378 = vmatprep.subr.mxu0 0.0
        %3379 = vmatpush2.msra.mxu0 0.0
        %3380 = vmatprep.subr.mxu0 0.0
        %3381 = vmatpush2.msra.mxu0 0.0
        %3382 = vmatprep.subr.mxu0 0.0
        %3383 = vmatpush2.msra.mxu0 0.0
        %3384 = vmatprep.subr.mxu0 0.0
        %3385 = vmatpush2.msra.mxu0 0.0
        %3386 = vmatprep.subr.mxu0 0.0
        %3387 = vmatpush2.msra.mxu0 0.0
        %3388 = vmatprep.subr.mxu0 0.0
        %3389 = vmatpush2.msra.mxu0 0.0
        %3390 = vmatprep.subr.mxu0 0.0
        %3391 = vmatpush2.msra.mxu0 0.0
        %3392 = vmatprep.subr.mxu0 0.0
        %3393 = vmatpush2.msra.mxu0 0.0
        %3394 = vmatprep.subr.mxu0 0.0
        %3395 = vmatpush2.msra.mxu0 0.0
        %3396 = vmatprep.subr.mxu0 0.0
        %3397 = vmatpush2.msra.mxu0 0.0
        %3398 = vmatprep.subr.mxu0 0.0
        %3399 = vmatpush2.msra.mxu0 0.0
        %3400 = vmatprep.mubr.f32.mxu0 0.0
        %3401 = vmatmul.mubr.f32.gmra.mxu0 %v2580
        %v3402 = vpop.f32.mrf.mxu0
        %v3403 = vadd.f32 %v2615, %v3402
        %v3404 = vpop.f32.mrf.mxu0
        %v3405 = vadd.f32 %v2615, %v3404
        %3406 = vmatprep.mubr.f32.mxu0 0.0
        %3407 = vmatmul.mubr.f32.gmra.mxu0 %v2581
        %v3408 = vpop.f32.mrf.mxu0
        %v3409 = vadd.f32 %v2620, %v3408
        %v3410 = vpop.f32.mrf.mxu0
        %v3411 = vadd.f32 %v2620, %v3410
        %3412 = vmatprep.mubr.f32.mxu0 0.0
        %3413 = vmatmul.mubr.f32.gmra.mxu0 %v2582
        %v3414 = vpop.f32.mrf.mxu0
        %v3415 = vadd.f32 %v2625, %v3414
        %v3416 = vpop.f32.mrf.mxu0
        %v3417 = vadd.f32 %v2625, %v3416
        %3418 = vmatprep.mubr.f32.mxu0 0.0
        %3419 = vmatmul.mubr.f32.gmra.mxu0 %v2583
        %v3420 = vpop.f32.mrf.mxu0
        %v3421 = vadd.f32 %v2630, %v3420
        %v3422 = vpop.f32.mrf.mxu0
        %v3423 = vadd.f32 %v2630, %v3422
        %3424 = vmatprep.mubr.f32.mxu0 0.0
        %3425 = vmatmul.mubr.f32.gmra.mxu0 %v2584
        %v3426 = vpop.f32.mrf.mxu0
        %v3427 = vadd.f32 %v2635, %v3426
        %v3428 = vpop.f32.mrf.mxu0
        %v3429 = vadd.f32 %v2635, %v3428
        %3430 = vmatprep.mubr.f32.mxu0 0.0
        %3431 = vmatmul.mubr.f32.gmra.mxu0 %v2585
        %v3432 = vpop.f32.mrf.mxu0
        %v3433 = vadd.f32 %v2640, %v3432
        %v3434 = vpop.f32.mrf.mxu0
        %v3435 = vadd.f32 %v2640, %v3434
        %3436 = vmatprep.mubr.f32.mxu0 0.0
        %3437 = vmatmul.mubr.f32.gmra.mxu0 %v2586
        %v3438 = vpop.f32.mrf.mxu0
        %v3439 = vadd.f32 %v2645, %v3438
        %v3440 = vpop.f32.mrf.mxu0
        %v3441 = vadd.f32 %v2645, %v3440
        %3442 = vmatprep.mubr.f32.mxu0 0.0
        %3443 = vmatmul.mubr.f32.gmra.mxu0 %v2587
        %v3444 = vpop.f32.mrf.mxu0
        %v3445 = vadd.f32 %v2650, %v3444
        %v3446 = vpop.f32.mrf.mxu0
        %v3447 = vadd.f32 %v2650, %v3446
        %3448 = vmatprep.mubr.f32.mxu0 0.0
        %3449 = vmatmul.mubr.f32.gmra.mxu0 %v2588
        %v3450 = vpop.f32.mrf.mxu0
        %v3451 = vadd.f32 %v2655, %v3450
        %v3452 = vpop.f32.mrf.mxu0
        %v3453 = vadd.f32 %v2655, %v3452
        %3454 = vmatprep.mubr.f32.mxu0 0.0
        %3455 = vmatmul.mubr.f32.gmra.mxu0 %v2589
        %v3456 = vpop.f32.mrf.mxu0
        %v3457 = vadd.f32 %v2660, %v3456
        %v3458 = vpop.f32.mrf.mxu0
        %v3459 = vadd.f32 %v2660, %v3458
        %3460 = vmatprep.mubr.f32.mxu0 0.0
        %3461 = vmatmul.mubr.f32.gmra.mxu0 %v2590
        %v3462 = vpop.f32.mrf.mxu0
        %v3463 = vadd.f32 %v2665, %v3462
        %v3464 = vpop.f32.mrf.mxu0
        %v3465 = vadd.f32 %v2665, %v3464
        %3466 = vmatprep.mubr.f32.mxu0 0.0
        %3467 = vmatmul.mubr.f32.gmra.mxu0 %v2591
        %v3468 = vpop.f32.mrf.mxu0
        %v3469 = vadd.f32 %v2670, %v3468
        %v3470 = vpop.f32.mrf.mxu0
        %v3471 = vadd.f32 %v2670, %v3470
        %3472 = vmatprep.mubr.f32.mxu0 0.0
        %3473 = vmatmul.mubr.f32.gmra.mxu0 %v2592
        %v3474 = vpop.f32.mrf.mxu0
        %v3475 = vadd.f32 %v2675, %v3474
        %v3476 = vpop.f32.mrf.mxu0
        %v3477 = vadd.f32 %v2675, %v3476
        %3478 = vmatprep.mubr.f32.mxu0 0.0
        %3479 = vmatmul.mubr.f32.gmra.mxu0 %v2593
        %v3480 = vpop.f32.mrf.mxu0
        %v3481 = vadd.f32 %v2680, %v3480
        %v3482 = vpop.f32.mrf.mxu0
        %v3483 = vadd.f32 %v2680, %v3482
        %3484 = vmatprep.mubr.f32.mxu0 0.0
        %3485 = vmatmul.mubr.f32.gmra.mxu0 %v2594
        %v3486 = vpop.f32.mrf.mxu0
        %v3487 = vadd.f32 %v2685, %v3486
        %v3488 = vpop.f32.mrf.mxu0
        %v3489 = vadd.f32 %v2685, %v3488
        %3490 = vmatprep.mubr.f32.mxu0 0.0
        %3491 = vmatmul.mubr.f32.gmra.mxu0 %v2595
        %v3492 = vpop.f32.mrf.mxu0
        %v3493 = vadd.f32 %v2690, %v3492
        %v3494 = vpop.f32.mrf.mxu0
        %v3495 = vadd.f32 %v2690, %v3494
        %3496 = vdwg.mxu0
        %3497 = vmatprep.subr.mxu0 %v2575
        %3498 = vmatpush1.msra.mxu0 %v2574
        %3499 = vmatprep.subr.mxu0 %v2559
        %3500 = vmatpush1.msra.mxu0 %v2558
        %3501 = vmatprep.subr.mxu0 %v2543
        %3502 = vmatpush1.msra.mxu0 %v2542
        %3503 = vmatprep.subr.mxu0 %v2527
        %3504 = vmatpush1.msra.mxu0 %v2526
        %3505 = vmatprep.subr.mxu0 %v2511
        %3506 = vmatpush1.msra.mxu0 %v2510
        %3507 = vmatprep.subr.mxu0 %v2495
        %3508 = vmatpush1.msra.mxu0 %v2494
        %3509 = vmatprep.subr.mxu0 %v2479
        %3510 = vmatpush1.msra.mxu0 %v2478
        %3511 = vmatprep.subr.mxu0 %v2463
        %3512 = vmatpush1.msra.mxu0 %v2462
        %3513 = vmatprep.subr.mxu0 %v2447
        %3514 = vmatpush1.msra.mxu0 %v2446
        %3515 = vmatprep.subr.mxu0 %v2431
        %3516 = vmatpush1.msra.mxu0 %v2430
        %3517 = vmatprep.subr.mxu0 %v2415
        %3518 = vmatpush1.msra.mxu0 %v2414
        %3519 = vmatprep.subr.mxu0 %v2399
        %3520 = vmatpush1.msra.mxu0 %v2398
        %3521 = vmatprep.subr.mxu0 %v2383
        %3522 = vmatpush1.msra.mxu0 %v2382
        %3523 = vmatprep.subr.mxu0 %v2367
        %3524 = vmatpush1.msra.mxu0 %v2366
        %3525 = vmatprep.subr.mxu0 %v2351
        %3526 = vmatpush1.msra.mxu0 %v2350
        %3527 = vmatprep.subr.mxu0 %v2335
        %3528 = vmatpush1.msra.mxu0 %v2334
        %3529 = vmatprep.subr.mxu0 0.0
        %3530 = vmatpush2.msra.mxu0 0.0
        %3531 = vmatprep.subr.mxu0 0.0
        %3532 = vmatpush2.msra.mxu0 0.0
        %3533 = vmatprep.subr.mxu0 0.0
        %3534 = vmatpush2.msra.mxu0 0.0
        %3535 = vmatprep.subr.mxu0 0.0
        %3536 = vmatpush2.msra.mxu0 0.0
        %3537 = vmatprep.subr.mxu0 0.0
        %3538 = vmatpush2.msra.mxu0 0.0
        %3539 = vmatprep.subr.mxu0 0.0
        %3540 = vmatpush2.msra.mxu0 0.0
        %3541 = vmatprep.subr.mxu0 0.0
        %3542 = vmatpush2.msra.mxu0 0.0
        %3543 = vmatprep.subr.mxu0 0.0
        %3544 = vmatpush2.msra.mxu0 0.0
        %3545 = vmatprep.subr.mxu0 0.0
        %3546 = vmatpush2.msra.mxu0 0.0
        %3547 = vmatprep.subr.mxu0 0.0
        %3548 = vmatpush2.msra.mxu0 0.0
        %3549 = vmatprep.subr.mxu0 0.0
        %3550 = vmatpush2.msra.mxu0 0.0
        %3551 = vmatprep.subr.mxu0 0.0
        %3552 = vmatpush2.msra.mxu0 0.0
        %3553 = vmatprep.subr.mxu0 0.0
        %3554 = vmatpush2.msra.mxu0 0.0
        %3555 = vmatprep.subr.mxu0 0.0
        %3556 = vmatpush2.msra.mxu0 0.0
        %3557 = vmatprep.subr.mxu0 0.0
        %3558 = vmatpush2.msra.mxu0 0.0
        %3559 = vmatprep.subr.mxu0 0.0
        %3560 = vmatpush2.msra.mxu0 0.0
        %3561 = vmatprep.mubr.f32.mxu0 0.0
        %3562 = vmatmul.mubr.f32.gmra.mxu0 %v2580
        %v3563 = vpop.f32.mrf.mxu0
        %v3564 = vadd.f32 %v2615, %v3563
        %v3565 = vpop.f32.mrf.mxu0
        %v3566 = vadd.f32 %v2615, %v3565
        %3567 = vmatprep.mubr.f32.mxu0 0.0
        %3568 = vmatmul.mubr.f32.gmra.mxu0 %v2581
        %v3569 = vpop.f32.mrf.mxu0
        %v3570 = vadd.f32 %v2620, %v3569
        %v3571 = vpop.f32.mrf.mxu0
        %v3572 = vadd.f32 %v2620, %v3571
        %3573 = vmatprep.mubr.f32.mxu0 0.0
        %3574 = vmatmul.mubr.f32.gmra.mxu0 %v2582
        %v3575 = vpop.f32.mrf.mxu0
        %v3576 = vadd.f32 %v2625, %v3575
        %v3577 = vpop.f32.mrf.mxu0
        %v3578 = vadd.f32 %v2625, %v3577
        %3579 = vmatprep.mubr.f32.mxu0 0.0
        %3580 = vmatmul.mubr.f32.gmra.mxu0 %v2583
        %v3581 = vpop.f32.mrf.mxu0
        %v3582 = vadd.f32 %v2630, %v3581
        %v3583 = vpop.f32.mrf.mxu0
        %v3584 = vadd.f32 %v2630, %v3583
        %3585 = vmatprep.mubr.f32.mxu0 0.0
        %3586 = vmatmul.mubr.f32.gmra.mxu0 %v2584
        %v3587 = vpop.f32.mrf.mxu0
        %v3588 = vadd.f32 %v2635, %v3587
        %v3589 = vpop.f32.mrf.mxu0
        %v3590 = vadd.f32 %v2635, %v3589
        %3591 = vmatprep.mubr.f32.mxu0 0.0
        %3592 = vmatmul.mubr.f32.gmra.mxu0 %v2585
        %v3593 = vpop.f32.mrf.mxu0
        %v3594 = vadd.f32 %v2640, %v3593
        %v3595 = vpop.f32.mrf.mxu0
        %v3596 = vadd.f32 %v2640, %v3595
        %3597 = vmatprep.mubr.f32.mxu0 0.0
        %3598 = vmatmul.mubr.f32.gmra.mxu0 %v2586
        %v3599 = vpop.f32.mrf.mxu0
        %v3600 = vadd.f32 %v2645, %v3599
        %v3601 = vpop.f32.mrf.mxu0
        %v3602 = vadd.f32 %v2645, %v3601
        %3603 = vmatprep.mubr.f32.mxu0 0.0
        %3604 = vmatmul.mubr.f32.gmra.mxu0 %v2587
        %v3605 = vpop.f32.mrf.mxu0
        %v3606 = vadd.f32 %v2650, %v3605
        %v3607 = vpop.f32.mrf.mxu0
        %v3608 = vadd.f32 %v2650, %v3607
        %3609 = vmatprep.mubr.f32.mxu0 0.0
        %3610 = vmatmul.mubr.f32.gmra.mxu0 %v2588
        %v3611 = vpop.f32.mrf.mxu0
        %v3612 = vadd.f32 %v2655, %v3611
        %v3613 = vpop.f32.mrf.mxu0
        %v3614 = vadd.f32 %v2655, %v3613
        %3615 = vmatprep.mubr.f32.mxu0 0.0
        %3616 = vmatmul.mubr.f32.gmra.mxu0 %v2589
        %v3617 = vpop.f32.mrf.mxu0
        %v3618 = vadd.f32 %v2660, %v3617
        %v3619 = vpop.f32.mrf.mxu0
        %v3620 = vadd.f32 %v2660, %v3619
        %3621 = vmatprep.mubr.f32.mxu0 0.0
        %3622 = vmatmul.mubr.f32.gmra.mxu0 %v2590
        %v3623 = vpop.f32.mrf.mxu0
        %v3624 = vadd.f32 %v2665, %v3623
        %v3625 = vpop.f32.mrf.mxu0
        %v3626 = vadd.f32 %v2665, %v3625
        %3627 = vmatprep.mubr.f32.mxu0 0.0
        %3628 = vmatmul.mubr.f32.gmra.mxu0 %v2591
        %v3629 = vpop.f32.mrf.mxu0
        %v3630 = vadd.f32 %v2670, %v3629
        %v3631 = vpop.f32.mrf.mxu0
        %v3632 = vadd.f32 %v2670, %v3631
        %3633 = vmatprep.mubr.f32.mxu0 0.0
        %3634 = vmatmul.mubr.f32.gmra.mxu0 %v2592
        %v3635 = vpop.f32.mrf.mxu0
        %v3636 = vadd.f32 %v2675, %v3635
        %v3637 = vpop.f32.mrf.mxu0
        %v3638 = vadd.f32 %v2675, %v3637
        %3639 = vmatprep.mubr.f32.mxu0 0.0
        %3640 = vmatmul.mubr.f32.gmra.mxu0 %v2593
        %v3641 = vpop.f32.mrf.mxu0
        %v3642 = vadd.f32 %v2680, %v3641
        %v3643 = vpop.f32.mrf.mxu0
        %v3644 = vadd.f32 %v2680, %v3643
        %3645 = vmatprep.mubr.f32.mxu0 0.0
        %3646 = vmatmul.mubr.f32.gmra.mxu0 %v2594
        %v3647 = vpop.f32.mrf.mxu0
        %v3648 = vadd.f32 %v2685, %v3647
        %v3649 = vpop.f32.mrf.mxu0
        %v3650 = vadd.f32 %v2685, %v3649
        %3651 = vmatprep.mubr.f32.mxu0 0.0
        %3652 = vmatmul.mubr.f32.gmra.mxu0 %v2595
        %v3653 = vpop.f32.mrf.mxu0
        %v3654 = vadd.f32 %v2690, %v3653
        %v3655 = vpop.f32.mrf.mxu0
        %v3656 = vadd.f32 %v2690, %v3655
        %3657 = vdwg.mxu0
        %3658 = vmatprep.subr.mxu0 %v2577
        %3659 = vmatpush1.msra.mxu0 %v2576
        %3660 = vmatprep.subr.mxu0 %v2561
        %3661 = vmatpush1.msra.mxu0 %v2560
        %3662 = vmatprep.subr.mxu0 %v2545
        %3663 = vmatpush1.msra.mxu0 %v2544
        %3664 = vmatprep.subr.mxu0 %v2529
        %3665 = vmatpush1.msra.mxu0 %v2528
        %3666 = vmatprep.subr.mxu0 %v2513
        %3667 = vmatpush1.msra.mxu0 %v2512
        %3668 = vmatprep.subr.mxu0 %v2497
        %3669 = vmatpush1.msra.mxu0 %v2496
        %3670 = vmatprep.subr.mxu0 %v2481
        %3671 = vmatpush1.msra.mxu0 %v2480
        %3672 = vmatprep.subr.mxu0 %v2465
        %3673 = vmatpush1.msra.mxu0 %v2464
        %3674 = vmatprep.subr.mxu0 %v2449
        %3675 = vmatpush1.msra.mxu0 %v2448
        %3676 = vmatprep.subr.mxu0 %v2433
        %3677 = vmatpush1.msra.mxu0 %v2432
        %3678 = vmatprep.subr.mxu0 %v2417
        %3679 = vmatpush1.msra.mxu0 %v2416
        %3680 = vmatprep.subr.mxu0 %v2401
        %3681 = vmatpush1.msra.mxu0 %v2400
        %3682 = vmatprep.subr.mxu0 %v2385
        %3683 = vmatpush1.msra.mxu0 %v2384
        %3684 = vmatprep.subr.mxu0 %v2369
        %3685 = vmatpush1.msra.mxu0 %v2368
        %3686 = vmatprep.subr.mxu0 %v2353
        %3687 = vmatpush1.msra.mxu0 %v2352
        %3688 = vmatprep.subr.mxu0 %v2337
        %3689 = vmatpush1.msra.mxu0 %v2336
        %3690 = vmatprep.subr.mxu0 0.0
        %3691 = vmatpush2.msra.mxu0 0.0
        %3692 = vmatprep.subr.mxu0 0.0
        %3693 = vmatpush2.msra.mxu0 0.0
        %3694 = vmatprep.subr.mxu0 0.0
        %3695 = vmatpush2.msra.mxu0 0.0
        %3696 = vmatprep.subr.mxu0 0.0
        %3697 = vmatpush2.msra.mxu0 0.0
        %3698 = vmatprep.subr.mxu0 0.0
        %3699 = vmatpush2.msra.mxu0 0.0
        %3700 = vmatprep.subr.mxu0 0.0
        %3701 = vmatpush2.msra.mxu0 0.0
        %3702 = vmatprep.subr.mxu0 0.0
        %3703 = vmatpush2.msra.mxu0 0.0
        %3704 = vmatprep.subr.mxu0 0.0
        %3705 = vmatpush2.msra.mxu0 0.0
        %3706 = vmatprep.subr.mxu0 0.0
        %3707 = vmatpush2.msra.mxu0 0.0
        %3708 = vmatprep.subr.mxu0 0.0
        %3709 = vmatpush2.msra.mxu0 0.0
        %3710 = vmatprep.subr.mxu0 0.0
        %3711 = vmatpush2.msra.mxu0 0.0
        %3712 = vmatprep.subr.mxu0 0.0
        %3713 = vmatpush2.msra.mxu0 0.0
        %3714 = vmatprep.subr.mxu0 0.0
        %3715 = vmatpush2.msra.mxu0 0.0
        %3716 = vmatprep.subr.mxu0 0.0
        %3717 = vmatpush2.msra.mxu0 0.0
        %3718 = vmatprep.subr.mxu0 0.0
        %3719 = vmatpush2.msra.mxu0 0.0
        %3720 = vmatprep.subr.mxu0 0.0
        %3721 = vmatpush2.msra.mxu0 0.0
        %3722 = vmatprep.mubr.f32.mxu0 0.0
        %3723 = vmatmul.mubr.f32.gmra.mxu0 %v2580
        %v3724 = vpop.f32.mrf.mxu0
        %v3725 = vadd.f32 %v2615, %v3724
        %v3726 = vpop.f32.mrf.mxu0
        %v3727 = vadd.f32 %v2615, %v3726
        %3728 = vmatprep.mubr.f32.mxu0 0.0
        %3729 = vmatmul.mubr.f32.gmra.mxu0 %v2581
        %v3730 = vpop.f32.mrf.mxu0
        %v3731 = vadd.f32 %v2620, %v3730
        %v3732 = vpop.f32.mrf.mxu0
        %v3733 = vadd.f32 %v2620, %v3732
        %3734 = vmatprep.mubr.f32.mxu0 0.0
        %3735 = vmatmul.mubr.f32.gmra.mxu0 %v2582
        %v3736 = vpop.f32.mrf.mxu0
        %v3737 = vadd.f32 %v2625, %v3736
        %v3738 = vpop.f32.mrf.mxu0
        %v3739 = vadd.f32 %v2625, %v3738
        %3740 = vmatprep.mubr.f32.mxu0 0.0
        %3741 = vmatmul.mubr.f32.gmra.mxu0 %v2583
        %v3742 = vpop.f32.mrf.mxu0
        %v3743 = vadd.f32 %v2630, %v3742
        %v3744 = vpop.f32.mrf.mxu0
        %v3745 = vadd.f32 %v2630, %v3744
        %3746 = vmatprep.mubr.f32.mxu0 0.0
        %3747 = vmatmul.mubr.f32.gmra.mxu0 %v2584
        %v3748 = vpop.f32.mrf.mxu0
        %v3749 = vadd.f32 %v2635, %v3748
        %v3750 = vpop.f32.mrf.mxu0
        %v3751 = vadd.f32 %v2635, %v3750
        %3752 = vmatprep.mubr.f32.mxu0 0.0
        %3753 = vmatmul.mubr.f32.gmra.mxu0 %v2585
        %v3754 = vpop.f32.mrf.mxu0
        %v3755 = vadd.f32 %v2640, %v3754
        %v3756 = vpop.f32.mrf.mxu0
        %v3757 = vadd.f32 %v2640, %v3756
        %3758 = vmatprep.mubr.f32.mxu0 0.0
        %3759 = vmatmul.mubr.f32.gmra.mxu0 %v2586
        %v3760 = vpop.f32.mrf.mxu0
        %v3761 = vadd.f32 %v2645, %v3760
        %v3762 = vpop.f32.mrf.mxu0
        %v3763 = vadd.f32 %v2645, %v3762
        %3764 = vmatprep.mubr.f32.mxu0 0.0
        %3765 = vmatmul.mubr.f32.gmra.mxu0 %v2587
        %v3766 = vpop.f32.mrf.mxu0
        %v3767 = vadd.f32 %v2650, %v3766
        %v3768 = vpop.f32.mrf.mxu0
        %v3769 = vadd.f32 %v2650, %v3768
        %3770 = vmatprep.mubr.f32.mxu0 0.0
        %3771 = vmatmul.mubr.f32.gmra.mxu0 %v2588
        %v3772 = vpop.f32.mrf.mxu0
        %v3773 = vadd.f32 %v2655, %v3772
        %v3774 = vpop.f32.mrf.mxu0
        %v3775 = vadd.f32 %v2655, %v3774
        %3776 = vmatprep.mubr.f32.mxu0 0.0
        %3777 = vmatmul.mubr.f32.gmra.mxu0 %v2589
        %v3778 = vpop.f32.mrf.mxu0
        %v3779 = vadd.f32 %v2660, %v3778
        %v3780 = vpop.f32.mrf.mxu0
        %v3781 = vadd.f32 %v2660, %v3780
        %3782 = vmatprep.mubr.f32.mxu0 0.0
        %3783 = vmatmul.mubr.f32.gmra.mxu0 %v2590
        %v3784 = vpop.f32.mrf.mxu0
        %v3785 = vadd.f32 %v2665, %v3784
        %v3786 = vpop.f32.mrf.mxu0
        %v3787 = vadd.f32 %v2665, %v3786
        %3788 = vmatprep.mubr.f32.mxu0 0.0
        %3789 = vmatmul.mubr.f32.gmra.mxu0 %v2591
        %v3790 = vpop.f32.mrf.mxu0
        %v3791 = vadd.f32 %v2670, %v3790
        %v3792 = vpop.f32.mrf.mxu0
        %v3793 = vadd.f32 %v2670, %v3792
        %3794 = vmatprep.mubr.f32.mxu0 0.0
        %3795 = vmatmul.mubr.f32.gmra.mxu0 %v2592
        %v3796 = vpop.f32.mrf.mxu0
        %v3797 = vadd.f32 %v2675, %v3796
        %v3798 = vpop.f32.mrf.mxu0
        %v3799 = vadd.f32 %v2675, %v3798
        %3800 = vmatprep.mubr.f32.mxu0 0.0
        %3801 = vmatmul.mubr.f32.gmra.mxu0 %v2593
        %v3802 = vpop.f32.mrf.mxu0
        %v3803 = vadd.f32 %v2680, %v3802
        %v3804 = vpop.f32.mrf.mxu0
        %v3805 = vadd.f32 %v2680, %v3804
        %3806 = vmatprep.mubr.f32.mxu0 0.0
        %3807 = vmatmul.mubr.f32.gmra.mxu0 %v2594
        %v3808 = vpop.f32.mrf.mxu0
        %v3809 = vadd.f32 %v2685, %v3808
        %v3810 = vpop.f32.mrf.mxu0
        %v3811 = vadd.f32 %v2685, %v3810
        %3812 = vmatprep.mubr.f32.mxu0 0.0
        %3813 = vmatmul.mubr.f32.gmra.mxu0 %v2595
        %v3814 = vpop.f32.mrf.mxu0
        %v3815 = vadd.f32 %v2690, %v3814
        %v3816 = vpop.f32.mrf.mxu0
        %v3817 = vadd.f32 %v2690, %v3816
        %3818 = vdwg.mxu0
        %3819 = vmatprep.subr.mxu0 %v2579
        %3820 = vmatpush1.msra.mxu0 %v2578
        %3821 = vmatprep.subr.mxu0 %v2563
        %3822 = vmatpush1.msra.mxu0 %v2562
        %3823 = vmatprep.subr.mxu0 %v2547
        %3824 = vmatpush1.msra.mxu0 %v2546
        %3825 = vmatprep.subr.mxu0 %v2531
        %3826 = vmatpush1.msra.mxu0 %v2530
        %3827 = vmatprep.subr.mxu0 %v2515
        %3828 = vmatpush1.msra.mxu0 %v2514
        %3829 = vmatprep.subr.mxu0 %v2499
        %3830 = vmatpush1.msra.mxu0 %v2498
        %3831 = vmatprep.subr.mxu0 %v2483
        %3832 = vmatpush1.msra.mxu0 %v2482
        %3833 = vmatprep.subr.mxu0 %v2467
        %3834 = vmatpush1.msra.mxu0 %v2466
        %3835 = vmatprep.subr.mxu0 %v2451
        %3836 = vmatpush1.msra.mxu0 %v2450
        %3837 = vmatprep.subr.mxu0 %v2435
        %3838 = vmatpush1.msra.mxu0 %v2434
        %3839 = vmatprep.subr.mxu0 %v2419
        %3840 = vmatpush1.msra.mxu0 %v2418
        %3841 = vmatprep.subr.mxu0 %v2403
        %3842 = vmatpush1.msra.mxu0 %v2402
        %3843 = vmatprep.subr.mxu0 %v2387
        %3844 = vmatpush1.msra.mxu0 %v2386
        %3845 = vmatprep.subr.mxu0 %v2371
        %3846 = vmatpush1.msra.mxu0 %v2370
        %3847 = vmatprep.subr.mxu0 %v2355
        %3848 = vmatpush1.msra.mxu0 %v2354
        %3849 = vmatprep.subr.mxu0 %v2339
        %3850 = vmatpush1.msra.mxu0 %v2338
        %3851 = vmatprep.subr.mxu0 0.0
        %3852 = vmatpush2.msra.mxu0 0.0
        %3853 = vmatprep.subr.mxu0 0.0
        %3854 = vmatpush2.msra.mxu0 0.0
        %3855 = vmatprep.subr.mxu0 0.0
        %3856 = vmatpush2.msra.mxu0 0.0
        %3857 = vmatprep.subr.mxu0 0.0
        %3858 = vmatpush2.msra.mxu0 0.0
        %3859 = vmatprep.subr.mxu0 0.0
        %3860 = vmatpush2.msra.mxu0 0.0
        %3861 = vmatprep.subr.mxu0 0.0
        %3862 = vmatpush2.msra.mxu0 0.0
        %3863 = vmatprep.subr.mxu0 0.0
        %3864 = vmatpush2.msra.mxu0 0.0
        %3865 = vmatprep.subr.mxu0 0.0
        %3866 = vmatpush2.msra.mxu0 0.0
        %3867 = vmatprep.subr.mxu0 0.0
        %3868 = vmatpush2.msra.mxu0 0.0
        %3869 = vmatprep.subr.mxu0 0.0
        %3870 = vmatpush2.msra.mxu0 0.0
        %3871 = vmatprep.subr.mxu0 0.0
        %3872 = vmatpush2.msra.mxu0 0.0
        %3873 = vmatprep.subr.mxu0 0.0
        %3874 = vmatpush2.msra.mxu0 0.0
        %3875 = vmatprep.subr.mxu0 0.0
        %3876 = vmatpush2.msra.mxu0 0.0
        %3877 = vmatprep.subr.mxu0 0.0
        %3878 = vmatpush2.msra.mxu0 0.0
        %3879 = vmatprep.subr.mxu0 0.0
        %3880 = vmatpush2.msra.mxu0 0.0
        %3881 = vmatprep.subr.mxu0 0.0
        %3882 = vmatpush2.msra.mxu0 0.0
        %3883 = vmatprep.mubr.f32.mxu0 0.0
        %3884 = vmatmul.mubr.f32.gmra.mxu0 %v2580
        %v3885 = vpop.f32.mrf.mxu0
        %v3886 = vadd.f32 %v2615, %v3885
        %v3887 = vpop.f32.mrf.mxu0
        %v3888 = vadd.f32 %v2615, %v3887
        %3889 = vmatprep.mubr.f32.mxu0 0.0
        %3890 = vmatmul.mubr.f32.gmra.mxu0 %v2581
        %v3891 = vpop.f32.mrf.mxu0
        %v3892 = vadd.f32 %v2620, %v3891
        %v3893 = vpop.f32.mrf.mxu0
        %v3894 = vadd.f32 %v2620, %v3893
        %3895 = vmatprep.mubr.f32.mxu0 0.0
        %3896 = vmatmul.mubr.f32.gmra.mxu0 %v2582
        %v3897 = vpop.f32.mrf.mxu0
        %v3898 = vadd.f32 %v2625, %v3897
        %v3899 = vpop.f32.mrf.mxu0
        %v3900 = vadd.f32 %v2625, %v3899
        %3901 = vmatprep.mubr.f32.mxu0 0.0
        %3902 = vmatmul.mubr.f32.gmra.mxu0 %v2583
        %v3903 = vpop.f32.mrf.mxu0
        %v3904 = vadd.f32 %v2630, %v3903
        %v3905 = vpop.f32.mrf.mxu0
        %v3906 = vadd.f32 %v2630, %v3905
        %3907 = vmatprep.mubr.f32.mxu0 0.0
        %3908 = vmatmul.mubr.f32.gmra.mxu0 %v2584
        %v3909 = vpop.f32.mrf.mxu0
        %v3910 = vadd.f32 %v2635, %v3909
        %v3911 = vpop.f32.mrf.mxu0
        %v3912 = vadd.f32 %v2635, %v3911
        %3913 = vmatprep.mubr.f32.mxu0 0.0
        %3914 = vmatmul.mubr.f32.gmra.mxu0 %v2585
        %v3915 = vpop.f32.mrf.mxu0
        %v3916 = vadd.f32 %v2640, %v3915
        %v3917 = vpop.f32.mrf.mxu0
        %v3918 = vadd.f32 %v2640, %v3917
        %3919 = vmatprep.mubr.f32.mxu0 0.0
        %3920 = vmatmul.mubr.f32.gmra.mxu0 %v2586
        %v3921 = vpop.f32.mrf.mxu0
        %v3922 = vadd.f32 %v2645, %v3921
        %v3923 = vpop.f32.mrf.mxu0
        %v3924 = vadd.f32 %v2645, %v3923
        %3925 = vmatprep.mubr.f32.mxu0 0.0
        %3926 = vmatmul.mubr.f32.gmra.mxu0 %v2587
        %v3927 = vpop.f32.mrf.mxu0
        %v3928 = vadd.f32 %v2650, %v3927
        %v3929 = vpop.f32.mrf.mxu0
        %v3930 = vadd.f32 %v2650, %v3929
        %3931 = vmatprep.mubr.f32.mxu0 0.0
        %3932 = vmatmul.mubr.f32.gmra.mxu0 %v2588
        %v3933 = vpop.f32.mrf.mxu0
        %v3934 = vadd.f32 %v2655, %v3933
        %v3935 = vpop.f32.mrf.mxu0
        %v3936 = vadd.f32 %v2655, %v3935
        %3937 = vmatprep.mubr.f32.mxu0 0.0
        %3938 = vmatmul.mubr.f32.gmra.mxu0 %v2589
        %v3939 = vpop.f32.mrf.mxu0
        %v3940 = vadd.f32 %v2660, %v3939
        %v3941 = vpop.f32.mrf.mxu0
        %v3942 = vadd.f32 %v2660, %v3941
        %3943 = vmatprep.mubr.f32.mxu0 0.0
        %3944 = vmatmul.mubr.f32.gmra.mxu0 %v2590
        %v3945 = vpop.f32.mrf.mxu0
        %v3946 = vadd.f32 %v2665, %v3945
        %v3947 = vpop.f32.mrf.mxu0
        %v3948 = vadd.f32 %v2665, %v3947
        %3949 = vmatprep.mubr.f32.mxu0 0.0
        %3950 = vmatmul.mubr.f32.gmra.mxu0 %v2591
        %v3951 = vpop.f32.mrf.mxu0
        %v3952 = vadd.f32 %v2670, %v3951
        %v3953 = vpop.f32.mrf.mxu0
        %v3954 = vadd.f32 %v2670, %v3953
        %3955 = vmatprep.mubr.f32.mxu0 0.0
        %3956 = vmatmul.mubr.f32.gmra.mxu0 %v2592
        %v3957 = vpop.f32.mrf.mxu0
        %v3958 = vadd.f32 %v2675, %v3957
        %v3959 = vpop.f32.mrf.mxu0
        %v3960 = vadd.f32 %v2675, %v3959
        %3961 = vmatprep.mubr.f32.mxu0 0.0
        %3962 = vmatmul.mubr.f32.gmra.mxu0 %v2593
        %v3963 = vpop.f32.mrf.mxu0
        %v3964 = vadd.f32 %v2680, %v3963
        %v3965 = vpop.f32.mrf.mxu0
        %v3966 = vadd.f32 %v2680, %v3965
        %3967 = vmatprep.mubr.f32.mxu0 0.0
        %3968 = vmatmul.mubr.f32.gmra.mxu0 %v2594
        %v3969 = vpop.f32.mrf.mxu0
        %v3970 = vadd.f32 %v2685, %v3969
        %v3971 = vpop.f32.mrf.mxu0
        %v3972 = vadd.f32 %v2685, %v3971
        %3973 = vmatprep.mubr.f32.mxu0 0.0
        %3974 = vmatmul.mubr.f32.gmra.mxu0 %v2595
        %v3975 = vpop.f32.mrf.mxu0
        %v3976 = vadd.f32 %v2690, %v3975
        %v3977 = vpop.f32.mrf.mxu0
        %v3978 = vadd.f32 %v2690, %v3977
        %3979 = vdwg.mxu0
        %v3980 = vtanh.pop %v2759
        %v3981 = vtanh.pop %v2761
        %v3982 = vtanh.pop %v2920
        %v3983 = vtanh.pop %v2922
        %v3984 = vtanh.pop %v3081
        %v3985 = vtanh.pop %v3083
        %v3986 = vtanh.pop %v3242
        %v3987 = vtanh.pop %v3244
        %v3988 = vtanh.pop %v3403
        %v3989 = vtanh.pop %v3405
        %v3990 = vtanh.pop %v3564
        %v3991 = vtanh.pop %v3566
        %v3992 = vtanh.pop %v3725
        %v3993 = vtanh.pop %v3727
        %v3994 = vtanh.pop %v3886
        %v3995 = vtanh.pop %v3888
        %v3996 = vtanh.pop %v2765
        %v3997 = vtanh.pop %v2767
        %v3998 = vtanh.pop %v2926
        %v3999 = vtanh.pop %v2928
        %v4000 = vtanh.pop %v3087
        %v4001 = vtanh.pop %v3089
        %v4002 = vtanh.pop %v3248
        %v4003 = vtanh.pop %v3250
        %v4004 = vtanh.pop %v3409
        %v4005 = vtanh.pop %v3411
        %v4006 = vtanh.pop %v3570
        %v4007 = vtanh.pop %v3572
        %v4008 = vtanh.pop %v3731
        %v4009 = vtanh.pop %v3733
        %v4010 = vtanh.pop %v3892
        %v4011 = vtanh.pop %v3894
        %v4012 = vtanh.pop %v2771
        %v4013 = vtanh.pop %v2773
        %v4014 = vtanh.pop %v2932
        %v4015 = vtanh.pop %v2934
        %v4016 = vtanh.pop %v3093
        %v4017 = vtanh.pop %v3095
        %v4018 = vtanh.pop %v3254
        %v4019 = vtanh.pop %v3256
        %v4020 = vtanh.pop %v3415
        %v4021 = vtanh.pop %v3417
        %v4022 = vtanh.pop %v3576
        %v4023 = vtanh.pop %v3578
        %v4024 = vtanh.pop %v3737
        %v4025 = vtanh.pop %v3739
        %v4026 = vtanh.pop %v3898
        %v4027 = vtanh.pop %v3900
        %v4028 = vtanh.pop %v2777
        %v4029 = vtanh.pop %v2779
        %v4030 = vtanh.pop %v2938
        %v4031 = vtanh.pop %v2940
        %v4032 = vtanh.pop %v3099
        %v4033 = vtanh.pop %v3101
        %v4034 = vtanh.pop %v3260
        %v4035 = vtanh.pop %v3262
        %v4036 = vtanh.pop %v3421
        %v4037 = vtanh.pop %v3423
        %v4038 = vtanh.pop %v3582
        %v4039 = vtanh.pop %v3584
        %v4040 = vtanh.pop %v3743
        %v4041 = vtanh.pop %v3745
        %v4042 = vtanh.pop %v3904
        %v4043 = vtanh.pop %v3906
        %v4044 = vtanh.pop %v2783
        %v4045 = vtanh.pop %v2785
        %v4046 = vtanh.pop %v2944
        %v4047 = vtanh.pop %v2946
        %v4048 = vtanh.pop %v3105
        %v4049 = vtanh.pop %v3107
        %v4050 = vtanh.pop %v3266
        %v4051 = vtanh.pop %v3268
        %v4052 = vtanh.pop %v3427
        %v4053 = vtanh.pop %v3429
        %v4054 = vtanh.pop %v3588
        %v4055 = vtanh.pop %v3590
        %v4056 = vtanh.pop %v3749
        %v4057 = vtanh.pop %v3751
        %v4058 = vtanh.pop %v3910
        %v4059 = vtanh.pop %v3912
        %v4060 = vtanh.pop %v2789
        %v4061 = vtanh.pop %v2791
        %v4062 = vtanh.pop %v2950
        %v4063 = vtanh.pop %v2952
        %v4064 = vtanh.pop %v3111
        %v4065 = vtanh.pop %v3113
        %v4066 = vtanh.pop %v3272
        %v4067 = vtanh.pop %v3274
        %v4068 = vtanh.pop %v3433
        %v4069 = vtanh.pop %v3435
        %v4070 = vtanh.pop %v3594
        %v4071 = vtanh.pop %v3596
        %v4072 = vtanh.pop %v3755
        %v4073 = vtanh.pop %v3757
        %v4074 = vtanh.pop %v3916
        %v4075 = vtanh.pop %v3918
        %v4076 = vtanh.pop %v2795
        %v4077 = vtanh.pop %v2797
        %v4078 = vtanh.pop %v2956
        %v4079 = vtanh.pop %v2958
        %v4080 = vtanh.pop %v3117
        %v4081 = vtanh.pop %v3119
        %v4082 = vtanh.pop %v3278
        %v4083 = vtanh.pop %v3280
        %v4084 = vtanh.pop %v3439
        %v4085 = vtanh.pop %v3441
        %v4086 = vtanh.pop %v3600
        %v4087 = vtanh.pop %v3602
        %v4088 = vtanh.pop %v3761
        %v4089 = vtanh.pop %v3763
        %v4090 = vtanh.pop %v3922
        %v4091 = vtanh.pop %v3924
        %v4092 = vtanh.pop %v2801
        %v4093 = vtanh.pop %v2803
        %v4094 = vtanh.pop %v2962
        %v4095 = vtanh.pop %v2964
        %v4096 = vtanh.pop %v3123
        %v4097 = vtanh.pop %v3125
        %v4098 = vtanh.pop %v3284
        %v4099 = vtanh.pop %v3286
        %v4100 = vtanh.pop %v3445
        %v4101 = vtanh.pop %v3447
        %v4102 = vtanh.pop %v3606
        %v4103 = vtanh.pop %v3608
        %v4104 = vtanh.pop %v3767
        %v4105 = vtanh.pop %v3769
        %v4106 = vtanh.pop %v3928
        %v4107 = vtanh.pop %v3930
        %v4108 = vtanh.pop %v2807
        %v4109 = vtanh.pop %v2809
        %v4110 = vtanh.pop %v2968
        %v4111 = vtanh.pop %v2970
        %v4112 = vtanh.pop %v3129
        %v4113 = vtanh.pop %v3131
        %v4114 = vtanh.pop %v3290
        %v4115 = vtanh.pop %v3292
        %v4116 = vtanh.pop %v3451
        %v4117 = vtanh.pop %v3453
        %v4118 = vtanh.pop %v3612
        %v4119 = vtanh.pop %v3614
        %v4120 = vtanh.pop %v3773
        %v4121 = vtanh.pop %v3775
        %v4122 = vtanh.pop %v3934
        %v4123 = vtanh.pop %v3936
        %v4124 = vtanh.pop %v2813
        %v4125 = vtanh.pop %v2815
        %v4126 = vtanh.pop %v2974
        %v4127 = vtanh.pop %v2976
        %v4128 = vtanh.pop %v3135
        %v4129 = vtanh.pop %v3137
        %v4130 = vtanh.pop %v3296
        %v4131 = vtanh.pop %v3298
        %v4132 = vtanh.pop %v3457
        %v4133 = vtanh.pop %v3459
        %v4134 = vtanh.pop %v3618
        %v4135 = vtanh.pop %v3620
        %v4136 = vtanh.pop %v3779
        %v4137 = vtanh.pop %v3781
        %v4138 = vtanh.pop %v3940
        %v4139 = vtanh.pop %v3942
        %v4140 = vtanh.pop %v2819
        %v4141 = vtanh.pop %v2821
        %v4142 = vtanh.pop %v2980
        %v4143 = vtanh.pop %v2982
        %v4144 = vtanh.pop %v3141
        %v4145 = vtanh.pop %v3143
        %v4146 = vtanh.pop %v3302
        %v4147 = vtanh.pop %v3304
        %v4148 = vtanh.pop %v3463
        %v4149 = vtanh.pop %v3465
        %v4150 = vtanh.pop %v3624
        %v4151 = vtanh.pop %v3626
        %v4152 = vtanh.pop %v3785
        %v4153 = vtanh.pop %v3787
        %v4154 = vtanh.pop %v3946
        %v4155 = vtanh.pop %v3948
        %v4156 = vtanh.pop %v2825
        %v4157 = vtanh.pop %v2827
        %v4158 = vtanh.pop %v2986
        %v4159 = vtanh.pop %v2988
        %v4160 = vtanh.pop %v3147
        %v4161 = vtanh.pop %v3149
        %v4162 = vtanh.pop %v3308
        %v4163 = vtanh.pop %v3310
        %v4164 = vtanh.pop %v3469
        %v4165 = vtanh.pop %v3471
        %v4166 = vtanh.pop %v3630
        %v4167 = vtanh.pop %v3632
        %v4168 = vtanh.pop %v3791
        %v4169 = vtanh.pop %v3793
        %v4170 = vtanh.pop %v3952
        %v4171 = vtanh.pop %v3954
        %v4172 = vtanh.pop %v2831
        %v4173 = vtanh.pop %v2833
        %v4174 = vtanh.pop %v2992
        %v4175 = vtanh.pop %v2994
        %v4176 = vtanh.pop %v3153
        %v4177 = vtanh.pop %v3155
        %v4178 = vtanh.pop %v3314
        %v4179 = vtanh.pop %v3316
        %v4180 = vtanh.pop %v3475
        %v4181 = vtanh.pop %v3477
        %v4182 = vtanh.pop %v3636
        %v4183 = vtanh.pop %v3638
        %v4184 = vtanh.pop %v3797
        %v4185 = vtanh.pop %v3799
        %v4186 = vtanh.pop %v3958
        %v4187 = vtanh.pop %v3960
        %v4188 = vtanh.pop %v2837
        %v4189 = vtanh.pop %v2839
        %v4190 = vtanh.pop %v2998
        %v4191 = vtanh.pop %v3000
        %v4192 = vtanh.pop %v3159
        %v4193 = vtanh.pop %v3161
        %v4194 = vtanh.pop %v3320
        %v4195 = vtanh.pop %v3322
        %v4196 = vtanh.pop %v3481
        %v4197 = vtanh.pop %v3483
        %v4198 = vtanh.pop %v3642
        %v4199 = vtanh.pop %v3644
        %v4200 = vtanh.pop %v3803
        %v4201 = vtanh.pop %v3805
        %v4202 = vtanh.pop %v3964
        %v4203 = vtanh.pop %v3966
        %v4204 = vtanh.pop %v2843
        %v4205 = vtanh.pop %v2845
        %v4206 = vtanh.pop %v3004
        %v4207 = vtanh.pop %v3006
        %v4208 = vtanh.pop %v3165
        %v4209 = vtanh.pop %v3167
        %v4210 = vtanh.pop %v3326
        %v4211 = vtanh.pop %v3328
        %v4212 = vtanh.pop %v3487
        %v4213 = vtanh.pop %v3489
        %v4214 = vtanh.pop %v3648
        %v4215 = vtanh.pop %v3650
        %v4216 = vtanh.pop %v3809
        %v4217 = vtanh.pop %v3811
        %v4218 = vtanh.pop %v3970
        %v4219 = vtanh.pop %v3972
        %v4220 = vtanh.pop %v2849
        %v4221 = vtanh.pop %v2851
        %v4222 = vtanh.pop %v3010
        %v4223 = vtanh.pop %v3012
        %v4224 = vtanh.pop %v3171
        %v4225 = vtanh.pop %v3173
        %v4226 = vtanh.pop %v3332
        %v4227 = vtanh.pop %v3334
        %v4228 = vtanh.pop %v3493
        %v4229 = vtanh.pop %v3495
        %v4230 = vtanh.pop %v3654
        %v4231 = vtanh.pop %v3656
        %v4232 = vtanh.pop %v3815
        %v4233 = vtanh.pop %v3817
        %v4234 = vtanh.pop %v3976
        %v4235 = vtanh.pop %v3978
        %v4236 = vld [vmem:[%s4] sm:$0xff]
        %4237 = vset.pattern.permute.xlu0 8
        %4238 = vperm.xlu0 %4237, %v297
        %v4239 = vpop.permute.xlu0 %4238
        %4241 = vmatprep.subr.mxu0 %v4221
        %4242 = vmatpush1.msra.mxu0 %v4220
        %4243 = vmatprep.subr.mxu0 %v4205
        %4244 = vmatpush1.msra.mxu0 %v4204
        %4245 = vmatprep.subr.mxu0 %v4189
        %4246 = vmatpush1.msra.mxu0 %v4188
        %4247 = vmatprep.subr.mxu0 %v4173
        %4248 = vmatpush1.msra.mxu0 %v4172
        %4249 = vmatprep.subr.mxu0 %v4157
        %4250 = vmatpush1.msra.mxu0 %v4156
        %4251 = vmatprep.subr.mxu0 %v4141
        %4252 = vmatpush1.msra.mxu0 %v4140
        %4253 = vmatprep.subr.mxu0 %v4125
        %4254 = vmatpush1.msra.mxu0 %v4124
        %4255 = vmatprep.subr.mxu0 %v4109
        %4256 = vmatpush1.msra.mxu0 %v4108
        %4257 = vmatprep.subr.mxu0 %v4093
        %4258 = vmatpush1.msra.mxu0 %v4092
        %4259 = vmatprep.subr.mxu0 %v4077
        %4260 = vmatpush1.msra.mxu0 %v4076
        %4261 = vmatprep.subr.mxu0 %v4061
        %4262 = vmatpush1.msra.mxu0 %v4060
        %4263 = vmatprep.subr.mxu0 %v4045
        %4264 = vmatpush1.msra.mxu0 %v4044
        %4265 = vmatprep.subr.mxu0 %v4029
        %4266 = vmatpush1.msra.mxu0 %v4028
        %4267 = vmatprep.subr.mxu0 %v4013
        %4268 = vmatpush1.msra.mxu0 %v4012
        %4269 = vmatprep.subr.mxu0 %v3997
        %4270 = vmatpush1.msra.mxu0 %v3996
        %4271 = vmatprep.subr.mxu0 %v3981
        %4272 = vmatpush1.msra.mxu0 %v3980
        %4273 = vmatprep.subr.mxu0 0.0
        %4274 = vmatpush2.msra.mxu0 0.0
        %4275 = vmatprep.subr.mxu0 0.0
        %4276 = vmatpush2.msra.mxu0 0.0
        %4277 = vmatprep.subr.mxu0 0.0
        %4278 = vmatpush2.msra.mxu0 0.0
        %4279 = vmatprep.subr.mxu0 0.0
        %4280 = vmatpush2.msra.mxu0 0.0
        %4281 = vmatprep.subr.mxu0 0.0
        %4282 = vmatpush2.msra.mxu0 0.0
        %4283 = vmatprep.subr.mxu0 0.0
        %4284 = vmatpush2.msra.mxu0 0.0
        %4285 = vmatprep.subr.mxu0 0.0
        %4286 = vmatpush2.msra.mxu0 0.0
        %4287 = vmatprep.subr.mxu0 0.0
        %4288 = vmatpush2.msra.mxu0 0.0
        %4289 = vmatprep.subr.mxu0 0.0
        %4290 = vmatpush2.msra.mxu0 0.0
        %4291 = vmatprep.subr.mxu0 0.0
        %4292 = vmatpush2.msra.mxu0 0.0
        %4293 = vmatprep.subr.mxu0 0.0
        %4294 = vmatpush2.msra.mxu0 0.0
        %4295 = vmatprep.subr.mxu0 0.0
        %4296 = vmatpush2.msra.mxu0 0.0
        %4297 = vmatprep.subr.mxu0 0.0
        %4298 = vmatpush2.msra.mxu0 0.0
        %4299 = vmatprep.subr.mxu0 0.0
        %4300 = vmatpush2.msra.mxu0 0.0
        %4301 = vmatprep.subr.mxu0 0.0
        %4302 = vmatpush2.msra.mxu0 0.0
        %4303 = vmatprep.subr.mxu0 0.0
        %4304 = vmatpush2.msra.mxu0 0.0
        %4305 = vmatprep.mubr.f32.mxu0 0.0
        %4306 = vmatmul.mubr.f32.gmra.mxu0 %v4236
        %v4307 = vpop.f32.mrf.mxu0
        %v4308 = vadd.f32 %v4239, %v4307
        %v4309 = vpop.f32.mrf.mxu0
        %v4310 = vadd.f32 %v4239, %v4309
        %4311 = vdwg.mxu0
        %4312 = vmatprep.subr.mxu0 %v4223
        %4313 = vmatpush1.msra.mxu0 %v4222
        %4314 = vmatprep.subr.mxu0 %v4207
        %4315 = vmatpush1.msra.mxu0 %v4206
        %4316 = vmatprep.subr.mxu0 %v4191
        %4317 = vmatpush1.msra.mxu0 %v4190
        %4318 = vmatprep.subr.mxu0 %v4175
        %4319 = vmatpush1.msra.mxu0 %v4174
        %4320 = vmatprep.subr.mxu0 %v4159
        %4321 = vmatpush1.msra.mxu0 %v4158
        %4322 = vmatprep.subr.mxu0 %v4143
        %4323 = vmatpush1.msra.mxu0 %v4142
        %4324 = vmatprep.subr.mxu0 %v4127
        %4325 = vmatpush1.msra.mxu0 %v4126
        %4326 = vmatprep.subr.mxu0 %v4111
        %4327 = vmatpush1.msra.mxu0 %v4110
        %4328 = vmatprep.subr.mxu0 %v4095
        %4329 = vmatpush1.msra.mxu0 %v4094
        %4330 = vmatprep.subr.mxu0 %v4079
        %4331 = vmatpush1.msra.mxu0 %v4078
        %4332 = vmatprep.subr.mxu0 %v4063
        %4333 = vmatpush1.msra.mxu0 %v4062
        %4334 = vmatprep.subr.mxu0 %v4047
        %4335 = vmatpush1.msra.mxu0 %v4046
        %4336 = vmatprep.subr.mxu0 %v4031
        %4337 = vmatpush1.msra.mxu0 %v4030
        %4338 = vmatprep.subr.mxu0 %v4015
        %4339 = vmatpush1.msra.mxu0 %v4014
        %4340 = vmatprep.subr.mxu0 %v3999
        %4341 = vmatpush1.msra.mxu0 %v3998
        %4342 = vmatprep.subr.mxu0 %v3983
        %4343 = vmatpush1.msra.mxu0 %v3982
        %4344 = vmatprep.subr.mxu0 0.0
        %4345 = vmatpush2.msra.mxu0 0.0
        %4346 = vmatprep.subr.mxu0 0.0
        %4347 = vmatpush2.msra.mxu0 0.0
        %4348 = vmatprep.subr.mxu0 0.0
        %4349 = vmatpush2.msra.mxu0 0.0
        %4350 = vmatprep.subr.mxu0 0.0
        %4351 = vmatpush2.msra.mxu0 0.0
        %4352 = vmatprep.subr.mxu0 0.0
        %4353 = vmatpush2.msra.mxu0 0.0
        %4354 = vmatprep.subr.mxu0 0.0
        %4355 = vmatpush2.msra.mxu0 0.0
        %4356 = vmatprep.subr.mxu0 0.0
        %4357 = vmatpush2.msra.mxu0 0.0
        %4358 = vmatprep.subr.mxu0 0.0
        %4359 = vmatpush2.msra.mxu0 0.0
        %4360 = vmatprep.subr.mxu0 0.0
        %4361 = vmatpush2.msra.mxu0 0.0
        %4362 = vmatprep.subr.mxu0 0.0
        %4363 = vmatpush2.msra.mxu0 0.0
        %4364 = vmatprep.subr.mxu0 0.0
        %4365 = vmatpush2.msra.mxu0 0.0
        %4366 = vmatprep.subr.mxu0 0.0
        %4367 = vmatpush2.msra.mxu0 0.0
        %4368 = vmatprep.subr.mxu0 0.0
        %4369 = vmatpush2.msra.mxu0 0.0
        %4370 = vmatprep.subr.mxu0 0.0
        %4371 = vmatpush2.msra.mxu0 0.0
        %4372 = vmatprep.subr.mxu0 0.0
        %4373 = vmatpush2.msra.mxu0 0.0
        %4374 = vmatprep.subr.mxu0 0.0
        %4375 = vmatpush2.msra.mxu0 0.0
        %4376 = vmatprep.mubr.f32.mxu0 0.0
        %4377 = vmatmul.mubr.f32.gmra.mxu0 %v4236
        %v4378 = vpop.f32.mrf.mxu0
        %v4379 = vadd.f32 %v4239, %v4378
        %v4380 = vpop.f32.mrf.mxu0
        %v4381 = vadd.f32 %v4239, %v4380
        %4382 = vdwg.mxu0
        %4383 = vmatprep.subr.mxu0 %v4225
        %4384 = vmatpush1.msra.mxu0 %v4224
        %4385 = vmatprep.subr.mxu0 %v4209
        %4386 = vmatpush1.msra.mxu0 %v4208
        %4387 = vmatprep.subr.mxu0 %v4193
        %4388 = vmatpush1.msra.mxu0 %v4192
        %4389 = vmatprep.subr.mxu0 %v4177
        %4390 = vmatpush1.msra.mxu0 %v4176
        %4391 = vmatprep.subr.mxu0 %v4161
        %4392 = vmatpush1.msra.mxu0 %v4160
        %4393 = vmatprep.subr.mxu0 %v4145
        %4394 = vmatpush1.msra.mxu0 %v4144
        %4395 = vmatprep.subr.mxu0 %v4129
        %4396 = vmatpush1.msra.mxu0 %v4128
        %4397 = vmatprep.subr.mxu0 %v4113
        %4398 = vmatpush1.msra.mxu0 %v4112
        %4399 = vmatprep.subr.mxu0 %v4097
        %4400 = vmatpush1.msra.mxu0 %v4096
        %4401 = vmatprep.subr.mxu0 %v4081
        %4402 = vmatpush1.msra.mxu0 %v4080
        %4403 = vmatprep.subr.mxu0 %v4065
        %4404 = vmatpush1.msra.mxu0 %v4064
        %4405 = vmatprep.subr.mxu0 %v4049
        %4406 = vmatpush1.msra.mxu0 %v4048
        %4407 = vmatprep.subr.mxu0 %v4033
        %4408 = vmatpush1.msra.mxu0 %v4032
        %4409 = vmatprep.subr.mxu0 %v4017
        %4410 = vmatpush1.msra.mxu0 %v4016
        %4411 = vmatprep.subr.mxu0 %v4001
        %4412 = vmatpush1.msra.mxu0 %v4000
        %4413 = vmatprep.subr.mxu0 %v3985
        %4414 = vmatpush1.msra.mxu0 %v3984
        %4415 = vmatprep.subr.mxu0 0.0
        %4416 = vmatpush2.msra.mxu0 0.0
        %4417 = vmatprep.subr.mxu0 0.0
        %4418 = vmatpush2.msra.mxu0 0.0
        %4419 = vmatprep.subr.mxu0 0.0
        %4420 = vmatpush2.msra.mxu0 0.0
        %4421 = vmatprep.subr.mxu0 0.0
        %4422 = vmatpush2.msra.mxu0 0.0
        %4423 = vmatprep.subr.mxu0 0.0
        %4424 = vmatpush2.msra.mxu0 0.0
        %4425 = vmatprep.subr.mxu0 0.0
        %4426 = vmatpush2.msra.mxu0 0.0
        %4427 = vmatprep.subr.mxu0 0.0
        %4428 = vmatpush2.msra.mxu0 0.0
        %4429 = vmatprep.subr.mxu0 0.0
        %4430 = vmatpush2.msra.mxu0 0.0
        %4431 = vmatprep.subr.mxu0 0.0
        %4432 = vmatpush2.msra.mxu0 0.0
        %4433 = vmatprep.subr.mxu0 0.0
        %4434 = vmatpush2.msra.mxu0 0.0
        %4435 = vmatprep.subr.mxu0 0.0
        %4436 = vmatpush2.msra.mxu0 0.0
        %4437 = vmatprep.subr.mxu0 0.0
        %4438 = vmatpush2.msra.mxu0 0.0
        %4439 = vmatprep.subr.mxu0 0.0
        %4440 = vmatpush2.msra.mxu0 0.0
        %4441 = vmatprep.subr.mxu0 0.0
        %4442 = vmatpush2.msra.mxu0 0.0
        %4443 = vmatprep.subr.mxu0 0.0
        %4444 = vmatpush2.msra.mxu0 0.0
        %4445 = vmatprep.subr.mxu0 0.0
        %4446 = vmatpush2.msra.mxu0 0.0
        %4447 = vmatprep.mubr.f32.mxu0 0.0
        %4448 = vmatmul.mubr.f32.gmra.mxu0 %v4236
        %v4449 = vpop.f32.mrf.mxu0
        %v4450 = vadd.f32 %v4239, %v4449
        %v4451 = vpop.f32.mrf.mxu0
        %v4452 = vadd.f32 %v4239, %v4451
        %4453 = vdwg.mxu0
        %4454 = vmatprep.subr.mxu0 %v4227
        %4455 = vmatpush1.msra.mxu0 %v4226
        %4456 = vmatprep.subr.mxu0 %v4211
        %4457 = vmatpush1.msra.mxu0 %v4210
        %4458 = vmatprep.subr.mxu0 %v4195
        %4459 = vmatpush1.msra.mxu0 %v4194
        %4460 = vmatprep.subr.mxu0 %v4179
        %4461 = vmatpush1.msra.mxu0 %v4178
        %4462 = vmatprep.subr.mxu0 %v4163
        %4463 = vmatpush1.msra.mxu0 %v4162
        %4464 = vmatprep.subr.mxu0 %v4147
        %4465 = vmatpush1.msra.mxu0 %v4146
        %4466 = vmatprep.subr.mxu0 %v4131
        %4467 = vmatpush1.msra.mxu0 %v4130
        %4468 = vmatprep.subr.mxu0 %v4115
        %4469 = vmatpush1.msra.mxu0 %v4114
        %4470 = vmatprep.subr.mxu0 %v4099
        %4471 = vmatpush1.msra.mxu0 %v4098
        %4472 = vmatprep.subr.mxu0 %v4083
        %4473 = vmatpush1.msra.mxu0 %v4082
        %4474 = vmatprep.subr.mxu0 %v4067
        %4475 = vmatpush1.msra.mxu0 %v4066
        %4476 = vmatprep.subr.mxu0 %v4051
        %4477 = vmatpush1.msra.mxu0 %v4050
        %4478 = vmatprep.subr.mxu0 %v4035
        %4479 = vmatpush1.msra.mxu0 %v4034
        %4480 = vmatprep.subr.mxu0 %v4019
        %4481 = vmatpush1.msra.mxu0 %v4018
        %4482 = vmatprep.subr.mxu0 %v4003
        %4483 = vmatpush1.msra.mxu0 %v4002
        %4484 = vmatprep.subr.mxu0 %v3987
        %4485 = vmatpush1.msra.mxu0 %v3986
        %4486 = vmatprep.subr.mxu0 0.0
        %4487 = vmatpush2.msra.mxu0 0.0
        %4488 = vmatprep.subr.mxu0 0.0
        %4489 = vmatpush2.msra.mxu0 0.0
        %4490 = vmatprep.subr.mxu0 0.0
        %4491 = vmatpush2.msra.mxu0 0.0
        %4492 = vmatprep.subr.mxu0 0.0
        %4493 = vmatpush2.msra.mxu0 0.0
        %4494 = vmatprep.subr.mxu0 0.0
        %4495 = vmatpush2.msra.mxu0 0.0
        %4496 = vmatprep.subr.mxu0 0.0
        %4497 = vmatpush2.msra.mxu0 0.0
        %4498 = vmatprep.subr.mxu0 0.0
        %4499 = vmatpush2.msra.mxu0 0.0
        %4500 = vmatprep.subr.mxu0 0.0
        %4501 = vmatpush2.msra.mxu0 0.0
        %4502 = vmatprep.subr.mxu0 0.0
        %4503 = vmatpush2.msra.mxu0 0.0
        %4504 = vmatprep.subr.mxu0 0.0
        %4505 = vmatpush2.msra.mxu0 0.0
        %4506 = vmatprep.subr.mxu0 0.0
        %4507 = vmatpush2.msra.mxu0 0.0
        %4508 = vmatprep.subr.mxu0 0.0
        %4509 = vmatpush2.msra.mxu0 0.0
        %4510 = vmatprep.subr.mxu0 0.0
        %4511 = vmatpush2.msra.mxu0 0.0
        %4512 = vmatprep.subr.mxu0 0.0
        %4513 = vmatpush2.msra.mxu0 0.0
        %4514 = vmatprep.subr.mxu0 0.0
        %4515 = vmatpush2.msra.mxu0 0.0
        %4516 = vmatprep.subr.mxu0 0.0
        %4517 = vmatpush2.msra.mxu0 0.0
        %4518 = vmatprep.mubr.f32.mxu0 0.0
        %4519 = vmatmul.mubr.f32.gmra.mxu0 %v4236
        %v4520 = vpop.f32.mrf.mxu0
        %v4521 = vadd.f32 %v4239, %v4520
        %v4522 = vpop.f32.mrf.mxu0
        %v4523 = vadd.f32 %v4239, %v4522
        %4524 = vdwg.mxu0
        %4525 = vmatprep.subr.mxu0 %v4229
        %4526 = vmatpush1.msra.mxu0 %v4228
        %4527 = vmatprep.subr.mxu0 %v4213
        %4528 = vmatpush1.msra.mxu0 %v4212
        %4529 = vmatprep.subr.mxu0 %v4197
        %4530 = vmatpush1.msra.mxu0 %v4196
        %4531 = vmatprep.subr.mxu0 %v4181
        %4532 = vmatpush1.msra.mxu0 %v4180
        %4533 = vmatprep.subr.mxu0 %v4165
        %4534 = vmatpush1.msra.mxu0 %v4164
        %4535 = vmatprep.subr.mxu0 %v4149
        %4536 = vmatpush1.msra.mxu0 %v4148
        %4537 = vmatprep.subr.mxu0 %v4133
        %4538 = vmatpush1.msra.mxu0 %v4132
        %4539 = vmatprep.subr.mxu0 %v4117
        %4540 = vmatpush1.msra.mxu0 %v4116
        %4541 = vmatprep.subr.mxu0 %v4101
        %4542 = vmatpush1.msra.mxu0 %v4100
        %4543 = vmatprep.subr.mxu0 %v4085
        %4544 = vmatpush1.msra.mxu0 %v4084
        %4545 = vmatprep.subr.mxu0 %v4069
        %4546 = vmatpush1.msra.mxu0 %v4068
        %4547 = vmatprep.subr.mxu0 %v4053
        %4548 = vmatpush1.msra.mxu0 %v4052
        %4549 = vmatprep.subr.mxu0 %v4037
        %4550 = vmatpush1.msra.mxu0 %v4036
        %4551 = vmatprep.subr.mxu0 %v4021
        %4552 = vmatpush1.msra.mxu0 %v4020
        %4553 = vmatprep.subr.mxu0 %v4005
        %4554 = vmatpush1.msra.mxu0 %v4004
        %4555 = vmatprep.subr.mxu0 %v3989
        %4556 = vmatpush1.msra.mxu0 %v3988
        %4557 = vmatprep.subr.mxu0 0.0
        %4558 = vmatpush2.msra.mxu0 0.0
        %4559 = vmatprep.subr.mxu0 0.0
        %4560 = vmatpush2.msra.mxu0 0.0
        %4561 = vmatprep.subr.mxu0 0.0
        %4562 = vmatpush2.msra.mxu0 0.0
        %4563 = vmatprep.subr.mxu0 0.0
        %4564 = vmatpush2.msra.mxu0 0.0
        %4565 = vmatprep.subr.mxu0 0.0
        %4566 = vmatpush2.msra.mxu0 0.0
        %4567 = vmatprep.subr.mxu0 0.0
        %4568 = vmatpush2.msra.mxu0 0.0
        %4569 = vmatprep.subr.mxu0 0.0
        %4570 = vmatpush2.msra.mxu0 0.0
        %4571 = vmatprep.subr.mxu0 0.0
        %4572 = vmatpush2.msra.mxu0 0.0
        %4573 = vmatprep.subr.mxu0 0.0
        %4574 = vmatpush2.msra.mxu0 0.0
        %4575 = vmatprep.subr.mxu0 0.0
        %4576 = vmatpush2.msra.mxu0 0.0
        %4577 = vmatprep.subr.mxu0 0.0
        %4578 = vmatpush2.msra.mxu0 0.0
        %4579 = vmatprep.subr.mxu0 0.0
        %4580 = vmatpush2.msra.mxu0 0.0
        %4581 = vmatprep.subr.mxu0 0.0
        %4582 = vmatpush2.msra.mxu0 0.0
        %4583 = vmatprep.subr.mxu0 0.0
        %4584 = vmatpush2.msra.mxu0 0.0
        %4585 = vmatprep.subr.mxu0 0.0
        %4586 = vmatpush2.msra.mxu0 0.0
        %4587 = vmatprep.subr.mxu0 0.0
        %4588 = vmatpush2.msra.mxu0 0.0
        %4589 = vmatprep.mubr.f32.mxu0 0.0
        %4590 = vmatmul.mubr.f32.gmra.mxu0 %v4236
        %v4591 = vpop.f32.mrf.mxu0
        %v4592 = vadd.f32 %v4239, %v4591
        %v4593 = vpop.f32.mrf.mxu0
        %v4594 = vadd.f32 %v4239, %v4593
        %4595 = vdwg.mxu0
        %4596 = vmatprep.subr.mxu0 %v4231
        %4597 = vmatpush1.msra.mxu0 %v4230
        %4598 = vmatprep.subr.mxu0 %v4215
        %4599 = vmatpush1.msra.mxu0 %v4214
        %4600 = vmatprep.subr.mxu0 %v4199
        %4601 = vmatpush1.msra.mxu0 %v4198
        %4602 = vmatprep.subr.mxu0 %v4183
        %4603 = vmatpush1.msra.mxu0 %v4182
        %4604 = vmatprep.subr.mxu0 %v4167
        %4605 = vmatpush1.msra.mxu0 %v4166
        %4606 = vmatprep.subr.mxu0 %v4151
        %4607 = vmatpush1.msra.mxu0 %v4150
        %4608 = vmatprep.subr.mxu0 %v4135
        %4609 = vmatpush1.msra.mxu0 %v4134
        %4610 = vmatprep.subr.mxu0 %v4119
        %4611 = vmatpush1.msra.mxu0 %v4118
        %4612 = vmatprep.subr.mxu0 %v4103
        %4613 = vmatpush1.msra.mxu0 %v4102
        %4614 = vmatprep.subr.mxu0 %v4087
        %4615 = vmatpush1.msra.mxu0 %v4086
        %4616 = vmatprep.subr.mxu0 %v4071
        %4617 = vmatpush1.msra.mxu0 %v4070
        %4618 = vmatprep.subr.mxu0 %v4055
        %4619 = vmatpush1.msra.mxu0 %v4054
        %4620 = vmatprep.subr.mxu0 %v4039
        %4621 = vmatpush1.msra.mxu0 %v4038
        %4622 = vmatprep.subr.mxu0 %v4023
        %4623 = vmatpush1.msra.mxu0 %v4022
        %4624 = vmatprep.subr.mxu0 %v4007
        %4625 = vmatpush1.msra.mxu0 %v4006
        %4626 = vmatprep.subr.mxu0 %v3991
        %4627 = vmatpush1.msra.mxu0 %v3990
        %4628 = vmatprep.subr.mxu0 0.0
        %4629 = vmatpush2.msra.mxu0 0.0
        %4630 = vmatprep.subr.mxu0 0.0
        %4631 = vmatpush2.msra.mxu0 0.0
        %4632 = vmatprep.subr.mxu0 0.0
        %4633 = vmatpush2.msra.mxu0 0.0
        %4634 = vmatprep.subr.mxu0 0.0
        %4635 = vmatpush2.msra.mxu0 0.0
        %4636 = vmatprep.subr.mxu0 0.0
        %4637 = vmatpush2.msra.mxu0 0.0
        %4638 = vmatprep.subr.mxu0 0.0
        %4639 = vmatpush2.msra.mxu0 0.0
        %4640 = vmatprep.subr.mxu0 0.0
        %4641 = vmatpush2.msra.mxu0 0.0
        %4642 = vmatprep.subr.mxu0 0.0
        %4643 = vmatpush2.msra.mxu0 0.0
        %4644 = vmatprep.subr.mxu0 0.0
        %4645 = vmatpush2.msra.mxu0 0.0
        %4646 = vmatprep.subr.mxu0 0.0
        %4647 = vmatpush2.msra.mxu0 0.0
        %4648 = vmatprep.subr.mxu0 0.0
        %4649 = vmatpush2.msra.mxu0 0.0
        %4650 = vmatprep.subr.mxu0 0.0
        %4651 = vmatpush2.msra.mxu0 0.0
        %4652 = vmatprep.subr.mxu0 0.0
        %4653 = vmatpush2.msra.mxu0 0.0
        %4654 = vmatprep.subr.mxu0 0.0
        %4655 = vmatpush2.msra.mxu0 0.0
        %4656 = vmatprep.subr.mxu0 0.0
        %4657 = vmatpush2.msra.mxu0 0.0
        %4658 = vmatprep.subr.mxu0 0.0
        %4659 = vmatpush2.msra.mxu0 0.0
        %4660 = vmatprep.mubr.f32.mxu0 0.0
        %4661 = vmatmul.mubr.f32.gmra.mxu0 %v4236
        %v4662 = vpop.f32.mrf.mxu0
        %v4663 = vadd.f32 %v4239, %v4662
        %v4664 = vpop.f32.mrf.mxu0
        %v4665 = vadd.f32 %v4239, %v4664
        %4666 = vdwg.mxu0
        %4667 = vmatprep.subr.mxu0 %v4233
        %4668 = vmatpush1.msra.mxu0 %v4232
        %4669 = vmatprep.subr.mxu0 %v4217
        %4670 = vmatpush1.msra.mxu0 %v4216
        %4671 = vmatprep.subr.mxu0 %v4201
        %4672 = vmatpush1.msra.mxu0 %v4200
        %4673 = vmatprep.subr.mxu0 %v4185
        %4674 = vmatpush1.msra.mxu0 %v4184
        %4675 = vmatprep.subr.mxu0 %v4169
        %4676 = vmatpush1.msra.mxu0 %v4168
        %4677 = vmatprep.subr.mxu0 %v4153
        %4678 = vmatpush1.msra.mxu0 %v4152
        %4679 = vmatprep.subr.mxu0 %v4137
        %4680 = vmatpush1.msra.mxu0 %v4136
        %4681 = vmatprep.subr.mxu0 %v4121
        %4682 = vmatpush1.msra.mxu0 %v4120
        %4683 = vmatprep.subr.mxu0 %v4105
        %4684 = vmatpush1.msra.mxu0 %v4104
        %4685 = vmatprep.subr.mxu0 %v4089
        %4686 = vmatpush1.msra.mxu0 %v4088
        %4687 = vmatprep.subr.mxu0 %v4073
        %4688 = vmatpush1.msra.mxu0 %v4072
        %4689 = vmatprep.subr.mxu0 %v4057
        %4690 = vmatpush1.msra.mxu0 %v4056
        %4691 = vmatprep.subr.mxu0 %v4041
        %4692 = vmatpush1.msra.mxu0 %v4040
        %4693 = vmatprep.subr.mxu0 %v4025
        %4694 = vmatpush1.msra.mxu0 %v4024
        %4695 = vmatprep.subr.mxu0 %v4009
        %4696 = vmatpush1.msra.mxu0 %v4008
        %4697 = vmatprep.subr.mxu0 %v3993
        %4698 = vmatpush1.msra.mxu0 %v3992
        %4699 = vmatprep.subr.mxu0 0.0
        %4700 = vmatpush2.msra.mxu0 0.0
        %4701 = vmatprep.subr.mxu0 0.0
        %4702 = vmatpush2.msra.mxu0 0.0
        %4703 = vmatprep.subr.mxu0 0.0
        %4704 = vmatpush2.msra.mxu0 0.0
        %4705 = vmatprep.subr.mxu0 0.0
        %4706 = vmatpush2.msra.mxu0 0.0
        %4707 = vmatprep.subr.mxu0 0.0
        %4708 = vmatpush2.msra.mxu0 0.0
        %4709 = vmatprep.subr.mxu0 0.0
        %4710 = vmatpush2.msra.mxu0 0.0
        %4711 = vmatprep.subr.mxu0 0.0
        %4712 = vmatpush2.msra.mxu0 0.0
        %4713 = vmatprep.subr.mxu0 0.0
        %4714 = vmatpush2.msra.mxu0 0.0
        %4715 = vmatprep.subr.mxu0 0.0
        %4716 = vmatpush2.msra.mxu0 0.0
        %4717 = vmatprep.subr.mxu0 0.0
        %4718 = vmatpush2.msra.mxu0 0.0
        %4719 = vmatprep.subr.mxu0 0.0
        %4720 = vmatpush2.msra.mxu0 0.0
        %4721 = vmatprep.subr.mxu0 0.0
        %4722 = vmatpush2.msra.mxu0 0.0
        %4723 = vmatprep.subr.mxu0 0.0
        %4724 = vmatpush2.msra.mxu0 0.0
        %4725 = vmatprep.subr.mxu0 0.0
        %4726 = vmatpush2.msra.mxu0 0.0
        %4727 = vmatprep.subr.mxu0 0.0
        %4728 = vmatpush2.msra.mxu0 0.0
        %4729 = vmatprep.subr.mxu0 0.0
        %4730 = vmatpush2.msra.mxu0 0.0
        %4731 = vmatprep.mubr.f32.mxu0 0.0
        %4732 = vmatmul.mubr.f32.gmra.mxu0 %v4236
        %v4733 = vpop.f32.mrf.mxu0
        %v4734 = vadd.f32 %v4239, %v4733
        %v4735 = vpop.f32.mrf.mxu0
        %v4736 = vadd.f32 %v4239, %v4735
        %4737 = vdwg.mxu0
        %4738 = vmatprep.subr.mxu0 %v4235
        %4739 = vmatpush1.msra.mxu0 %v4234
        %4740 = vmatprep.subr.mxu0 %v4219
        %4741 = vmatpush1.msra.mxu0 %v4218
        %4742 = vmatprep.subr.mxu0 %v4203
        %4743 = vmatpush1.msra.mxu0 %v4202
        %4744 = vmatprep.subr.mxu0 %v4187
        %4745 = vmatpush1.msra.mxu0 %v4186
        %4746 = vmatprep.subr.mxu0 %v4171
        %4747 = vmatpush1.msra.mxu0 %v4170
        %4748 = vmatprep.subr.mxu0 %v4155
        %4749 = vmatpush1.msra.mxu0 %v4154
        %4750 = vmatprep.subr.mxu0 %v4139
        %4751 = vmatpush1.msra.mxu0 %v4138
        %4752 = vmatprep.subr.mxu0 %v4123
        %4753 = vmatpush1.msra.mxu0 %v4122
        %4754 = vmatprep.subr.mxu0 %v4107
        %4755 = vmatpush1.msra.mxu0 %v4106
        %4756 = vmatprep.subr.mxu0 %v4091
        %4757 = vmatpush1.msra.mxu0 %v4090
        %4758 = vmatprep.subr.mxu0 %v4075
        %4759 = vmatpush1.msra.mxu0 %v4074
        %4760 = vmatprep.subr.mxu0 %v4059
        %4761 = vmatpush1.msra.mxu0 %v4058
        %4762 = vmatprep.subr.mxu0 %v4043
        %4763 = vmatpush1.msra.mxu0 %v4042
        %4764 = vmatprep.subr.mxu0 %v4027
        %4765 = vmatpush1.msra.mxu0 %v4026
        %4766 = vmatprep.subr.mxu0 %v4011
        %4767 = vmatpush1.msra.mxu0 %v4010
        %4768 = vmatprep.subr.mxu0 %v3995
        %4769 = vmatpush1.msra.mxu0 %v3994
        %4770 = vmatprep.subr.mxu0 0.0
        %4771 = vmatpush2.msra.mxu0 0.0
        %4772 = vmatprep.subr.mxu0 0.0
        %4773 = vmatpush2.msra.mxu0 0.0
        %4774 = vmatprep.subr.mxu0 0.0
        %4775 = vmatpush2.msra.mxu0 0.0
        %4776 = vmatprep.subr.mxu0 0.0
        %4777 = vmatpush2.msra.mxu0 0.0
        %4778 = vmatprep.subr.mxu0 0.0
        %4779 = vmatpush2.msra.mxu0 0.0
        %4780 = vmatprep.subr.mxu0 0.0
        %4781 = vmatpush2.msra.mxu0 0.0
        %4782 = vmatprep.subr.mxu0 0.0
        %4783 = vmatpush2.msra.mxu0 0.0
        %4784 = vmatprep.subr.mxu0 0.0
        %4785 = vmatpush2.msra.mxu0 0.0
        %4786 = vmatprep.subr.mxu0 0.0
        %4787 = vmatpush2.msra.mxu0 0.0
        %4788 = vmatprep.subr.mxu0 0.0
        %4789 = vmatpush2.msra.mxu0 0.0
        %4790 = vmatprep.subr.mxu0 0.0
        %4791 = vmatpush2.msra.mxu0 0.0
        %4792 = vmatprep.subr.mxu0 0.0
        %4793 = vmatpush2.msra.mxu0 0.0
        %4794 = vmatprep.subr.mxu0 0.0
        %4795 = vmatpush2.msra.mxu0 0.0
        %4796 = vmatprep.subr.mxu0 0.0
        %4797 = vmatpush2.msra.mxu0 0.0
        %4798 = vmatprep.subr.mxu0 0.0
        %4799 = vmatpush2.msra.mxu0 0.0
        %4800 = vmatprep.subr.mxu0 0.0
        %4801 = vmatpush2.msra.mxu0 0.0
        %4802 = vmatprep.mubr.f32.mxu0 0.0
        %4803 = vmatmul.mubr.f32.gmra.mxu0 %v4236
        %v4804 = vpop.f32.mrf.mxu0
        %v4805 = vadd.f32 %v4239, %v4804
        %v4806 = vpop.f32.mrf.mxu0
        %v4807 = vadd.f32 %v4239, %v4806
        %4808 = vdwg.mxu0
        %v4809 = vmul.f32 %v4308, 0.5
        %v4810 = vmul.f32 %v4310, 0.5
        %v4811 = vmul.f32 %v4379, 0.5
        %v4812 = vmul.f32 %v4381, 0.5
        %v4813 = vmul.f32 %v4450, 0.5
        %v4814 = vmul.f32 %v4452, 0.5
        %v4815 = vmul.f32 %v4521, 0.5
        %v4816 = vmul.f32 %v4523, 0.5
        %v4817 = vmul.f32 %v4592, 0.5
        %v4818 = vmul.f32 %v4594, 0.5
        %v4819 = vmul.f32 %v4663, 0.5
        %v4820 = vmul.f32 %v4665, 0.5
        %v4821 = vmul.f32 %v4734, 0.5
        %v4822 = vmul.f32 %v4736, 0.5
        %v4823 = vmul.f32 %v4805, 0.5
        %v4824 = vmul.f32 %v4807, 0.5
        %v4825 = vadd.f32 %v4809, 0.1
        %v4826 = vadd.f32 %v4810, 0.1
        %v4827 = vadd.f32 %v4811, 0.1
        %v4828 = vadd.f32 %v4812, 0.1
        %v4829 = vadd.f32 %v4813, 0.1
        %v4830 = vadd.f32 %v4814, 0.1
        %v4831 = vadd.f32 %v4815, 0.1
        %v4832 = vadd.f32 %v4816, 0.1
        %v4833 = vadd.f32 %v4817, 0.1
        %v4834 = vadd.f32 %v4818, 0.1
        %v4835 = vadd.f32 %v4819, 0.1
        %v4836 = vadd.f32 %v4820, 0.1
        %v4837 = vadd.f32 %v4821, 0.1
        %v4838 = vadd.f32 %v4822, 0.1
        %v4839 = vadd.f32 %v4823, 0.1
        %v4840 = vadd.f32 %v4824, 0.1
        %v4841 = vmul.f32 %v955, %v795
        %v4842 = vmul.f32 %v956, %v796
        %v4843 = vmul.f32 %v957, %v797
        %v4844 = vmul.f32 %v958, %v798
        %v4845 = vmul.f32 %v959, %v799
        %v4846 = vmul.f32 %v960, %v800
        %v4847 = vmul.f32 %v961, %v801
        %v4848 = vmul.f32 %v962, %v802
        %v4849 = vmul.f32 %v963, %v803
        %v4850 = vmul.f32 %v964, %v804
        %v4851 = vmul.f32 %v965, %v805
        %v4852 = vmul.f32 %v966, %v806
        %v4853 = vmul.f32 %v967, %v807
        %v4854 = vmul.f32 %v968, %v808
        %v4855 = vmul.f32 %v969, %v809
        %v4856 = vmul.f32 %v970, %v810
        %v4857 = vmul.f32 %v4841, %v4825
        %v4858 = vmul.f32 %v4842, %v4826
        %v4859 = vmul.f32 %v4843, %v4827
        %v4860 = vmul.f32 %v4844, %v4828
        %v4861 = vmul.f32 %v4845, %v4829
        %v4862 = vmul.f32 %v4846, %v4830
        %v4863 = vmul.f32 %v4847, %v4831
        %v4864 = vmul.f32 %v4848, %v4832
        %v4865 = vmul.f32 %v4849, %v4833
        %v4866 = vmul.f32 %v4850, %v4834
        %v4867 = vmul.f32 %v4851, %v4835
        %v4868 = vmul.f32 %v4852, %v4836
        %v4869 = vmul.f32 %v4853, %v4837
        %v4870 = vmul.f32 %v4854, %v4838
        %v4871 = vmul.f32 %v4855, %v4839
        %v4872 = vmul.f32 %v4856, %v4840
        %v4873 = vrot.slane %v4857, 4
        %v4874 = vadd.f32 %v4857, %v4873
        %v4875 = vrot.slane %v4874, 2
        %v4876 = vadd.f32 %v4874, %v4875
        %v4877 = vrot.slane %v4876, 1
        %v4878 = vadd.f32 %v4876, %v4877
        %v4879 = vrot.slane %v4858, 4
        %v4880 = vadd.f32 %v4858, %v4879
        %v4881 = vrot.slane %v4880, 2
        %v4882 = vadd.f32 %v4880, %v4881
        %v4883 = vrot.slane %v4882, 1
        %v4884 = vadd.f32 %v4882, %v4883
        %v4885 = vrot.slane %v4859, 4
        %v4886 = vadd.f32 %v4859, %v4885
        %v4887 = vrot.slane %v4886, 2
        %v4888 = vadd.f32 %v4886, %v4887
        %v4889 = vrot.slane %v4888, 1
        %v4890 = vadd.f32 %v4888, %v4889
        %v4891 = vrot.slane %v4860, 4
        %v4892 = vadd.f32 %v4860, %v4891
        %v4893 = vrot.slane %v4892, 2
        %v4894 = vadd.f32 %v4892, %v4893
        %v4895 = vrot.slane %v4894, 1
        %v4896 = vadd.f32 %v4894, %v4895
        %v4897 = vrot.slane %v4861, 4
        %v4898 = vadd.f32 %v4861, %v4897
        %v4899 = vrot.slane %v4898, 2
        %v4900 = vadd.f32 %v4898, %v4899
        %v4901 = vrot.slane %v4900, 1
        %v4902 = vadd.f32 %v4900, %v4901
        %v4903 = vrot.slane %v4862, 4
        %v4904 = vadd.f32 %v4862, %v4903
        %v4905 = vrot.slane %v4904, 2
        %v4906 = vadd.f32 %v4904, %v4905
        %v4907 = vrot.slane %v4906, 1
        %v4908 = vadd.f32 %v4906, %v4907
        %v4909 = vrot.slane %v4863, 4
        %v4910 = vadd.f32 %v4863, %v4909
        %v4911 = vrot.slane %v4910, 2
        %v4912 = vadd.f32 %v4910, %v4911
        %v4913 = vrot.slane %v4912, 1
        %v4914 = vadd.f32 %v4912, %v4913
        %v4915 = vrot.slane %v4864, 4
        %v4916 = vadd.f32 %v4864, %v4915
        %v4917 = vrot.slane %v4916, 2
        %v4918 = vadd.f32 %v4916, %v4917
        %v4919 = vrot.slane %v4918, 1
        %v4920 = vadd.f32 %v4918, %v4919
        %v4921 = vrot.slane %v4865, 4
        %v4922 = vadd.f32 %v4865, %v4921
        %v4923 = vrot.slane %v4922, 2
        %v4924 = vadd.f32 %v4922, %v4923
        %v4925 = vrot.slane %v4924, 1
        %v4926 = vadd.f32 %v4924, %v4925
        %v4927 = vrot.slane %v4866, 4
        %v4928 = vadd.f32 %v4866, %v4927
        %v4929 = vrot.slane %v4928, 2
        %v4930 = vadd.f32 %v4928, %v4929
        %v4931 = vrot.slane %v4930, 1
        %v4932 = vadd.f32 %v4930, %v4931
        %v4933 = vrot.slane %v4867, 4
        %v4934 = vadd.f32 %v4867, %v4933
        %v4935 = vrot.slane %v4934, 2
        %v4936 = vadd.f32 %v4934, %v4935
        %v4937 = vrot.slane %v4936, 1
        %v4938 = vadd.f32 %v4936, %v4937
        %v4939 = vrot.slane %v4868, 4
        %v4940 = vadd.f32 %v4868, %v4939
        %v4941 = vrot.slane %v4940, 2
        %v4942 = vadd.f32 %v4940, %v4941
        %v4943 = vrot.slane %v4942, 1
        %v4944 = vadd.f32 %v4942, %v4943
        %v4945 = vrot.slane %v4869, 4
        %v4946 = vadd.f32 %v4869, %v4945
        %v4947 = vrot.slane %v4946, 2
        %v4948 = vadd.f32 %v4946, %v4947
        %v4949 = vrot.slane %v4948, 1
        %v4950 = vadd.f32 %v4948, %v4949
        %v4951 = vrot.slane %v4870, 4
        %v4952 = vadd.f32 %v4870, %v4951
        %v4953 = vrot.slane %v4952, 2
        %v4954 = vadd.f32 %v4952, %v4953
        %v4955 = vrot.slane %v4954, 1
        %v4956 = vadd.f32 %v4954, %v4955
        %v4957 = vrot.slane %v4871, 4
        %v4958 = vadd.f32 %v4871, %v4957
        %v4959 = vrot.slane %v4958, 2
        %v4960 = vadd.f32 %v4958, %v4959
        %v4961 = vrot.slane %v4960, 1
        %v4962 = vadd.f32 %v4960, %v4961
        %v4963 = vrot.slane %v4872, 4
        %v4964 = vadd.f32 %v4872, %v4963
        %v4965 = vrot.slane %v4964, 2
        %v4966 = vadd.f32 %v4964, %v4965
        %v4967 = vrot.slane %v4966, 1
        %v4968 = vadd.f32 %v4966, %v4967
        %v4985 = vcombine.low %v4878, %v4884
        %v4986 = vcombine.low %v4890, %v4896
        %v4987 = vcombine.low %v4902, %v4908
        %v4988 = vcombine.low %v4914, %v4920
        %v4990 = vunpack.c.l.s4 1966171168
        %v4991 = vunpack.c.0.s8 %v4990
        %v4992 = vlaneseq
        %v4993 = vshrl.u32 %v4992, 7
        %v4994 = vsub.s32 %v4991, %v4993
        %v4995 = vrot.slane %v4985, %v4994
        %v4997 = vunpack.c.l.s4 1966171168
        %v4998 = vunpack.c.0.s8 %v4997
        %v4999 = vlaneseq
        %v5000 = vshrl.u32 %v4999, 7
        %v5001 = vsub.s32 %v4998, %v5000
        %v5002 = vrot.slane %v4986, %v5001
        %v5004 = vunpack.c.l.s4 1966171168
        %v5005 = vunpack.c.0.s8 %v5004
        %v5006 = vlaneseq
        %v5007 = vshrl.u32 %v5006, 7
        %v5008 = vsub.s32 %v5005, %v5007
        %v5009 = vrot.slane %v4987, %v5008
        %v5011 = vunpack.c.l.s4 1966171168
        %v5012 = vunpack.c.0.s8 %v5011
        %v5013 = vlaneseq
        %v5014 = vshrl.u32 %v5013, 7
        %v5015 = vsub.s32 %v5012, %v5014
        %v5016 = vrot.slane %v4988, %v5015
        %v5017 = vcombine.low %v4995, %v5002
        %v5018 = vcombine.low %v5009, %v5016
        %v5020 = vunpack.c.l.s4 1966171168
        %v5021 = vunpack.c.0.s8 %v5020
        %v5022 = vlaneseq
        %v5023 = vshrl.u32 %v5022, 7
        %v5024 = vsub.s32 %v5021, %v5023
        %v5025 = vrot.slane %v5017, %v5024
        %v5027 = vunpack.c.l.s4 1966171168
        %v5028 = vunpack.c.0.s8 %v5027
        %v5029 = vlaneseq
        %v5030 = vshrl.u32 %v5029, 7
        %v5031 = vsub.s32 %v5028, %v5030
        %v5032 = vrot.slane %v5018, %v5031
        %v5033 = vcombine.low %v5025, %v5032
        %v5034 = vcombine.low %v4926, %v4932
        %v5035 = vcombine.low %v4938, %v4944
        %v5036 = vcombine.low %v4950, %v4956
        %v5037 = vcombine.low %v4962, %v4968
        %v5039 = vunpack.c.l.s4 1966171168
        %v5040 = vunpack.c.0.s8 %v5039
        %v5041 = vlaneseq
        %v5042 = vshrl.u32 %v5041, 7
        %v5043 = vsub.s32 %v5040, %v5042
        %v5044 = vrot.slane %v5034, %v5043
        %v5046 = vunpack.c.l.s4 1966171168
        %v5047 = vunpack.c.0.s8 %v5046
        %v5048 = vlaneseq
        %v5049 = vshrl.u32 %v5048, 7
        %v5050 = vsub.s32 %v5047, %v5049
        %v5051 = vrot.slane %v5035, %v5050
        %v5053 = vunpack.c.l.s4 1966171168
        %v5054 = vunpack.c.0.s8 %v5053
        %v5055 = vlaneseq
        %v5056 = vshrl.u32 %v5055, 7
        %v5057 = vsub.s32 %v5054, %v5056
        %v5058 = vrot.slane %v5036, %v5057
        %v5060 = vunpack.c.l.s4 1966171168
        %v5061 = vunpack.c.0.s8 %v5060
        %v5062 = vlaneseq
        %v5063 = vshrl.u32 %v5062, 7
        %v5064 = vsub.s32 %v5061, %v5063
        %v5065 = vrot.slane %v5037, %v5064
        %v5066 = vcombine.low %v5044, %v5051
        %v5067 = vcombine.low %v5058, %v5065
        %v5069 = vunpack.c.l.s4 1966171168
        %v5070 = vunpack.c.0.s8 %v5069
        %v5071 = vlaneseq
        %v5072 = vshrl.u32 %v5071, 7
        %v5073 = vsub.s32 %v5070, %v5072
        %v5074 = vrot.slane %v5066, %v5073
        %v5076 = vunpack.c.l.s4 1966171168
        %v5077 = vunpack.c.0.s8 %v5076
        %v5078 = vlaneseq
        %v5079 = vshrl.u32 %v5078, 7
        %v5080 = vsub.s32 %v5077, %v5079
        %v5081 = vrot.slane %v5067, %v5080
        %v5082 = vcombine.low %v5074, %v5081
        %5085 = vst [vmem:[%s273] sm:$0xff] %v5033
        %5086 = vst [vmem:[%s273 + $0x8] sm:$0xff] %v5082
        %s5087 = sand.u32 %s161, 1
        %s5088 = scalar_lea.sflag [#allocation4], %s5087
        %s5089 = sand.u32 %s161, 1
        %s5090 = smul.addr %s5089, 16
        %s5091 = scalar_lea.vmem [#allocation7], %s5090
        // Predicated region
        $region53: #{tpu_custom_call.1} parent=43 // pred_check
          %p5092 = pneg %p171
        $region54: #{tpu_custom_call.1} parent=43 // pred_check_branch
          %5094 = sbr.rel (%p5092) target = $region56
        $region55: #{tpu_custom_call.1} parent=43 // pred_region
          %s5095 = smul.u32 16, %s22
          %s5097 = ssub.s32 256, 256
          %5098 = vsyncadd %s5088, %s5097
          %s5099 = smul.addr %s5095, 16
          %s5100 = scalar_lea.hbm %s6, %s5099
          %s5102 = sshll.u32 %s5091, 4
          %s5103 = int_to_ptr.vmem [resolvable:$true] %s5102
          %5105 = dma.vmem_to_hbm [thread:$0]  %s5103, 256, %s5100, %s5088
        $region56: #{tpu_custom_call.1} parent=43 // pred_fallthru
          _
      $region44: #{tpu_custom_call.1} parent=5 // pred_fallthru
        _
      %p5106 = scmp.le.s32.totalorder 2, %s17
      // Predicated region
      $region57: #{tpu_custom_call.1} parent=5 // pred_check
        %p5107 = pneg %p5106
      $region58: #{tpu_custom_call.1} parent=5 // pred_check_branch
        %5109 = sbr.rel (%p5107) target = $region60
      $region59: #{tpu_custom_call.1} parent=5 // pred_region
        %s5110 = ssub.s32 %s17, 2
        // Predicated region
        $region61: #{tpu_custom_call.1} parent=59 // pred_check
          %p5111 = pneg %p177
        $region62: #{tpu_custom_call.1} parent=59 // pred_check_branch
          %5113 = sbr.rel (%p5111) target = $region64
        $region63: #{tpu_custom_call.1} parent=59 // pred_region
          %s5114 = sand.u32 %s162, 1
          %s5115 = scalar_lea.sflag [#allocation4], %s5114
          %s5116 = sand.u32 %s162, 1
          %s5117 = smul.addr %s5116, 16
          %s5118 = scalar_lea.vmem [#allocation7], %s5117
          %5119 = dma.done %s5115, 256
        $region64: #{tpu_custom_call.1} parent=59 // pred_fallthru
          _
      $region60: #{tpu_custom_call.1} parent=5 // pred_fallthru
        _
    $region6: #{tpu_custom_call.1} parent=1 // loop_footer
      %s21 = sadd.s32 1, %s17
    $region7: #{tpu_custom_call.1} parent=1 // loop_footer_branch
      %16 = sbr.rel target = $region3
    $region8: #{tpu_custom_call.1} parent=1 // loop_exit
      _
    %5120 = vsyncpa [#allocation3], 1
    %s5121 = scalar_lea.sflag [#allocation3], 1
    %5122 = vsyncpa %s5121, 1
    %5123 = vsyncpa [#allocation6], 1
    %5124 = vsyncpa [#allocation4], 1
    %s5125 = scalar_lea.sflag [#allocation4], 1
    %5126 = vsyncpa %s5125, 1

</llo_original>
